<compile_context>
chip_gen: v7x
topology: tpu7x:2x2x1
jax: 0.10.0
libtpu: 0.0.40
codegen_flags: <defaults>
</compile_context>

<pallas_src>
import functools
import math

import jax
import jax.numpy as jnp
import numpy as np
from jax.experimental import pallas as pl
from jax.experimental.pallas import tpu as pltpu

# ----------------------------- model hyper-params ---------------------------
B = 2            # batch
IMG = 16         # input spatial size
CIN = 3          # input channels
C1 = 16          # backbone channel width (stand-in for resnet's 512)
EMBED = 32       # args.embed_feat_dim
CLASS_NUM = 8    # args.class_num
MLP_WIDTH = 64   # hparams.mlp_width
MLP_DEPTH = 3    # hparams.mlp_depth
N_HIDDEN = MLP_DEPTH - 2
BN_TYPE = 1      # args.bn_type
THRESHOLD = 0.9

H1 = (IMG + 2 * 3 - 7) // 2 + 1       # 8   conv1 (7x7, s2, p3) output
H2 = (H1 + 2 * 1 - 3) // 2 + 1        # 4   maxpool (3x3, s2, p1) output
PADH = IMG + 6                        # 22  height-padded rows (width pad folded into Wt)
QROWS = (PADH + 3) // 4               # 6   rows per (row mod 4) group, zero padded
IMG_ROWS = 4 * QROWS * B              # 48
IMG_COLS = IMG * CIN                  # 48
SROWS = (H1 // 2) * B                 # 8   rows of one oh-parity group, batch-minor

# conv Toeplitz slab layout (rows x 128)
STEM_WROWS = IMG * CIN                # 48 rows per 7x7 tap
STEM_COLS = H1 * C1                   # 128 (ow-parity-major column order)
BLK_WROWS = H2 * C1                   # 64 rows per 3x3 tap
BLK_COLS = H2 * C1                    # 64
CW_STEM_OFF = 0
CW_BLK_OFF = 7 * STEM_WROWS           # 336
CW_ROWS = CW_BLK_OFF + 3 * BLK_WROWS  # 528

# dense matrix slab layout (rows x 128), every offset is a multiple of 8
DW_BOT = 0                            # (C1, EMBED)
DW_MSE = DW_BOT + C1                  # (EMBED, 2*EMBED)   fc1_mu|fc1_sig (embed)
DW_IN = DW_MSE + EMBED                # (EMBED, MLP_WIDTH)
DW_HID = DW_IN + EMBED                # N_HIDDEN x (MLP_WIDTH, MLP_WIDTH)
DW_OUT = DW_HID + N_HIDDEN * MLP_WIDTH
DW_MSM = DW_OUT + MLP_WIDTH           # (EMBED, 2*EMBED)   fc1_mu|fc1_sig (mlp)
DW_CLS = DW_MSM + EMBED               # (EMBED, CLASS_NUM) weight-norm classifier
DW_ROWS = DW_CLS + EMBED
DW_COLS = 128

# bias / BN / shift-vector slab rows
VR_STEM, VR_BLKA, VR_BLKB = 0, 1, 2
VR_CBOT, VR_CMSE, VR_S4E, VR_H4E, VR_BI = 3, 4, 5, 6, 7
VR_BH = 8
VR_BO = VR_BH + N_HIDDEN
VR_S1M, VR_H1M, VR_CMSM = VR_BO + 1, VR_BO + 2, VR_BO + 3
VR_S4M, VR_H4M, VR_BC = VR_BO + 4, VR_BO + 5, VR_BO + 6
VEC_ROWS = ((VR_BC + 1 + 7) // 8) * 8
VEC_COLS = 128

# packed output slab (B, 256)
O_ROIS, O_ROISC = 0, C1
O_INT, O_INTROIS = C1 + EMBED, C1 + 2 * EMBED
O_Y = C1 + 3 * EMBED
O_INTY = O_Y + CLASS_NUM
O_DIST = 128
OUT_COLS = 256

_LOG_2PIE_HALF = 0.5 * math.log(2.0 * math.pi * math.e)
NEG = -1e30   # maxpool pad value (inputs are post-ReLU >= 0, so never selected)


# ------------------------------- Pallas kernel -------------------------------
def _cosda_kernel(img_ref, convw_ref, densew_ref, vec_ref, noise_ref, out_ref,
                  *, n_hidden, use_bn, apply_softmax):
    f32 = jnp.float32

    def dot(a, b):
        return jnp.dot(a, b, preferred_element_type=f32)

    def iota2(shape, dim):
        return jax.lax.broadcasted_iota(jnp.int32, shape, dim)

    def shift_mat(n, k):
        # S[i, j] = 1 iff j == i - k, so (S @ x)[i] = x[i - k] with zero fill.
        return jnp.where(iota2((n, n), 0) == iota2((n, n), 1) + k, 1.0, 0.0).astype(f32)

    def place_mat(w, off, total):
        # P[j, col] = 1 iff col == off + j, so (x @ P) places x's cols at [off, off+w).
        return jnp.where(iota2((w, total), 1) == iota2((w, total), 0) + off, 1.0, 0.0).astype(f32)

    def vec(row, width):
        return vec_ref[row:row + 1, 0:width]

    def sigmoid(x):                       # single EUP op (tanh) instead of exp + rcp
        return 0.5 * jnp.tanh(0.5 * x) + 0.5

    def silu(x):
        return x * sigmoid(x)

    # ---- conv1 7x7/s2/p3 + bn1 + ReLU: row-Toeplitz MXU matmuls -------------
    acc_e = jnp.zeros((SROWS, STEM_COLS), f32)   # even output rows (oh in {0,2,4,6}), batch-minor
    acc_o = jnp.zeros((SROWS, STEM_COLS), f32)   # odd output rows
    for ki in range(7):
        wt = convw_ref[CW_STEM_OFF + ki * STEM_WROWS:CW_STEM_OFF + (ki + 1) * STEM_WROWS, :]
        for parity in range(2):
            base = ki + 2 * parity               # padded input row offset
            start = (base % 4) * (QROWS * B) + (base // 4) * B
            lhs = img_ref[start:start + SROWS, :]           # (8, 48) contiguous rows
            contrib = dot(lhs, wt)                          # MXU
            if parity == 0:
                acc_e = acc_e + contrib
            else:
                acc_o = acc_o + contrib
    stem_shift = vec(VR_STEM, STEM_COLS)
    act_e = jnp.maximum(acc_e + stem_shift, 0.0)
    act_o = jnp.maximum(acc_o + stem_shift, 0.0)

    # ---- maxpool 3x3/s2/p1: shifts via constant matmuls, max on the VPU -----
    colshift = place_mat(BLK_COLS, C1, BLK_COLS)            # shift right by one ow block
    ci = iota2((SROWS, BLK_COLS), 1)
    ri = iota2((SROWS, BLK_COLS), 0)

    def width_pool(act):                                    # (8,128) -> (8,64)
        even = act[:, 0:BLK_COLS]                           # ow in {0,2,4,6}
        odd = act[:, BLK_COLS:STEM_COLS]                    # ow in {1,3,5,7}
        odd_l = jnp.where(ci >= C1, dot(odd, colshift), NEG)   # ow in {-1,1,3,5}
        return jnp.maximum(jnp.maximum(even, odd), odd_l)

    m1e = width_pool(act_e)
    m1o = width_pool(act_o)
    down2 = shift_mat(SROWS, B)
    m1o_up = jnp.where(ri >= B, dot(down2, m1o), NEG)       # oh in {-1,1,3,5}
    pooled = jnp.maximum(jnp.maximum(m1e, m1o), m1o_up)     # (8,64) rows=(i,b), cols=(j,c)

    # ---- BasicBlock: conv3x3+bn+relu, conv3x3+bn, +identity, relu (MXU) -----
    up2 = shift_mat(SROWS, -B)

    def conv3x3(x, col0, bias_row):
        def w(ki):
            r0 = CW_BLK_OFF + ki * BLK_WROWS
            return convw_ref[r0:r0 + BLK_WROWS, col0:col0 + BLK_COLS]
        acc = dot(x, w(1))
        acc = acc + dot(dot(down2, x), w(0))                # input row i-1, zero pad
        acc = acc + dot(dot(up2, x), w(2))                  # input row i+1, zero pad
        return acc + vec(bias_row, BLK_COLS)

    ya = jnp.maximum(conv3x3(pooled, 0, VR_BLKA), 0.0)
    yb = conv3x3(ya, BLK_COLS, VR_BLKB)
    blk = jnp.maximum(yb + pooled, 0.0)                     # (8,64)

    # ---- adaptive avg pool (1,1) + flatten -> rois (B, C1) ------------------
    rs = blk[0:B, :] + blk[B:2 * B, :] + blk[2 * B:3 * B, :] + blk[3 * B:4 * B, :]
    rois = (rs[:, 0:C1] + rs[:, C1:2 * C1] + rs[:, 2 * C1:3 * C1]
            + rs[:, 3 * C1:4 * C1]) * (1.0 / (H2 * H2))

    # ---- dense path ---------------------------------------------------------
    def mat(row0, nrows, ncols):
        return densew_ref[row0:row0 + nrows, 0:ncols]

    def gauss_head(x, w_off, c_row, s4_row, h4_row, noise):
        ms = dot(x, mat(w_off, EMBED, 2 * EMBED)) + vec(c_row, 2 * EMBED)
        mu = ms[:, 0:EMBED]
        if use_bn:
            mu = silu(mu)                                   # swish2 (bn2 folded into W)
        sg = ms[:, EMBED:2 * EMBED]
        # softplus + 1e-8 (stable form; log1p would be marginally more accurate)
        sig = jnp.maximum(sg, 0.0) + jnp.log(1.0 + jnp.exp(-jnp.abs(sg))) + 1e-8
        ent = _LOG_2PIE_HALF + jnp.log(sig)                 # Normal(mu, sig).entropy()
        r = jnp.maximum(THRESHOLD - ent, 0.0)
        dist = jnp.sum(jnp.sum(r, axis=1, keepdims=True), axis=0,
                       keepdims=True) * (1.0 / (B * EMBED))
        sample = mu + sig * noise                           # rsample()
        out = silu(sample * vec(s4_row, EMBED) + vec(h4_row, EMBED))   # bn4 + swish4
        return out, dist

    def classify(x):
        logits = dot(x, mat(DW_CLS, EMBED, CLASS_NUM)) + vec(VR_BC, CLASS_NUM)
        if not apply_softmax:
            return logits
        mx = jnp.max(logits, axis=1, keepdims=True)
        ex = jnp.exp(logits - mx)
        return ex / jnp.sum(ex, axis=1, keepdims=True)      # exact divide

    x = dot(rois, mat(DW_BOT, C1, EMBED)) + vec(VR_CBOT, EMBED)
    if use_bn:
        x = silu(x)                                         # bn1 folded + swish1
    rois_c, v = gauss_head(x, DW_MSE, VR_CMSE, VR_S4E, VR_H4E, noise_ref[0:B, :])
    y = classify(rois_c)

    # MLP intervener (Dropout == identity in eval)
    h = jnp.maximum(dot(rois_c, mat(DW_IN, EMBED, MLP_WIDTH)) + vec(VR_BI, MLP_WIDTH), 0.0)
    for t in range(n_hidden):
        h = jnp.maximum(dot(h, mat(DW_HID + t * MLP_WIDTH, MLP_WIDTH, MLP_WIDTH))
                        + vec(VR_BH + t, MLP_WIDTH), 0.0)
    intervention = dot(h, mat(DW_OUT, MLP_WIDTH, EMBED)) + vec(VR_BO, EMBED)

    int_x = rois_c + intervention
    if use_bn:
        int_x = silu(int_x * vec(VR_S1M, EMBED) + vec(VR_H1M, EMBED))   # mlp bn1 + swish1
    int_rois, int_v = gauss_head(int_x, DW_MSM, VR_CMSM, VR_S4M, VR_H4M,
                                 noise_ref[B:2 * B, :])
    int_y = classify(int_rois)

    # ---- pack all outputs into one lane-dense (B, 256) slab, single store ---
    def placed(piece, off):
        return dot(piece, place_mat(piece.shape[1], off, OUT_COLS))

    out = (placed(rois, O_ROIS) + placed(rois_c, O_ROISC) + placed(intervention, O_INT)
           + placed(int_rois, O_INTROIS) + placed(y, O_Y) + placed(int_y, O_INTY))
    ro = iota2((B, OUT_COLS), 0)
    co = iota2((B, OUT_COLS), 1)
    out = out + jnp.where((ro == 0) & (co == O_DIST), v, 0.0)
    out = out + jnp.where((ro == 1) & (co == O_DIST), int_v, 0.0)
    out_ref[...] = out


# ----------------------- one-time parameter packing --------------------------
def prepare_params(params, bn_type=BN_TYPE):
    """Per-parameter-set prep (hoisted out of the per-step jit): BN folding,
    weight-norm classifier weight, conv -> row-Toeplitz MXU matrices, packing
    into three lane-dense (8,128)-aligned f32 slabs."""
    use_bn = bn_type == 1

    def bnss(p, eps=1e-5):
        g, b, m, v = [np.asarray(t, np.float32) for t in p]
        s = g / np.sqrt(v + eps)
        return s, b - m * s

    bb = params["backbone"]
    s1, h1 = bnss(bb["bn1"])
    w1 = np.asarray(bb["conv1_w"], np.float32) * s1.reshape(1, 1, 1, C1)
    wt_stem = np.zeros((7, STEM_WROWS, STEM_COLS), np.float32)
    for ki in range(7):
        for ow in range(H1):
            col0 = (H1 // 2) * C1 * (ow % 2) + C1 * (ow // 2)   # ow-parity-major cols
            for kj in range(7):
                j = 2 * ow + kj - 3
                if 0 <= j < IMG:
                    wt_stem[ki, j * CIN:(j + 1) * CIN, col0:col0 + C1] = w1[ki, kj]

    def blk_toeplitz(w, scale):
        wf = np.asarray(w, np.float32) * scale.reshape(1, 1, 1, C1)
        t = np.zeros((3, BLK_WROWS, BLK_COLS), np.float32)
        for ki in range(3):
            for jo in range(H2):
                for kj in range(3):
                    j = jo + kj - 1
                    if 0 <= j < H2:
                        t[ki, j * C1:(j + 1) * C1, jo * C1:(jo + 1) * C1] = wf[ki, kj]
        return t

    sa, ha = bnss(bb["blk_bn1"])
    sb, hb = bnss(bb["blk_bn2"])
    wt_a = blk_toeplitz(bb["blk_conv1_w"], sa)
    wt_b = blk_toeplitz(bb["blk_conv2_w"], sb)

    conv_slab = np.zeros((CW_ROWS, STEM_COLS), np.float32)
    for ki in range(7):
        conv_slab[ki * STEM_WROWS:(ki + 1) * STEM_WROWS, :] = wt_stem[ki]
    for ki in range(3):
        r0 = CW_BLK_OFF + ki * BLK_WROWS
        conv_slab[r0:r0 + BLK_WROWS, 0:BLK_COLS] = wt_a[ki]
        conv_slab[r0:r0 + BLK_WROWS, BLK_COLS:2 * BLK_COLS] = wt_b[ki]

    dense_slab = np.zeros((DW_ROWS, DW_COLS), np.float32)
    vec_slab = np.zeros((VEC_ROWS, VEC_COLS), np.float32)

    def put_mat(off, w):
        dense_slab[off:off + w.shape[0], 0:w.shape[1]] = w

    def put_vec(row, v):
        vec_slab[row, 0:v.shape[0]] = v

    put_vec(VR_STEM, np.tile(h1, H1))
    put_vec(VR_BLKA, np.tile(ha, H2))
    put_vec(VR_BLKB, np.tile(hb, H2))

    def lin(w, b):
        return np.asarray(w, np.float32), np.asarray(b, np.float32)

    def fold(w, b, bnp):
        s, h = bnss(bnp)
        return w * s.reshape(1, -1), b * s + h

    pe, pm, pc = params["embed"], params["mlp"], params["cls"]

    wbot, cbot = lin(pe["bottleneck_w"], pe["bottleneck_b"])
    if use_bn:
        wbot, cbot = fold(wbot, cbot, pe["bn1"])
    put_mat(DW_BOT, wbot)
    put_vec(VR_CBOT, cbot)

    def musig(p):
        wmu, bmu = lin(p["fc1_mu_w"], p["fc1_mu_b"])
        wsg, bsg = lin(p["fc1_sig_w"], p["fc1_sig_b"])
        if use_bn:
            wmu, bmu = fold(wmu, bmu, p["bn2"])
            wsg, bsg = fold(wsg, bsg, p["bn3"])
        return np.concatenate([wmu, wsg], 1), np.concatenate([bmu, bsg], 0)

    wms_e, cms_e = musig(pe)
    put_mat(DW_MSE, wms_e)
    put_vec(VR_CMSE, cms_e)
    s4e, h4e = bnss(pe["bn4"])
    put_vec(VR_S4E, s4e)
    put_vec(VR_H4E, h4e)

    wi, bi = lin(pm["input_w"], pm["input_b"])
    put_mat(DW_IN, wi)
    put_vec(VR_BI, bi)
    for t, (hw, hbias) in enumerate(pm["hiddens"]):
        w_, b_ = lin(hw, hbias)
        put_mat(DW_HID + t * MLP_WIDTH, w_)
        put_vec(VR_BH + t, b_)
    wo, bo = lin(pm["output_w"], pm["output_b"])
    put_mat(DW_OUT, wo)
    put_vec(VR_BO, bo)
    s1m, h1m = bnss(pm["bn1"])
    put_vec(VR_S1M, s1m)
    put_vec(VR_H1M, h1m)
    wms_m, cms_m = musig(pm)
    put_mat(DW_MSM, wms_m)
    put_vec(VR_CMSM, cms_m)
    s4m, h4m = bnss(pm["bn4"])
    put_vec(VR_S4M, s4m)
    put_vec(VR_H4M, h4m)

    vw = np.asarray(pc["v"], np.float32)
    g = np.asarray(pc["g"], np.float32)
    wc = (g / np.sqrt(np.sum(vw * vw, axis=1, keepdims=True))) * vw   # weight_norm
    put_mat(DW_CLS, wc.T)
    put_vec(VR_BC, np.asarray(pc["b"], np.float32))

    return dict(conv_slab=jnp.asarray(conv_slab),
                dense_slab=jnp.asarray(dense_slab),
                vec_slab=jnp.asarray(vec_slab))


# ------------------------------ forward wrapper -------------------------------
def _prep_image(x_nchw):
    """NCHW -> height-padded, (row mod 4)-grouped, batch-minor 2D layout so every
    stride-2 conv tap in the kernel is a contiguous static 8-row slice."""
    x = jnp.transpose(x_nchw.astype(jnp.float32), (0, 2, 3, 1))        # NHWC
    x = jnp.pad(x, ((0, 0), (3, 3), (0, 0), (0, 0)))                   # height pad only
    x2d = x.reshape(B, PADH, IMG * CIN)                                # (B, 22, 48)
    quads = []
    for q in range(4):
        qq = x2d[:, q::4, :]
        if qq.shape[1] < QROWS:
            qq = jnp.concatenate(
                [qq, jnp.zeros((B, QROWS - qq.shape[1], IMG * CIN), jnp.float32)], axis=1)
        quads.append(jnp.transpose(qq, (1, 0, 2)))                     # (QROWS, B, 48)
    return jnp.concatenate(quads, axis=0).reshape(IMG_ROWS, IMG_COLS)  # (48, 48)


def cosda_forward(prepped, input_imgs, noise_embed, noise_mlp,
                  sample_gaussian=True, apply_softmax=True):
    del sample_gaussian   # unused by the reference forward as well
    img = _prep_image(input_imgs)
    noise = jnp.concatenate([noise_embed, noise_mlp], axis=0).astype(jnp.float32)

    kernel = functools.partial(_cosda_kernel, n_hidden=N_HIDDEN,
                               use_bn=(BN_TYPE == 1), apply_softmax=apply_softmax)
    out = pl.pallas_call(
        kernel,
        out_shape=jax.ShapeDtypeStruct((B, OUT_COLS), jnp.float32),
        compiler_params=pltpu.CompilerParams(vmem_limit_bytes=64 * 1024 * 1024),
    )(img, prepped["conv_slab"], prepped["dense_slab"], prepped["vec_slab"], noise)

    rois = out[:, O_ROIS:O_ROIS + C1]
    rois_c = out[:, O_ROISC:O_ROISC + EMBED]
    intervention = out[:, O_INT:O_INT + EMBED]
    int_rois = out[:, O_INTROIS:O_INTROIS + EMBED]
    y = out[:, O_Y:O_Y + CLASS_NUM]
    int_y = out[:, O_INTY:O_INTY + CLASS_NUM]
    v = out[0, O_DIST]
    int_v = out[1, O_DIST]
    return rois, v, rois_c, y, intervention, int_rois, int_v, int_y


# ------------------------------- parameters ----------------------------------
def init_params(key):
    keys = iter(jax.random.split(key, 64))
    nk = lambda: next(keys)

    def lin(kin, kout):
        w = jax.random.normal(nk(), (kin, kout), jnp.float32) / math.sqrt(kin)
        return w, jnp.zeros((kout,), jnp.float32)

    def conv(kh, kw, cin, cout):
        return jax.random.normal(nk(), (kh, kw, cin, cout), jnp.float32) / math.sqrt(kh * kw * cin)

    def bn(c):
        gamma = 1.0 + 0.02 * jax.random.normal(nk(), (c,), jnp.float32)
        beta = jnp.zeros((c,), jnp.float32)
        mean = 0.1 * jax.random.normal(nk(), (c,), jnp.float32)
        var = jnp.abs(1.0 + 0.1 * jax.random.normal(nk(), (c,), jnp.float32))
        return (gamma, beta, mean, var)

    backbone = dict(conv1_w=conv(7, 7, CIN, C1), bn1=bn(C1),
                    blk_conv1_w=conv(3, 3, C1, C1), blk_bn1=bn(C1),
                    blk_conv2_w=conv(3, 3, C1, C1), blk_bn2=bn(C1))

    bw, bb = lin(C1, EMBED)
    mw, mb = lin(EMBED, EMBED)
    sw, sb = lin(EMBED, EMBED)
    embed = dict(bottleneck_w=bw, bottleneck_b=bb, bn1=bn(EMBED),
                 fc1_mu_w=mw, fc1_mu_b=mb, bn2=bn(EMBED),
                 fc1_sig_w=sw, fc1_sig_b=sb, bn3=bn(EMBED), bn4=bn(EMBED))

    iw, ib = lin(EMBED, MLP_WIDTH)
    hiddens = [lin(MLP_WIDTH, MLP_WIDTH) for _ in range(N_HIDDEN)]
    ow, ob = lin(MLP_WIDTH, EMBED)
    mmw, mmb = lin(EMBED, EMBED)
    msw, msb = lin(EMBED, EMBED)
    mlp = dict(input_w=iw, input_b=ib, hiddens=hiddens, output_w=ow, output_b=ob,
               fc1_mu_w=mmw, fc1_mu_b=mmb, fc1_sig_w=msw, fc1_sig_b=msb,
               bn1=bn(EMBED), bn2=bn(EMBED), bn3=bn(EMBED), bn4=bn(EMBED))

    vcls = jax.random.normal(nk(), (CLASS_NUM, EMBED), jnp.float32) / math.sqrt(EMBED)
    g = jnp.sqrt(jnp.sum(vcls * vcls, axis=1, keepdims=True))      # weight_norm g init
    cls = dict(v=vcls, g=g, b=jnp.zeros((CLASS_NUM,), jnp.float32))
    return dict(backbone=backbone, embed=embed, mlp=mlp, cls=cls)


# ---------------------------------- main -------------------------------------
if __name__ == "__main__":
    key = jax.random.PRNGKey(0)
    kp, kx, kn1, kn2 = jax.random.split(key, 4)
    params = init_params(kp)
    prepped = prepare_params(params)          # one-time packing, outside the per-step jit
    x = jax.random.normal(kx, (B, CIN, IMG, IMG), jnp.float32)     # NCHW like PyTorch
    noise_embed = jax.random.normal(kn1, (B, EMBED), jnp.float32)
    noise_mlp = jax.random.normal(kn2, (B, EMBED), jnp.float32)

    fwd = jax.jit(cosda_forward)
    outs = fwd(prepped, x, noise_embed, noise_mlp)
    for o in jax.tree_util.tree_leaves(outs):
        jax.block_until_ready(o)
    print("KERNEL_OK")
</pallas_src>

<mosaic_0001>
module attributes {stable_mosaic.version = 11 : i64} {
  func.func @_cosda_kernel(%arg0: memref<48x48xf32, #tpu.memory_space<vmem>>, %arg1: memref<528x128xf32, #tpu.memory_space<vmem>>, %arg2: memref<272x128xf32, #tpu.memory_space<vmem>>, %arg3: memref<16x128xf32, #tpu.memory_space<vmem>>, %arg4: memref<4x32xf32, #tpu.memory_space<vmem>>, %arg5: memref<2x256xf32, #tpu.memory_space<vmem>>) attributes {dimension_semantics = [], scalar_prefetch = 0 : i64, scratch_operands = 0 : i64, tpu.core_type = #tpu.core_type<tc>} {
    %cst = arith.constant 0.000000e+00 : f32
    %0 = vector.broadcast %cst : f32 to vector<8x128xf32>
    %cst_0 = arith.constant 0.000000e+00 : f32
    %1 = vector.broadcast %cst_0 : f32 to vector<8x128xf32>
    %c0 = arith.constant 0 : index
    %c0_1 = arith.constant 0 : index
    %2 = vector.load %arg1[%c0, %c0_1] : memref<528x128xf32, #tpu.memory_space<vmem>>, vector<48x128xf32>
    %c0_2 = arith.constant 0 : index
    %c0_3 = arith.constant 0 : index
    %3 = vector.load %arg0[%c0_2, %c0_3] : memref<48x48xf32, #tpu.memory_space<vmem>>, vector<8x48xf32>
    %cst_4 = arith.constant dense<0.000000e+00> : vector<8x128xf32>
    %4 = tpu.matmul %3, %2, %cst_4 {dimension_numbers = #tpu.dot_dimension_numbers<[1], [0], [0], [1], [0, 0, 1, 1], [], []>} : vector<8x48xf32>, vector<48x128xf32>, vector<8x128xf32> -> vector<8x128xf32>
    %5 = arith.addf %0, %4 : vector<8x128xf32>
    %c24 = arith.constant 24 : index
    %c0_5 = arith.constant 0 : index
    %6 = vector.load %arg0[%c24, %c0_5] : memref<48x48xf32, #tpu.memory_space<vmem>>, vector<8x48xf32>
    %cst_6 = arith.constant dense<0.000000e+00> : vector<8x128xf32>
    %7 = tpu.matmul %6, %2, %cst_6 {dimension_numbers = #tpu.dot_dimension_numbers<[1], [0], [0], [1], [0, 0, 1, 1], [], []>} : vector<8x48xf32>, vector<48x128xf32>, vector<8x128xf32> -> vector<8x128xf32>
    %8 = arith.addf %1, %7 : vector<8x128xf32>
    %c48 = arith.constant 48 : index
    %c0_7 = arith.constant 0 : index
    %9 = vector.load %arg1[%c48, %c0_7] : memref<528x128xf32, #tpu.memory_space<vmem>>, vector<48x128xf32>
    %c12 = arith.constant 12 : index
    %c0_8 = arith.constant 0 : index
    %10 = vector.load %arg0[%c12, %c0_8] : memref<48x48xf32, #tpu.memory_space<vmem>>, vector<8x48xf32>
    %cst_9 = arith.constant dense<0.000000e+00> : vector<8x128xf32>
    %11 = tpu.matmul %10, %9, %cst_9 {dimension_numbers = #tpu.dot_dimension_numbers<[1], [0], [0], [1], [0, 0, 1, 1], [], []>} : vector<8x48xf32>, vector<48x128xf32>, vector<8x128xf32> -> vector<8x128xf32>
    %12 = arith.addf %5, %11 : vector<8x128xf32>
    %c36 = arith.constant 36 : index
    %c0_10 = arith.constant 0 : index
    %13 = vector.load %arg0[%c36, %c0_10] : memref<48x48xf32, #tpu.memory_space<vmem>>, vector<8x48xf32>
    %cst_11 = arith.constant dense<0.000000e+00> : vector<8x128xf32>
    %14 = tpu.matmul %13, %9, %cst_11 {dimension_numbers = #tpu.dot_dimension_numbers<[1], [0], [0], [1], [0, 0, 1, 1], [], []>} : vector<8x48xf32>, vector<48x128xf32>, vector<8x128xf32> -> vector<8x128xf32>
    %15 = arith.addf %8, %14 : vector<8x128xf32>
    %c96 = arith.constant 96 : index
    %c0_12 = arith.constant 0 : index
    %16 = vector.load %arg1[%c96, %c0_12] : memref<528x128xf32, #tpu.memory_space<vmem>>, vector<48x128xf32>
    %c24_13 = arith.constant 24 : index
    %c0_14 = arith.constant 0 : index
    %17 = vector.load %arg0[%c24_13, %c0_14] : memref<48x48xf32, #tpu.memory_space<vmem>>, vector<8x48xf32>
    %cst_15 = arith.constant dense<0.000000e+00> : vector<8x128xf32>
    %18 = tpu.matmul %17, %16, %cst_15 {dimension_numbers = #tpu.dot_dimension_numbers<[1], [0], [0], [1], [0, 0, 1, 1], [], []>} : vector<8x48xf32>, vector<48x128xf32>, vector<8x128xf32> -> vector<8x128xf32>
    %19 = arith.addf %12, %18 : vector<8x128xf32>
    %c2 = arith.constant 2 : index
    %c0_16 = arith.constant 0 : index
    %20 = vector.load %arg0[%c2, %c0_16] : memref<48x48xf32, #tpu.memory_space<vmem>>, vector<8x48xf32>
    %cst_17 = arith.constant dense<0.000000e+00> : vector<8x128xf32>
    %21 = tpu.matmul %20, %16, %cst_17 {dimension_numbers = #tpu.dot_dimension_numbers<[1], [0], [0], [1], [0, 0, 1, 1], [], []>} : vector<8x48xf32>, vector<48x128xf32>, vector<8x128xf32> -> vector<8x128xf32>
    %22 = arith.addf %15, %21 : vector<8x128xf32>
    %c144 = arith.constant 144 : index
    %c0_18 = arith.constant 0 : index
    %23 = vector.load %arg1[%c144, %c0_18] : memref<528x128xf32, #tpu.memory_space<vmem>>, vector<48x128xf32>
    %c36_19 = arith.constant 36 : index
    %c0_20 = arith.constant 0 : index
    %24 = vector.load %arg0[%c36_19, %c0_20] : memref<48x48xf32, #tpu.memory_space<vmem>>, vector<8x48xf32>
    %cst_21 = arith.constant dense<0.000000e+00> : vector<8x128xf32>
    %25 = tpu.matmul %24, %23, %cst_21 {dimension_numbers = #tpu.dot_dimension_numbers<[1], [0], [0], [1], [0, 0, 1, 1], [], []>} : vector<8x48xf32>, vector<48x128xf32>, vector<8x128xf32> -> vector<8x128xf32>
    %26 = arith.addf %19, %25 : vector<8x128xf32>
    %c14 = arith.constant 14 : index
    %c0_22 = arith.constant 0 : index
    %27 = vector.load %arg0[%c14, %c0_22] : memref<48x48xf32, #tpu.memory_space<vmem>>, vector<8x48xf32>
    %cst_23 = arith.constant dense<0.000000e+00> : vector<8x128xf32>
    %28 = tpu.matmul %27, %23, %cst_23 {dimension_numbers = #tpu.dot_dimension_numbers<[1], [0], [0], [1], [0, 0, 1, 1], [], []>} : vector<8x48xf32>, vector<48x128xf32>, vector<8x128xf32> -> vector<8x128xf32>
    %29 = arith.addf %22, %28 : vector<8x128xf32>
    %c192 = arith.constant 192 : index
    %c0_24 = arith.constant 0 : index
    %30 = vector.load %arg1[%c192, %c0_24] : memref<528x128xf32, #tpu.memory_space<vmem>>, vector<48x128xf32>
    %c2_25 = arith.constant 2 : index
    %c0_26 = arith.constant 0 : index
    %31 = vector.load %arg0[%c2_25, %c0_26] : memref<48x48xf32, #tpu.memory_space<vmem>>, vector<8x48xf32>
    %cst_27 = arith.constant dense<0.000000e+00> : vector<8x128xf32>
    %32 = tpu.matmul %31, %30, %cst_27 {dimension_numbers = #tpu.dot_dimension_numbers<[1], [0], [0], [1], [0, 0, 1, 1], [], []>} : vector<8x48xf32>, vector<48x128xf32>, vector<8x128xf32> -> vector<8x128xf32>
    %33 = arith.addf %26, %32 : vector<8x128xf32>
    %c26 = arith.constant 26 : index
    %c0_28 = arith.constant 0 : index
    %34 = vector.load %arg0[%c26, %c0_28] : memref<48x48xf32, #tpu.memory_space<vmem>>, vector<8x48xf32>
    %cst_29 = arith.constant dense<0.000000e+00> : vector<8x128xf32>
    %35 = tpu.matmul %34, %30, %cst_29 {dimension_numbers = #tpu.dot_dimension_numbers<[1], [0], [0], [1], [0, 0, 1, 1], [], []>} : vector<8x48xf32>, vector<48x128xf32>, vector<8x128xf32> -> vector<8x128xf32>
    %36 = arith.addf %29, %35 : vector<8x128xf32>
    %c240 = arith.constant 240 : index
    %c0_30 = arith.constant 0 : index
    %37 = vector.load %arg1[%c240, %c0_30] : memref<528x128xf32, #tpu.memory_space<vmem>>, vector<48x128xf32>
    %c14_31 = arith.constant 14 : index
    %c0_32 = arith.constant 0 : index
    %38 = vector.load %arg0[%c14_31, %c0_32] : memref<48x48xf32, #tpu.memory_space<vmem>>, vector<8x48xf32>
    %cst_33 = arith.constant dense<0.000000e+00> : vector<8x128xf32>
    %39 = tpu.matmul %38, %37, %cst_33 {dimension_numbers = #tpu.dot_dimension_numbers<[1], [0], [0], [1], [0, 0, 1, 1], [], []>} : vector<8x48xf32>, vector<48x128xf32>, vector<8x128xf32> -> vector<8x128xf32>
    %40 = arith.addf %33, %39 : vector<8x128xf32>
    %c38 = arith.constant 38 : index
    %c0_34 = arith.constant 0 : index
    %41 = vector.load %arg0[%c38, %c0_34] : memref<48x48xf32, #tpu.memory_space<vmem>>, vector<8x48xf32>
    %cst_35 = arith.constant dense<0.000000e+00> : vector<8x128xf32>
    %42 = tpu.matmul %41, %37, %cst_35 {dimension_numbers = #tpu.dot_dimension_numbers<[1], [0], [0], [1], [0, 0, 1, 1], [], []>} : vector<8x48xf32>, vector<48x128xf32>, vector<8x128xf32> -> vector<8x128xf32>
    %43 = arith.addf %36, %42 : vector<8x128xf32>
    %c288 = arith.constant 288 : index
    %c0_36 = arith.constant 0 : index
    %44 = vector.load %arg1[%c288, %c0_36] : memref<528x128xf32, #tpu.memory_space<vmem>>, vector<48x128xf32>
    %c26_37 = arith.constant 26 : index
    %c0_38 = arith.constant 0 : index
    %45 = vector.load %arg0[%c26_37, %c0_38] : memref<48x48xf32, #tpu.memory_space<vmem>>, vector<8x48xf32>
    %cst_39 = arith.constant dense<0.000000e+00> : vector<8x128xf32>
    %46 = tpu.matmul %45, %44, %cst_39 {dimension_numbers = #tpu.dot_dimension_numbers<[1], [0], [0], [1], [0, 0, 1, 1], [], []>} : vector<8x48xf32>, vector<48x128xf32>, vector<8x128xf32> -> vector<8x128xf32>
    %47 = arith.addf %40, %46 : vector<8x128xf32>
    %c4 = arith.constant 4 : index
    %c0_40 = arith.constant 0 : index
    %48 = vector.load %arg0[%c4, %c0_40] : memref<48x48xf32, #tpu.memory_space<vmem>>, vector<8x48xf32>
    %cst_41 = arith.constant dense<0.000000e+00> : vector<8x128xf32>
    %49 = tpu.matmul %48, %44, %cst_41 {dimension_numbers = #tpu.dot_dimension_numbers<[1], [0], [0], [1], [0, 0, 1, 1], [], []>} : vector<8x48xf32>, vector<48x128xf32>, vector<8x128xf32> -> vector<8x128xf32>
    %50 = arith.addf %43, %49 : vector<8x128xf32>
    %c0_42 = arith.constant 0 : index
    %c0_43 = arith.constant 0 : index
    %51 = vector.load %arg3[%c0_42, %c0_43] : memref<16x128xf32, #tpu.memory_space<vmem>>, vector<1x128xf32>
    %52 = vector.broadcast %51 : vector<1x128xf32> to vector<8x128xf32>
    %53 = arith.addf %47, %52 : vector<8x128xf32>
    %cst_44 = arith.constant 0.000000e+00 : f32
    %54 = vector.broadcast %cst_44 : f32 to vector<8x128xf32>
    %55 = arith.maximumf %53, %54 : vector<8x128xf32>
    %56 = vector.broadcast %51 : vector<1x128xf32> to vector<8x128xf32>
    %57 = arith.addf %50, %56 : vector<8x128xf32>
    %cst_45 = arith.constant 0.000000e+00 : f32
    %58 = vector.broadcast %cst_45 : f32 to vector<8x128xf32>
    %59 = arith.maximumf %57, %58 : vector<8x128xf32>
    %60 = tpu.iota {dimensions = array<i32: 1>} : vector<64x64xi32>
    %61 = tpu.iota {dimensions = array<i32: 0>} : vector<64x64xi32>
    %c16_i32 = arith.constant 16 : i32
    %62 = vector.broadcast %c16_i32 : i32 to vector<64x64xi32>
    %63 = arith.addi %61, %62 : vector<64x64xi32>
    %64 = arith.cmpi eq, %60, %63 : vector<64x64xi32>
    %cst_46 = arith.constant 1.000000e+00 : f32
    %cst_47 = arith.constant 0.000000e+00 : f32
    %65 = vector.broadcast %cst_46 : f32 to vector<64x64xf32>
    %66 = vector.broadcast %cst_47 : f32 to vector<64x64xf32>
    %67 = arith.select %64, %65, %66 : vector<64x64xi1>, vector<64x64xf32>
    %68 = tpu.iota {dimensions = array<i32: 1>} : vector<8x64xi32>
    %69 = tpu.iota {dimensions = array<i32: 0>} : vector<8x64xi32>
    %70 = vector.extract_strided_slice %55 {offsets = [0, 0], sizes = [8, 64], strides = [1, 1]} : vector<8x128xf32> to vector<8x64xf32>
    %71 = vector.extract_strided_slice %55 {offsets = [0, 64], sizes = [8, 64], strides = [1, 1]} : vector<8x128xf32> to vector<8x64xf32>
    %c16_i32_48 = arith.constant 16 : i32
    %72 = vector.broadcast %c16_i32_48 : i32 to vector<8x64xi32>
    %73 = arith.cmpi sge, %68, %72 : vector<8x64xi32>
    %cst_49 = arith.constant dense<0.000000e+00> : vector<8x64xf32>
    %74 = tpu.matmul %71, %67, %cst_49 {dimension_numbers = #tpu.dot_dimension_numbers<[1], [0], [0], [1], [0, 0, 1, 1], [], []>} : vector<8x64xf32>, vector<64x64xf32>, vector<8x64xf32> -> vector<8x64xf32>
    %cst_50 = arith.constant -1.000000e+30 : f32
    %75 = vector.broadcast %cst_50 : f32 to vector<8x64xf32>
    %76 = arith.select %73, %74, %75 : vector<8x64xi1>, vector<8x64xf32>
    %77 = arith.maximumf %70, %71 : vector<8x64xf32>
    %78 = arith.maximumf %77, %76 : vector<8x64xf32>
    %79 = vector.extract_strided_slice %59 {offsets = [0, 0], sizes = [8, 64], strides = [1, 1]} : vector<8x128xf32> to vector<8x64xf32>
    %80 = vector.extract_strided_slice %59 {offsets = [0, 64], sizes = [8, 64], strides = [1, 1]} : vector<8x128xf32> to vector<8x64xf32>
    %c16_i32_51 = arith.constant 16 : i32
    %81 = vector.broadcast %c16_i32_51 : i32 to vector<8x64xi32>
    %82 = arith.cmpi sge, %68, %81 : vector<8x64xi32>
    %cst_52 = arith.constant dense<0.000000e+00> : vector<8x64xf32>
    %83 = tpu.matmul %80, %67, %cst_52 {dimension_numbers = #tpu.dot_dimension_numbers<[1], [0], [0], [1], [0, 0, 1, 1], [], []>} : vector<8x64xf32>, vector<64x64xf32>, vector<8x64xf32> -> vector<8x64xf32>
    %cst_53 = arith.constant -1.000000e+30 : f32
    %84 = vector.broadcast %cst_53 : f32 to vector<8x64xf32>
    %85 = arith.select %82, %83, %84 : vector<8x64xi1>, vector<8x64xf32>
    %86 = arith.maximumf %79, %80 : vector<8x64xf32>
    %87 = arith.maximumf %86, %85 : vector<8x64xf32>
    %88 = tpu.iota {dimensions = array<i32: 0>} : vector<8x8xi32>
    %89 = tpu.iota {dimensions = array<i32: 1>} : vector<8x8xi32>
    %c2_i32 = arith.constant 2 : i32
    %90 = vector.broadcast %c2_i32 : i32 to vector<8x8xi32>
    %91 = arith.addi %89, %90 : vector<8x8xi32>
    %92 = arith.cmpi eq, %88, %91 : vector<8x8xi32>
    %cst_54 = arith.constant 1.000000e+00 : f32
    %cst_55 = arith.constant 0.000000e+00 : f32
    %93 = vector.broadcast %cst_54 : f32 to vector<8x8xf32>
    %94 = vector.broadcast %cst_55 : f32 to vector<8x8xf32>
    %95 = arith.select %92, %93, %94 : vector<8x8xi1>, vector<8x8xf32>
    %c2_i32_56 = arith.constant 2 : i32
    %96 = vector.broadcast %c2_i32_56 : i32 to vector<8x64xi32>
    %97 = arith.cmpi sge, %69, %96 : vector<8x64xi32>
    %cst_57 = arith.constant dense<0.000000e+00> : vector<8x64xf32>
    %98 = tpu.matmul %95, %87, %cst_57 {dimension_numbers = #tpu.dot_dimension_numbers<[1], [0], [0], [1], [0, 0, 1, 1], [], []>} : vector<8x8xf32>, vector<8x64xf32>, vector<8x64xf32> -> vector<8x64xf32>
    %cst_58 = arith.constant -1.000000e+30 : f32
    %99 = vector.broadcast %cst_58 : f32 to vector<8x64xf32>
    %100 = arith.select %97, %98, %99 : vector<8x64xi1>, vector<8x64xf32>
    %101 = arith.maximumf %78, %87 : vector<8x64xf32>
    %102 = arith.maximumf %101, %100 : vector<8x64xf32>
    %103 = tpu.iota {dimensions = array<i32: 0>} : vector<8x8xi32>
    %104 = tpu.iota {dimensions = array<i32: 1>} : vector<8x8xi32>
    %c-2_i32 = arith.constant -2 : i32
    %105 = vector.broadcast %c-2_i32 : i32 to vector<8x8xi32>
    %106 = arith.addi %104, %105 : vector<8x8xi32>
    %107 = arith.cmpi eq, %103, %106 : vector<8x8xi32>
    %cst_59 = arith.constant 1.000000e+00 : f32
    %cst_60 = arith.constant 0.000000e+00 : f32
    %108 = vector.broadcast %cst_59 : f32 to vector<8x8xf32>
    %109 = vector.broadcast %cst_60 : f32 to vector<8x8xf32>
    %110 = arith.select %107, %108, %109 : vector<8x8xi1>, vector<8x8xf32>
    %c400 = arith.constant 400 : index
    %c0_61 = arith.constant 0 : index
    %111 = vector.load %arg1[%c400, %c0_61] : memref<528x128xf32, #tpu.memory_space<vmem>>, vector<64x64xf32>
    %cst_62 = arith.constant dense<0.000000e+00> : vector<8x64xf32>
    %112 = tpu.matmul %102, %111, %cst_62 {dimension_numbers = #tpu.dot_dimension_numbers<[1], [0], [0], [1], [0, 0, 1, 1], [], []>} : vector<8x64xf32>, vector<64x64xf32>, vector<8x64xf32> -> vector<8x64xf32>
    %cst_63 = arith.constant dense<0.000000e+00> : vector<8x64xf32>
    %113 = tpu.matmul %95, %102, %cst_63 {dimension_numbers = #tpu.dot_dimension_numbers<[1], [0], [0], [1], [0, 0, 1, 1], [], []>} : vector<8x8xf32>, vector<8x64xf32>, vector<8x64xf32> -> vector<8x64xf32>
    %c336 = arith.constant 336 : index
    %c0_64 = arith.constant 0 : index
    %114 = vector.load %arg1[%c336, %c0_64] : memref<528x128xf32, #tpu.memory_space<vmem>>, vector<64x64xf32>
    %cst_65 = arith.constant dense<0.000000e+00> : vector<8x64xf32>
    %115 = tpu.matmul %113, %114, %cst_65 {dimension_numbers = #tpu.dot_dimension_numbers<[1], [0], [0], [1], [0, 0, 1, 1], [], []>} : vector<8x64xf32>, vector<64x64xf32>, vector<8x64xf32> -> vector<8x64xf32>
    %116 = arith.addf %112, %115 : vector<8x64xf32>
    %cst_66 = arith.constant dense<0.000000e+00> : vector<8x64xf32>
    %117 = tpu.matmul %110, %102, %cst_66 {dimension_numbers = #tpu.dot_dimension_numbers<[1], [0], [0], [1], [0, 0, 1, 1], [], []>} : vector<8x8xf32>, vector<8x64xf32>, vector<8x64xf32> -> vector<8x64xf32>
    %c464 = arith.constant 464 : index
    %c0_67 = arith.constant 0 : index
    %118 = vector.load %arg1[%c464, %c0_67] : memref<528x128xf32, #tpu.memory_space<vmem>>, vector<64x64xf32>
    %cst_68 = arith.constant dense<0.000000e+00> : vector<8x64xf32>
    %119 = tpu.matmul %117, %118, %cst_68 {dimension_numbers = #tpu.dot_dimension_numbers<[1], [0], [0], [1], [0, 0, 1, 1], [], []>} : vector<8x64xf32>, vector<64x64xf32>, vector<8x64xf32> -> vector<8x64xf32>
    %120 = arith.addf %116, %119 : vector<8x64xf32>
    %c1 = arith.constant 1 : index
    %c0_69 = arith.constant 0 : index
    %121 = vector.load %arg3[%c1, %c0_69] : memref<16x128xf32, #tpu.memory_space<vmem>>, vector<1x64xf32>
    %122 = vector.broadcast %121 : vector<1x64xf32> to vector<8x64xf32>
    %123 = arith.addf %120, %122 : vector<8x64xf32>
    %cst_70 = arith.constant 0.000000e+00 : f32
    %124 = vector.broadcast %cst_70 : f32 to vector<8x64xf32>
    %125 = arith.maximumf %123, %124 : vector<8x64xf32>
    %c400_71 = arith.constant 400 : index
    %c64 = arith.constant 64 : index
    %126 = vector.load %arg1[%c400_71, %c64] : memref<528x128xf32, #tpu.memory_space<vmem>>, vector<64x64xf32>
    %cst_72 = arith.constant dense<0.000000e+00> : vector<8x64xf32>
    %127 = tpu.matmul %125, %126, %cst_72 {dimension_numbers = #tpu.dot_dimension_numbers<[1], [0], [0], [1], [0, 0, 1, 1], [], []>} : vector<8x64xf32>, vector<64x64xf32>, vector<8x64xf32> -> vector<8x64xf32>
    %cst_73 = arith.constant dense<0.000000e+00> : vector<8x64xf32>
    %128 = tpu.matmul %95, %125, %cst_73 {dimension_numbers = #tpu.dot_dimension_numbers<[1], [0], [0], [1], [0, 0, 1, 1], [], []>} : vector<8x8xf32>, vector<8x64xf32>, vector<8x64xf32> -> vector<8x64xf32>
    %c336_74 = arith.constant 336 : index
    %c64_75 = arith.constant 64 : index
    %129 = vector.load %arg1[%c336_74, %c64_75] : memref<528x128xf32, #tpu.memory_space<vmem>>, vector<64x64xf32>
    %cst_76 = arith.constant dense<0.000000e+00> : vector<8x64xf32>
    %130 = tpu.matmul %128, %129, %cst_76 {dimension_numbers = #tpu.dot_dimension_numbers<[1], [0], [0], [1], [0, 0, 1, 1], [], []>} : vector<8x64xf32>, vector<64x64xf32>, vector<8x64xf32> -> vector<8x64xf32>
    %131 = arith.addf %127, %130 : vector<8x64xf32>
    %cst_77 = arith.constant dense<0.000000e+00> : vector<8x64xf32>
    %132 = tpu.matmul %110, %125, %cst_77 {dimension_numbers = #tpu.dot_dimension_numbers<[1], [0], [0], [1], [0, 0, 1, 1], [], []>} : vector<8x8xf32>, vector<8x64xf32>, vector<8x64xf32> -> vector<8x64xf32>
    %c464_78 = arith.constant 464 : index
    %c64_79 = arith.constant 64 : index
    %133 = vector.load %arg1[%c464_78, %c64_79] : memref<528x128xf32, #tpu.memory_space<vmem>>, vector<64x64xf32>
    %cst_80 = arith.constant dense<0.000000e+00> : vector<8x64xf32>
    %134 = tpu.matmul %132, %133, %cst_80 {dimension_numbers = #tpu.dot_dimension_numbers<[1], [0], [0], [1], [0, 0, 1, 1], [], []>} : vector<8x64xf32>, vector<64x64xf32>, vector<8x64xf32> -> vector<8x64xf32>
    %135 = arith.addf %131, %134 : vector<8x64xf32>
    %c2_81 = arith.constant 2 : index
    %c0_82 = arith.constant 0 : index
    %136 = vector.load %arg3[%c2_81, %c0_82] : memref<16x128xf32, #tpu.memory_space<vmem>>, vector<1x64xf32>
    %137 = vector.broadcast %136 : vector<1x64xf32> to vector<8x64xf32>
    %138 = arith.addf %135, %137 : vector<8x64xf32>
    %139 = arith.addf %138, %102 : vector<8x64xf32>
    %cst_83 = arith.constant 0.000000e+00 : f32
    %140 = vector.broadcast %cst_83 : f32 to vector<8x64xf32>
    %141 = arith.maximumf %139, %140 : vector<8x64xf32>
    %142 = vector.extract_strided_slice %141 {offsets = [0, 0], sizes = [2, 64], strides = [1, 1]} : vector<8x64xf32> to vector<2x64xf32>
    %143 = vector.extract_strided_slice %141 {offsets = [2, 0], sizes = [2, 64], strides = [1, 1]} : vector<8x64xf32> to vector<2x64xf32>
    %144 = arith.addf %142, %143 : vector<2x64xf32>
    %145 = vector.extract_strided_slice %141 {offsets = [4, 0], sizes = [2, 64], strides = [1, 1]} : vector<8x64xf32> to vector<2x64xf32>
    %146 = arith.addf %144, %145 : vector<2x64xf32>
    %147 = vector.extract_strided_slice %141 {offsets = [6, 0], sizes = [2, 64], strides = [1, 1]} : vector<8x64xf32> to vector<2x64xf32>
    %148 = arith.addf %146, %147 : vector<2x64xf32>
    %149 = vector.extract_strided_slice %148 {offsets = [0, 0], sizes = [2, 16], strides = [1, 1]} : vector<2x64xf32> to vector<2x16xf32>
    %150 = vector.extract_strided_slice %148 {offsets = [0, 16], sizes = [2, 16], strides = [1, 1]} : vector<2x64xf32> to vector<2x16xf32>
    %151 = arith.addf %149, %150 : vector<2x16xf32>
    %152 = vector.extract_strided_slice %148 {offsets = [0, 32], sizes = [2, 16], strides = [1, 1]} : vector<2x64xf32> to vector<2x16xf32>
    %153 = arith.addf %151, %152 : vector<2x16xf32>
    %154 = vector.extract_strided_slice %148 {offsets = [0, 48], sizes = [2, 16], strides = [1, 1]} : vector<2x64xf32> to vector<2x16xf32>
    %155 = arith.addf %153, %154 : vector<2x16xf32>
    %cst_84 = arith.constant 6.250000e-02 : f32
    %156 = vector.broadcast %cst_84 : f32 to vector<2x16xf32>
    %157 = arith.mulf %155, %156 : vector<2x16xf32>
    %c0_85 = arith.constant 0 : index
    %c0_86 = arith.constant 0 : index
    %158 = vector.load %arg2[%c0_85, %c0_86] : memref<272x128xf32, #tpu.memory_space<vmem>>, vector<16x32xf32>
    %cst_87 = arith.constant dense<0.000000e+00> : vector<2x32xf32>
    %159 = tpu.matmul %157, %158, %cst_87 {dimension_numbers = #tpu.dot_dimension_numbers<[1], [0], [0], [1], [0, 0, 1, 1], [], []>} : vector<2x16xf32>, vector<16x32xf32>, vector<2x32xf32> -> vector<2x32xf32>
    %c3 = arith.constant 3 : index
    %c0_88 = arith.constant 0 : index
    %160 = vector.load %arg3[%c3, %c0_88] : memref<16x128xf32, #tpu.memory_space<vmem>>, vector<1x32xf32>
    %161 = vector.broadcast %160 : vector<1x32xf32> to vector<2x32xf32>
    %162 = arith.addf %159, %161 : vector<2x32xf32>
    %cst_89 = arith.constant 5.000000e-01 : f32
    %163 = vector.broadcast %cst_89 : f32 to vector<2x32xf32>
    %164 = arith.mulf %163, %162 : vector<2x32xf32>
    %165 = math.tanh %164 : vector<2x32xf32>
    %cst_90 = arith.constant 5.000000e-01 : f32
    %166 = vector.broadcast %cst_90 : f32 to vector<2x32xf32>
    %167 = arith.mulf %166, %165 : vector<2x32xf32>
    %cst_91 = arith.constant 5.000000e-01 : f32
    %168 = vector.broadcast %cst_91 : f32 to vector<2x32xf32>
    %169 = arith.addf %167, %168 : vector<2x32xf32>
    %170 = arith.mulf %162, %169 : vector<2x32xf32>
    %c0_92 = arith.constant 0 : index
    %c0_93 = arith.constant 0 : index
    %171 = vector.load %arg4[%c0_92, %c0_93] : memref<4x32xf32, #tpu.memory_space<vmem>>, vector<2x32xf32>
    %c16 = arith.constant 16 : index
    %c0_94 = arith.constant 0 : index
    %172 = vector.load %arg2[%c16, %c0_94] : memref<272x128xf32, #tpu.memory_space<vmem>>, vector<32x64xf32>
    %cst_95 = arith.constant dense<0.000000e+00> : vector<2x64xf32>
    %173 = tpu.matmul %170, %172, %cst_95 {dimension_numbers = #tpu.dot_dimension_numbers<[1], [0], [0], [1], [0, 0, 1, 1], [], []>} : vector<2x32xf32>, vector<32x64xf32>, vector<2x64xf32> -> vector<2x64xf32>
    %c4_96 = arith.constant 4 : index
    %c0_97 = arith.constant 0 : index
    %174 = vector.load %arg3[%c4_96, %c0_97] : memref<16x128xf32, #tpu.memory_space<vmem>>, vector<1x64xf32>
    %175 = vector.broadcast %174 : vector<1x64xf32> to vector<2x64xf32>
    %176 = arith.addf %173, %175 : vector<2x64xf32>
    %177 = vector.extract_strided_slice %176 {offsets = [0, 0], sizes = [2, 32], strides = [1, 1]} : vector<2x64xf32> to vector<2x32xf32>
    %cst_98 = arith.constant 5.000000e-01 : f32
    %178 = vector.broadcast %cst_98 : f32 to vector<2x32xf32>
    %179 = arith.mulf %178, %177 : vector<2x32xf32>
    %180 = math.tanh %179 : vector<2x32xf32>
    %cst_99 = arith.constant 5.000000e-01 : f32
    %181 = vector.broadcast %cst_99 : f32 to vector<2x32xf32>
    %182 = arith.mulf %181, %180 : vector<2x32xf32>
    %cst_100 = arith.constant 5.000000e-01 : f32
    %183 = vector.broadcast %cst_100 : f32 to vector<2x32xf32>
    %184 = arith.addf %182, %183 : vector<2x32xf32>
    %185 = arith.mulf %177, %184 : vector<2x32xf32>
    %186 = vector.extract_strided_slice %176 {offsets = [0, 32], sizes = [2, 32], strides = [1, 1]} : vector<2x64xf32> to vector<2x32xf32>
    %cst_101 = arith.constant 0.000000e+00 : f32
    %187 = vector.broadcast %cst_101 : f32 to vector<2x32xf32>
    %188 = arith.maximumf %186, %187 : vector<2x32xf32>
    %189 = math.absf %186 : vector<2x32xf32>
    %cst_102 = arith.constant 0.000000e+00 : f32
    %190 = vector.broadcast %cst_102 : f32 to vector<2x32xf32>
    %191 = arith.subf %190, %189 : vector<2x32xf32>
    %192 = math.exp %191 : vector<2x32xf32>
    %cst_103 = arith.constant 1.000000e+00 : f32
    %193 = vector.broadcast %cst_103 : f32 to vector<2x32xf32>
    %194 = arith.addf %193, %192 : vector<2x32xf32>
    %195 = math.log %194 : vector<2x32xf32>
    %196 = arith.addf %188, %195 : vector<2x32xf32>
    %cst_104 = arith.constant 9.99999993E-9 : f32
    %197 = vector.broadcast %cst_104 : f32 to vector<2x32xf32>
    %198 = arith.addf %196, %197 : vector<2x32xf32>
    %199 = math.log %198 : vector<2x32xf32>
    %cst_105 = arith.constant 1.41893852 : f32
    %200 = vector.broadcast %cst_105 : f32 to vector<2x32xf32>
    %201 = arith.addf %200, %199 : vector<2x32xf32>
    %cst_106 = arith.constant 0.899999976 : f32
    %202 = vector.broadcast %cst_106 : f32 to vector<2x32xf32>
    %203 = arith.subf %202, %201 : vector<2x32xf32>
    %cst_107 = arith.constant 0.000000e+00 : f32
    %204 = vector.broadcast %cst_107 : f32 to vector<2x32xf32>
    %205 = arith.maximumf %203, %204 : vector<2x32xf32>
    %cst_108 = arith.constant dense<0.000000e+00> : vector<2xf32>
    %206 = vector.multi_reduction <add>, %205, %cst_108 [1] : vector<2x32xf32> to vector<2xf32>
    %207 = vector.shape_cast %206 : vector<2xf32> to vector<2x1xf32>
    %cst_109 = arith.constant dense<0.000000e+00> : vector<1xf32>
    %208 = vector.multi_reduction <add>, %207, %cst_109 [0] : vector<2x1xf32> to vector<1xf32>
    %209 = vector.shape_cast %208 : vector<1xf32> to vector<1x1xf32>
    %cst_110 = arith.constant 1.562500e-02 : f32
    %210 = vector.broadcast %cst_110 : f32 to vector<1x1xf32>
    %211 = arith.mulf %209, %210 : vector<1x1xf32>
    %212 = arith.mulf %198, %171 : vector<2x32xf32>
    %213 = arith.addf %185, %212 : vector<2x32xf32>
    %c5 = arith.constant 5 : index
    %c0_111 = arith.constant 0 : index
    %214 = vector.load %arg3[%c5, %c0_111] : memref<16x128xf32, #tpu.memory_space<vmem>>, vector<1x32xf32>
    %215 = vector.broadcast %214 : vector<1x32xf32> to vector<2x32xf32>
    %216 = arith.mulf %213, %215 : vector<2x32xf32>
    %c6 = arith.constant 6 : index
    %c0_112 = arith.constant 0 : index
    %217 = vector.load %arg3[%c6, %c0_112] : memref<16x128xf32, #tpu.memory_space<vmem>>, vector<1x32xf32>
    %218 = vector.broadcast %217 : vector<1x32xf32> to vector<2x32xf32>
    %219 = arith.addf %216, %218 : vector<2x32xf32>
    %cst_113 = arith.constant 5.000000e-01 : f32
    %220 = vector.broadcast %cst_113 : f32 to vector<2x32xf32>
    %221 = arith.mulf %220, %219 : vector<2x32xf32>
    %222 = math.tanh %221 : vector<2x32xf32>
    %cst_114 = arith.constant 5.000000e-01 : f32
    %223 = vector.broadcast %cst_114 : f32 to vector<2x32xf32>
    %224 = arith.mulf %223, %222 : vector<2x32xf32>
    %cst_115 = arith.constant 5.000000e-01 : f32
    %225 = vector.broadcast %cst_115 : f32 to vector<2x32xf32>
    %226 = arith.addf %224, %225 : vector<2x32xf32>
    %227 = arith.mulf %219, %226 : vector<2x32xf32>
    %c240_116 = arith.constant 240 : index
    %c0_117 = arith.constant 0 : index
    %228 = vector.load %arg2[%c240_116, %c0_117] : memref<272x128xf32, #tpu.memory_space<vmem>>, vector<32x8xf32>
    %cst_118 = arith.constant dense<0.000000e+00> : vector<2x8xf32>
    %229 = tpu.matmul %227, %228, %cst_118 {dimension_numbers = #tpu.dot_dimension_numbers<[1], [0], [0], [1], [0, 0, 1, 1], [], []>} : vector<2x32xf32>, vector<32x8xf32>, vector<2x8xf32> -> vector<2x8xf32>
    %c15 = arith.constant 15 : index
    %c0_119 = arith.constant 0 : index
    %230 = vector.load %arg3[%c15, %c0_119] : memref<16x128xf32, #tpu.memory_space<vmem>>, vector<1x8xf32>
    %231 = vector.broadcast %230 : vector<1x8xf32> to vector<2x8xf32>
    %232 = arith.addf %229, %231 : vector<2x8xf32>
    %cst_120 = arith.constant dense<0xFF800000> : vector<2xf32>
    %233 = vector.multi_reduction <maximumf>, %232, %cst_120 [1] : vector<2x8xf32> to vector<2xf32>
    %234 = vector.shape_cast %233 : vector<2xf32> to vector<2x1xf32>
    %235 = vector.broadcast %234 : vector<2x1xf32> to vector<2x8xf32>
    %236 = arith.subf %232, %235 : vector<2x8xf32>
    %237 = math.exp %236 : vector<2x8xf32>
    %cst_121 = arith.constant dense<0.000000e+00> : vector<2xf32>
    %238 = vector.multi_reduction <add>, %237, %cst_121 [1] : vector<2x8xf32> to vector<2xf32>
    %239 = vector.shape_cast %238 : vector<2xf32> to vector<2x1xf32>
    %240 = vector.broadcast %239 : vector<2x1xf32> to vector<2x8xf32>
    %241 = arith.divf %237, %240 : vector<2x8xf32>
    %c48_122 = arith.constant 48 : index
    %c0_123 = arith.constant 0 : index
    %242 = vector.load %arg2[%c48_122, %c0_123] : memref<272x128xf32, #tpu.memory_space<vmem>>, vector<32x64xf32>
    %cst_124 = arith.constant dense<0.000000e+00> : vector<2x64xf32>
    %243 = tpu.matmul %227, %242, %cst_124 {dimension_numbers = #tpu.dot_dimension_numbers<[1], [0], [0], [1], [0, 0, 1, 1], [], []>} : vector<2x32xf32>, vector<32x64xf32>, vector<2x64xf32> -> vector<2x64xf32>
    %c7 = arith.constant 7 : index
    %c0_125 = arith.constant 0 : index
    %244 = vector.load %arg3[%c7, %c0_125] : memref<16x128xf32, #tpu.memory_space<vmem>>, vector<1x64xf32>
    %245 = vector.broadcast %244 : vector<1x64xf32> to vector<2x64xf32>
    %246 = arith.addf %243, %245 : vector<2x64xf32>
    %cst_126 = arith.constant 0.000000e+00 : f32
    %247 = vector.broadcast %cst_126 : f32 to vector<2x64xf32>
    %248 = arith.maximumf %246, %247 : vector<2x64xf32>
    %c80 = arith.constant 80 : index
    %c0_127 = arith.constant 0 : index
    %249 = vector.load %arg2[%c80, %c0_127] : memref<272x128xf32, #tpu.memory_space<vmem>>, vector<64x64xf32>
    %cst_128 = arith.constant dense<0.000000e+00> : vector<2x64xf32>
    %250 = tpu.matmul %248, %249, %cst_128 {dimension_numbers = #tpu.dot_dimension_numbers<[1], [0], [0], [1], [0, 0, 1, 1], [], []>} : vector<2x64xf32>, vector<64x64xf32>, vector<2x64xf32> -> vector<2x64xf32>
    %c8 = arith.constant 8 : index
    %c0_129 = arith.constant 0 : index
    %251 = vector.load %arg3[%c8, %c0_129] : memref<16x128xf32, #tpu.memory_space<vmem>>, vector<1x64xf32>
    %252 = vector.broadcast %251 : vector<1x64xf32> to vector<2x64xf32>
    %253 = arith.addf %250, %252 : vector<2x64xf32>
    %cst_130 = arith.constant 0.000000e+00 : f32
    %254 = vector.broadcast %cst_130 : f32 to vector<2x64xf32>
    %255 = arith.maximumf %253, %254 : vector<2x64xf32>
    %c144_131 = arith.constant 144 : index
    %c0_132 = arith.constant 0 : index
    %256 = vector.load %arg2[%c144_131, %c0_132] : memref<272x128xf32, #tpu.memory_space<vmem>>, vector<64x32xf32>
    %cst_133 = arith.constant dense<0.000000e+00> : vector<2x32xf32>
    %257 = tpu.matmul %255, %256, %cst_133 {dimension_numbers = #tpu.dot_dimension_numbers<[1], [0], [0], [1], [0, 0, 1, 1], [], []>} : vector<2x64xf32>, vector<64x32xf32>, vector<2x32xf32> -> vector<2x32xf32>
    %c9 = arith.constant 9 : index
    %c0_134 = arith.constant 0 : index
    %258 = vector.load %arg3[%c9, %c0_134] : memref<16x128xf32, #tpu.memory_space<vmem>>, vector<1x32xf32>
    %259 = vector.broadcast %258 : vector<1x32xf32> to vector<2x32xf32>
    %260 = arith.addf %257, %259 : vector<2x32xf32>
    %261 = arith.addf %227, %260 : vector<2x32xf32>
    %c10 = arith.constant 10 : index
    %c0_135 = arith.constant 0 : index
    %262 = vector.load %arg3[%c10, %c0_135] : memref<16x128xf32, #tpu.memory_space<vmem>>, vector<1x32xf32>
    %263 = vector.broadcast %262 : vector<1x32xf32> to vector<2x32xf32>
    %264 = arith.mulf %261, %263 : vector<2x32xf32>
    %c11 = arith.constant 11 : index
    %c0_136 = arith.constant 0 : index
    %265 = vector.load %arg3[%c11, %c0_136] : memref<16x128xf32, #tpu.memory_space<vmem>>, vector<1x32xf32>
    %266 = vector.broadcast %265 : vector<1x32xf32> to vector<2x32xf32>
    %267 = arith.addf %264, %266 : vector<2x32xf32>
    %cst_137 = arith.constant 5.000000e-01 : f32
    %268 = vector.broadcast %cst_137 : f32 to vector<2x32xf32>
    %269 = arith.mulf %268, %267 : vector<2x32xf32>
    %270 = math.tanh %269 : vector<2x32xf32>
    %cst_138 = arith.constant 5.000000e-01 : f32
    %271 = vector.broadcast %cst_138 : f32 to vector<2x32xf32>
    %272 = arith.mulf %271, %270 : vector<2x32xf32>
    %cst_139 = arith.constant 5.000000e-01 : f32
    %273 = vector.broadcast %cst_139 : f32 to vector<2x32xf32>
    %274 = arith.addf %272, %273 : vector<2x32xf32>
    %275 = arith.mulf %267, %274 : vector<2x32xf32>
    %c2_140 = arith.constant 2 : index
    %c0_141 = arith.constant 0 : index
    %276 = vector.load %arg4[%c2_140, %c0_141] : memref<4x32xf32, #tpu.memory_space<vmem>>, vector<2x32xf32>
    %c208 = arith.constant 208 : index
    %c0_142 = arith.constant 0 : index
    %277 = vector.load %arg2[%c208, %c0_142] : memref<272x128xf32, #tpu.memory_space<vmem>>, vector<32x64xf32>
    %cst_143 = arith.constant dense<0.000000e+00> : vector<2x64xf32>
    %278 = tpu.matmul %275, %277, %cst_143 {dimension_numbers = #tpu.dot_dimension_numbers<[1], [0], [0], [1], [0, 0, 1, 1], [], []>} : vector<2x32xf32>, vector<32x64xf32>, vector<2x64xf32> -> vector<2x64xf32>
    %c12_144 = arith.constant 12 : index
    %c0_145 = arith.constant 0 : index
    %279 = vector.load %arg3[%c12_144, %c0_145] : memref<16x128xf32, #tpu.memory_space<vmem>>, vector<1x64xf32>
    %280 = vector.broadcast %279 : vector<1x64xf32> to vector<2x64xf32>
    %281 = arith.addf %278, %280 : vector<2x64xf32>
    %282 = vector.extract_strided_slice %281 {offsets = [0, 0], sizes = [2, 32], strides = [1, 1]} : vector<2x64xf32> to vector<2x32xf32>
    %cst_146 = arith.constant 5.000000e-01 : f32
    %283 = vector.broadcast %cst_146 : f32 to vector<2x32xf32>
    %284 = arith.mulf %283, %282 : vector<2x32xf32>
    %285 = math.tanh %284 : vector<2x32xf32>
    %cst_147 = arith.constant 5.000000e-01 : f32
    %286 = vector.broadcast %cst_147 : f32 to vector<2x32xf32>
    %287 = arith.mulf %286, %285 : vector<2x32xf32>
    %cst_148 = arith.constant 5.000000e-01 : f32
    %288 = vector.broadcast %cst_148 : f32 to vector<2x32xf32>
    %289 = arith.addf %287, %288 : vector<2x32xf32>
    %290 = arith.mulf %282, %289 : vector<2x32xf32>
    %291 = vector.extract_strided_slice %281 {offsets = [0, 32], sizes = [2, 32], strides = [1, 1]} : vector<2x64xf32> to vector<2x32xf32>
    %cst_149 = arith.constant 0.000000e+00 : f32
    %292 = vector.broadcast %cst_149 : f32 to vector<2x32xf32>
    %293 = arith.maximumf %291, %292 : vector<2x32xf32>
    %294 = math.absf %291 : vector<2x32xf32>
    %cst_150 = arith.constant 0.000000e+00 : f32
    %295 = vector.broadcast %cst_150 : f32 to vector<2x32xf32>
    %296 = arith.subf %295, %294 : vector<2x32xf32>
    %297 = math.exp %296 : vector<2x32xf32>
    %cst_151 = arith.constant 1.000000e+00 : f32
    %298 = vector.broadcast %cst_151 : f32 to vector<2x32xf32>
    %299 = arith.addf %298, %297 : vector<2x32xf32>
    %300 = math.log %299 : vector<2x32xf32>
    %301 = arith.addf %293, %300 : vector<2x32xf32>
    %cst_152 = arith.constant 9.99999993E-9 : f32
    %302 = vector.broadcast %cst_152 : f32 to vector<2x32xf32>
    %303 = arith.addf %301, %302 : vector<2x32xf32>
    %304 = math.log %303 : vector<2x32xf32>
    %cst_153 = arith.constant 1.41893852 : f32
    %305 = vector.broadcast %cst_153 : f32 to vector<2x32xf32>
    %306 = arith.addf %305, %304 : vector<2x32xf32>
    %cst_154 = arith.constant 0.899999976 : f32
    %307 = vector.broadcast %cst_154 : f32 to vector<2x32xf32>
    %308 = arith.subf %307, %306 : vector<2x32xf32>
    %cst_155 = arith.constant 0.000000e+00 : f32
    %309 = vector.broadcast %cst_155 : f32 to vector<2x32xf32>
    %310 = arith.maximumf %308, %309 : vector<2x32xf32>
    %cst_156 = arith.constant dense<0.000000e+00> : vector<2xf32>
    %311 = vector.multi_reduction <add>, %310, %cst_156 [1] : vector<2x32xf32> to vector<2xf32>
    %312 = vector.shape_cast %311 : vector<2xf32> to vector<2x1xf32>
    %cst_157 = arith.constant dense<0.000000e+00> : vector<1xf32>
    %313 = vector.multi_reduction <add>, %312, %cst_157 [0] : vector<2x1xf32> to vector<1xf32>
    %314 = vector.shape_cast %313 : vector<1xf32> to vector<1x1xf32>
    %cst_158 = arith.constant 1.562500e-02 : f32
    %315 = vector.broadcast %cst_158 : f32 to vector<1x1xf32>
    %316 = arith.mulf %314, %315 : vector<1x1xf32>
    %317 = arith.mulf %303, %276 : vector<2x32xf32>
    %318 = arith.addf %290, %317 : vector<2x32xf32>
    %c13 = arith.constant 13 : index
    %c0_159 = arith.constant 0 : index
    %319 = vector.load %arg3[%c13, %c0_159] : memref<16x128xf32, #tpu.memory_space<vmem>>, vector<1x32xf32>
    %320 = vector.broadcast %319 : vector<1x32xf32> to vector<2x32xf32>
    %321 = arith.mulf %318, %320 : vector<2x32xf32>
    %c14_160 = arith.constant 14 : index
    %c0_161 = arith.constant 0 : index
    %322 = vector.load %arg3[%c14_160, %c0_161] : memref<16x128xf32, #tpu.memory_space<vmem>>, vector<1x32xf32>
    %323 = vector.broadcast %322 : vector<1x32xf32> to vector<2x32xf32>
    %324 = arith.addf %321, %323 : vector<2x32xf32>
    %cst_162 = arith.constant 5.000000e-01 : f32
    %325 = vector.broadcast %cst_162 : f32 to vector<2x32xf32>
    %326 = arith.mulf %325, %324 : vector<2x32xf32>
    %327 = math.tanh %326 : vector<2x32xf32>
    %cst_163 = arith.constant 5.000000e-01 : f32
    %328 = vector.broadcast %cst_163 : f32 to vector<2x32xf32>
    %329 = arith.mulf %328, %327 : vector<2x32xf32>
    %cst_164 = arith.constant 5.000000e-01 : f32
    %330 = vector.broadcast %cst_164 : f32 to vector<2x32xf32>
    %331 = arith.addf %329, %330 : vector<2x32xf32>
    %332 = arith.mulf %324, %331 : vector<2x32xf32>
    %c240_165 = arith.constant 240 : index
    %c0_166 = arith.constant 0 : index
    %333 = vector.load %arg2[%c240_165, %c0_166] : memref<272x128xf32, #tpu.memory_space<vmem>>, vector<32x8xf32>
    %cst_167 = arith.constant dense<0.000000e+00> : vector<2x8xf32>
    %334 = tpu.matmul %332, %333, %cst_167 {dimension_numbers = #tpu.dot_dimension_numbers<[1], [0], [0], [1], [0, 0, 1, 1], [], []>} : vector<2x32xf32>, vector<32x8xf32>, vector<2x8xf32> -> vector<2x8xf32>
    %c15_168 = arith.constant 15 : index
    %c0_169 = arith.constant 0 : index
    %335 = vector.load %arg3[%c15_168, %c0_169] : memref<16x128xf32, #tpu.memory_space<vmem>>, vector<1x8xf32>
    %336 = vector.broadcast %335 : vector<1x8xf32> to vector<2x8xf32>
    %337 = arith.addf %334, %336 : vector<2x8xf32>
    %cst_170 = arith.constant dense<0xFF800000> : vector<2xf32>
    %338 = vector.multi_reduction <maximumf>, %337, %cst_170 [1] : vector<2x8xf32> to vector<2xf32>
    %339 = vector.shape_cast %338 : vector<2xf32> to vector<2x1xf32>
    %340 = vector.broadcast %339 : vector<2x1xf32> to vector<2x8xf32>
    %341 = arith.subf %337, %340 : vector<2x8xf32>
    %342 = math.exp %341 : vector<2x8xf32>
    %cst_171 = arith.constant dense<0.000000e+00> : vector<2xf32>
    %343 = vector.multi_reduction <add>, %342, %cst_171 [1] : vector<2x8xf32> to vector<2xf32>
    %344 = vector.shape_cast %343 : vector<2xf32> to vector<2x1xf32>
    %345 = vector.broadcast %344 : vector<2x1xf32> to vector<2x8xf32>
    %346 = arith.divf %342, %345 : vector<2x8xf32>
    %347 = tpu.iota {dimensions = array<i32: 1>} : vector<16x256xi32>
    %348 = tpu.iota {dimensions = array<i32: 0>} : vector<16x256xi32>
    %c0_i32 = arith.constant 0 : i32
    %349 = vector.broadcast %c0_i32 : i32 to vector<16x256xi32>
    %350 = arith.addi %348, %349 : vector<16x256xi32>
    %351 = arith.cmpi eq, %347, %350 : vector<16x256xi32>
    %cst_172 = arith.constant 1.000000e+00 : f32
    %cst_173 = arith.constant 0.000000e+00 : f32
    %352 = vector.broadcast %cst_172 : f32 to vector<16x256xf32>
    %353 = vector.broadcast %cst_173 : f32 to vector<16x256xf32>
    %354 = arith.select %351, %352, %353 : vector<16x256xi1>, vector<16x256xf32>
    %cst_174 = arith.constant dense<0.000000e+00> : vector<2x256xf32>
    %355 = tpu.matmul %157, %354, %cst_174 {dimension_numbers = #tpu.dot_dimension_numbers<[1], [0], [0], [1], [0, 0, 1, 1], [], []>} : vector<2x16xf32>, vector<16x256xf32>, vector<2x256xf32> -> vector<2x256xf32>
    %356 = tpu.iota {dimensions = array<i32: 1>} : vector<32x256xi32>
    %357 = tpu.iota {dimensions = array<i32: 0>} : vector<32x256xi32>
    %c16_i32_175 = arith.constant 16 : i32
    %358 = vector.broadcast %c16_i32_175 : i32 to vector<32x256xi32>
    %359 = arith.addi %357, %358 : vector<32x256xi32>
    %360 = arith.cmpi eq, %356, %359 : vector<32x256xi32>
    %cst_176 = arith.constant 1.000000e+00 : f32
    %cst_177 = arith.constant 0.000000e+00 : f32
    %361 = vector.broadcast %cst_176 : f32 to vector<32x256xf32>
    %362 = vector.broadcast %cst_177 : f32 to vector<32x256xf32>
    %363 = arith.select %360, %361, %362 : vector<32x256xi1>, vector<32x256xf32>
    %cst_178 = arith.constant dense<0.000000e+00> : vector<2x256xf32>
    %364 = tpu.matmul %227, %363, %cst_178 {dimension_numbers = #tpu.dot_dimension_numbers<[1], [0], [0], [1], [0, 0, 1, 1], [], []>} : vector<2x32xf32>, vector<32x256xf32>, vector<2x256xf32> -> vector<2x256xf32>
    %365 = arith.addf %355, %364 : vector<2x256xf32>
    %366 = tpu.iota {dimensions = array<i32: 1>} : vector<32x256xi32>
    %367 = tpu.iota {dimensions = array<i32: 0>} : vector<32x256xi32>
    %c48_i32 = arith.constant 48 : i32
    %368 = vector.broadcast %c48_i32 : i32 to vector<32x256xi32>
    %369 = arith.addi %367, %368 : vector<32x256xi32>
    %370 = arith.cmpi eq, %366, %369 : vector<32x256xi32>
    %cst_179 = arith.constant 1.000000e+00 : f32
    %cst_180 = arith.constant 0.000000e+00 : f32
    %371 = vector.broadcast %cst_179 : f32 to vector<32x256xf32>
    %372 = vector.broadcast %cst_180 : f32 to vector<32x256xf32>
    %373 = arith.select %370, %371, %372 : vector<32x256xi1>, vector<32x256xf32>
    %cst_181 = arith.constant dense<0.000000e+00> : vector<2x256xf32>
    %374 = tpu.matmul %260, %373, %cst_181 {dimension_numbers = #tpu.dot_dimension_numbers<[1], [0], [0], [1], [0, 0, 1, 1], [], []>} : vector<2x32xf32>, vector<32x256xf32>, vector<2x256xf32> -> vector<2x256xf32>
    %375 = arith.addf %365, %374 : vector<2x256xf32>
    %376 = tpu.iota {dimensions = array<i32: 1>} : vector<32x256xi32>
    %377 = tpu.iota {dimensions = array<i32: 0>} : vector<32x256xi32>
    %c80_i32 = arith.constant 80 : i32
    %378 = vector.broadcast %c80_i32 : i32 to vector<32x256xi32>
    %379 = arith.addi %377, %378 : vector<32x256xi32>
    %380 = arith.cmpi eq, %376, %379 : vector<32x256xi32>
    %cst_182 = arith.constant 1.000000e+00 : f32
    %cst_183 = arith.constant 0.000000e+00 : f32
    %381 = vector.broadcast %cst_182 : f32 to vector<32x256xf32>
    %382 = vector.broadcast %cst_183 : f32 to vector<32x256xf32>
    %383 = arith.select %380, %381, %382 : vector<32x256xi1>, vector<32x256xf32>
    %cst_184 = arith.constant dense<0.000000e+00> : vector<2x256xf32>
    %384 = tpu.matmul %332, %383, %cst_184 {dimension_numbers = #tpu.dot_dimension_numbers<[1], [0], [0], [1], [0, 0, 1, 1], [], []>} : vector<2x32xf32>, vector<32x256xf32>, vector<2x256xf32> -> vector<2x256xf32>
    %385 = arith.addf %375, %384 : vector<2x256xf32>
    %386 = tpu.iota {dimensions = array<i32: 1>} : vector<8x256xi32>
    %387 = tpu.iota {dimensions = array<i32: 0>} : vector<8x256xi32>
    %c112_i32 = arith.constant 112 : i32
    %388 = vector.broadcast %c112_i32 : i32 to vector<8x256xi32>
    %389 = arith.addi %387, %388 : vector<8x256xi32>
    %390 = arith.cmpi eq, %386, %389 : vector<8x256xi32>
    %cst_185 = arith.constant 1.000000e+00 : f32
    %cst_186 = arith.constant 0.000000e+00 : f32
    %391 = vector.broadcast %cst_185 : f32 to vector<8x256xf32>
    %392 = vector.broadcast %cst_186 : f32 to vector<8x256xf32>
    %393 = arith.select %390, %391, %392 : vector<8x256xi1>, vector<8x256xf32>
    %cst_187 = arith.constant dense<0.000000e+00> : vector<2x256xf32>
    %394 = tpu.matmul %241, %393, %cst_187 {dimension_numbers = #tpu.dot_dimension_numbers<[1], [0], [0], [1], [0, 0, 1, 1], [], []>} : vector<2x8xf32>, vector<8x256xf32>, vector<2x256xf32> -> vector<2x256xf32>
    %395 = arith.addf %385, %394 : vector<2x256xf32>
    %396 = tpu.iota {dimensions = array<i32: 1>} : vector<8x256xi32>
    %397 = tpu.iota {dimensions = array<i32: 0>} : vector<8x256xi32>
    %c120_i32 = arith.constant 120 : i32
    %398 = vector.broadcast %c120_i32 : i32 to vector<8x256xi32>
    %399 = arith.addi %397, %398 : vector<8x256xi32>
    %400 = arith.cmpi eq, %396, %399 : vector<8x256xi32>
    %cst_188 = arith.constant 1.000000e+00 : f32
    %cst_189 = arith.constant 0.000000e+00 : f32
    %401 = vector.broadcast %cst_188 : f32 to vector<8x256xf32>
    %402 = vector.broadcast %cst_189 : f32 to vector<8x256xf32>
    %403 = arith.select %400, %401, %402 : vector<8x256xi1>, vector<8x256xf32>
    %cst_190 = arith.constant dense<0.000000e+00> : vector<2x256xf32>
    %404 = tpu.matmul %346, %403, %cst_190 {dimension_numbers = #tpu.dot_dimension_numbers<[1], [0], [0], [1], [0, 0, 1, 1], [], []>} : vector<2x8xf32>, vector<8x256xf32>, vector<2x256xf32> -> vector<2x256xf32>
    %405 = arith.addf %395, %404 : vector<2x256xf32>
    %406 = tpu.iota {dimensions = array<i32: 0>} : vector<2x256xi32>
    %407 = tpu.iota {dimensions = array<i32: 1>} : vector<2x256xi32>
    %c0_i32_191 = arith.constant 0 : i32
    %408 = vector.broadcast %c0_i32_191 : i32 to vector<2x256xi32>
    %409 = arith.cmpi eq, %406, %408 : vector<2x256xi32>
    %c128_i32 = arith.constant 128 : i32
    %410 = vector.broadcast %c128_i32 : i32 to vector<2x256xi32>
    %411 = arith.cmpi eq, %407, %410 : vector<2x256xi32>
    %412 = arith.andi %409, %411 : vector<2x256xi1>
    %cst_192 = arith.constant 0.000000e+00 : f32
    %413 = vector.shape_cast %211 : vector<1x1xf32> to vector<1x1xf32>
    %414 = vector.broadcast %413 : vector<1x1xf32> to vector<2x256xf32>
    %415 = vector.broadcast %cst_192 : f32 to vector<2x256xf32>
    %416 = arith.select %412, %414, %415 : vector<2x256xi1>, vector<2x256xf32>
    %417 = arith.addf %405, %416 : vector<2x256xf32>
    %c1_i32 = arith.constant 1 : i32
    %418 = vector.broadcast %c1_i32 : i32 to vector<2x256xi32>
    %419 = arith.cmpi eq, %406, %418 : vector<2x256xi32>
    %c128_i32_193 = arith.constant 128 : i32
    %420 = vector.broadcast %c128_i32_193 : i32 to vector<2x256xi32>
    %421 = arith.cmpi eq, %407, %420 : vector<2x256xi32>
    %422 = arith.andi %419, %421 : vector<2x256xi1>
    %cst_194 = arith.constant 0.000000e+00 : f32
    %423 = vector.shape_cast %316 : vector<1x1xf32> to vector<1x1xf32>
    %424 = vector.broadcast %423 : vector<1x1xf32> to vector<2x256xf32>
    %425 = vector.broadcast %cst_194 : f32 to vector<2x256xf32>
    %426 = arith.select %422, %424, %425 : vector<2x256xi1>, vector<2x256xf32>
    %427 = arith.addf %417, %426 : vector<2x256xf32>
    %c0_195 = arith.constant 0 : index
    %c0_196 = arith.constant 0 : index
    %428 = vector.load %arg5[%c0_195, %c0_196] : memref<2x256xf32, #tpu.memory_space<vmem>>, vector<2x256xf32>
    tpu.vector_store %arg5[%c0_195, %c0_196], %427 {strides = array<i32>} : memref<2x256xf32, #tpu.memory_space<vmem>>, vector<2x256xf32>,
    return
  }
}

</mosaic_0001>

<llo_original>
// kernel: cosda_forward.1
$region0: #{cosda_forward.1}
  #allocation0 [shape = 'u32[]', space=smem, size = 0x4, offset = 0x4, fixed_abs, tag = 'smem constant byte address 0x4 - core index']
  #allocation1 [shape = 'u32[144,128]{1,0:T(1,128)}', space=vmem, size = 0x12000, scoped, tag = 'internal scratch']
  %s0 = inlined_call_operand.hbm [shape: f32[48,48], index: 0, kind: input, shape index: {}]
  %s1 = inlined_call_operand.hbm [shape: f32[528,128], index: 1, kind: input, shape index: {}]
  %s2 = inlined_call_operand.hbm [shape: f32[272,128], index: 2, kind: input, shape index: {}]
  %s3 = inlined_call_operand.hbm [shape: f32[16,128], index: 3, kind: input, shape index: {}]
  %s4 = inlined_call_operand.hbm [shape: f32[4,32], index: 4, kind: input, shape index: {}]
  %s5 = inlined_call_operand.hbm [shape: f32[2,256], index: 5, kind: output, shape index: {}]
  %s6 = sld [smem:[#allocation0]]
  $region50: #{cosda_forward.1} parent=0
    _
  %s8 = ssub.s32 1, %s6
  %s9 = scalar_select 0, %s8, %s6
  $region1: #{cosda_forward.1} parent=0
    #allocation2 [shape = 'u8[24576]{0}', space=vmem, size = 0x6000, scoped, tag = 'input window, operand 0, single buffered']
    #allocation3 [shape = 's32[1]{0}', space=sflag, size = 0x4, scoped, tag = 'scoped memory for cosda_forward.1']
    #allocation4 [shape = 's32[1]{0}', space=sflag, size = 0x4, scoped, tag = 'scoped memory for cosda_forward.1']
    #allocation5 [shape = 'u8[270336]{0}', space=vmem, size = 0x42000, scoped, tag = 'input window, operand 1, single buffered']
    #allocation6 [shape = 's32[1]{0}', space=sflag, size = 0x4, scoped, tag = 'scoped memory for cosda_forward.1']
    #allocation7 [shape = 'u8[139264]{0}', space=vmem, size = 0x22000, scoped, tag = 'input window, operand 2, single buffered']
    #allocation8 [shape = 'u8[8192]{0}', space=vmem, size = 0x2000, scoped, tag = 'input window, operand 3, single buffered']
    #allocation9 [shape = 's32[1]{0}', space=sflag, size = 0x4, scoped, tag = 'scoped memory for cosda_forward.1']
    #allocation10 [shape = 'u8[2048]{0}', space=vmem, size = 0x800, scoped, tag = 'input window, operand 4, single buffered']
    #allocation11 [shape = 'u8[2048]{0}', space=vmem, size = 0x800, scoped, tag = 'output window, operand 0, single buffered']
    %10 = vsyncpa [#allocation3], 0
    %11 = vsyncpa [#allocation6], 0
    %12 = vsyncpa [#allocation9], 0
    %13 = vsyncpa [#allocation4], 0
    // Predicated region
    $region2: #{cosda_forward.1} parent=1 // pred_check
      _
    $region3: #{cosda_forward.1} parent=1 // pred_check_branch
      %15 = sbr.rel (0) target = $region5
    $region4: #{cosda_forward.1} parent=1 // pred_region
      %s17 = ssub.s32 768, 768
      %18 = vsyncadd [#allocation3], %s17
      %s19 = sshll.u32 [#allocation2], 4
      %s20 = int_to_ptr.vmem [resolvable:$true] %s19
      %25 = dma.hbm_to_vmem [thread:$0]  %s0, 768, %s20, [#allocation3], 128, 128, 8
    $region5: #{cosda_forward.1} parent=1 // pred_fallthru
      _
    // Predicated region
    $region6: #{cosda_forward.1} parent=1 // pred_check
      _
    $region7: #{cosda_forward.1} parent=1 // pred_check_branch
      %27 = sbr.rel (0) target = $region9
    $region8: #{cosda_forward.1} parent=1 // pred_region
      %s29 = ssub.s32 8448, 8448
      %30 = vsyncadd [#allocation6], %s29
      %s31 = sshll.u32 [#allocation5], 4
      %s32 = int_to_ptr.vmem [resolvable:$true] %s31
      %37 = dma.hbm_to_vmem [thread:$0]  %s1, 8448, %s32, [#allocation6], 128, 128, 8
    $region9: #{cosda_forward.1} parent=1 // pred_fallthru
      _
    // Predicated region
    $region10: #{cosda_forward.1} parent=1 // pred_check
      _
    $region11: #{cosda_forward.1} parent=1 // pred_check_branch
      %39 = sbr.rel (0) target = $region13
    $region12: #{cosda_forward.1} parent=1 // pred_region
      %s41 = ssub.s32 4352, 4352
      %42 = vsyncadd [#allocation6], %s41
      %s43 = sshll.u32 [#allocation7], 4
      %s44 = int_to_ptr.vmem [resolvable:$true] %s43
      %49 = dma.hbm_to_vmem [thread:$0]  %s2, 4352, %s44, [#allocation6], 128, 128, 8
    $region13: #{cosda_forward.1} parent=1 // pred_fallthru
      _
    // Predicated region
    $region14: #{cosda_forward.1} parent=1 // pred_check
      _
    $region15: #{cosda_forward.1} parent=1 // pred_check_branch
      %51 = sbr.rel (0) target = $region17
    $region16: #{cosda_forward.1} parent=1 // pred_region
      %s53 = ssub.s32 256, 256
      %54 = vsyncadd [#allocation9], %s53
      %s55 = sshll.u32 [#allocation8], 4
      %s56 = int_to_ptr.vmem [resolvable:$true] %s55
      %61 = dma.hbm_to_vmem [thread:$0]  %s3, 256, %s56, [#allocation9], 128, 128, 8
    $region17: #{cosda_forward.1} parent=1 // pred_fallthru
      _
    // Predicated region
    $region18: #{cosda_forward.1} parent=1 // pred_check
      _
    $region19: #{cosda_forward.1} parent=1 // pred_check_branch
      %63 = sbr.rel (0) target = $region21
    $region20: #{cosda_forward.1} parent=1 // pred_region
      %s65 = ssub.s32 64, 64
      %66 = vsyncadd [#allocation9], %s65
      %s68 = sshll.u32 [#allocation10], 4
      %s69 = int_to_ptr.vmem [resolvable:$true] %s68
      %71 = dma.hbm_to_vmem [thread:$0]  %s4, 64, %s69, [#allocation9]
    $region21: #{cosda_forward.1} parent=1 // pred_fallthru
      _
    // Predicated region
    $region22: #{cosda_forward.1} parent=1 // pred_check
      _
    $region23: #{cosda_forward.1} parent=1 // pred_check_branch
      %73 = sbr.rel (0) target = $region25
    $region24: #{cosda_forward.1} parent=1 // pred_region
      %74 = dma.done [#allocation3], 768
    $region25: #{cosda_forward.1} parent=1 // pred_fallthru
      _
    // Predicated region
    $region26: #{cosda_forward.1} parent=1 // pred_check
      _
    $region27: #{cosda_forward.1} parent=1 // pred_check_branch
      %76 = sbr.rel (0) target = $region29
    $region28: #{cosda_forward.1} parent=1 // pred_region
      %77 = dma.done [#allocation6], 8448
    $region29: #{cosda_forward.1} parent=1 // pred_fallthru
      _
    // Predicated region
    $region30: #{cosda_forward.1} parent=1 // pred_check
      _
    $region31: #{cosda_forward.1} parent=1 // pred_check_branch
      %79 = sbr.rel (0) target = $region33
    $region32: #{cosda_forward.1} parent=1 // pred_region
      %80 = dma.done [#allocation6], 4352
    $region33: #{cosda_forward.1} parent=1 // pred_fallthru
      _
    // Predicated region
    $region34: #{cosda_forward.1} parent=1 // pred_check
      _
    $region35: #{cosda_forward.1} parent=1 // pred_check_branch
      %82 = sbr.rel (0) target = $region37
    $region36: #{cosda_forward.1} parent=1 // pred_region
      %83 = dma.done [#allocation9], 256
    $region37: #{cosda_forward.1} parent=1 // pred_fallthru
      _
    // Predicated region
    $region38: #{cosda_forward.1} parent=1 // pred_check
      _
    $region39: #{cosda_forward.1} parent=1 // pred_check_branch
      %85 = sbr.rel (0) target = $region41
    $region40: #{cosda_forward.1} parent=1 // pred_region
      %86 = dma.done [#allocation9], 64
    $region41: #{cosda_forward.1} parent=1 // pred_fallthru
      _
    %v87 = vld [vmem:[#allocation5] sm:$0xff]
    %v88 = vld [vmem:[#allocation5 + $0x8] sm:$0xff]
    %v89 = vld [vmem:[#allocation5 + $0x10] sm:$0xff]
    %v90 = vld [vmem:[#allocation5 + $0x18] sm:$0xff]
    %v91 = vld [vmem:[#allocation5 + $0x20] sm:$0xff]
    %v92 = vld [vmem:[#allocation5 + $0x28] sm:$0xff]
    %v93 = vld [vmem:[#allocation2] sm:$0xff]
    %v94 = vld [vmem:[#allocation2 + $0x18] sm:$0xff]
    %v95 = vld [vmem:[#allocation5 + $0x30] sm:$0xff]
    %v96 = vld [vmem:[#allocation5 + $0x38] sm:$0xff]
    %v97 = vld [vmem:[#allocation5 + $0x40] sm:$0xff]
    %v98 = vld [vmem:[#allocation5 + $0x48] sm:$0xff]
    %v99 = vld [vmem:[#allocation5 + $0x50] sm:$0xff]
    %v100 = vld [vmem:[#allocation5 + $0x58] sm:$0xff]
    %v101 = vld [vmem:[#allocation2 + $0xc] sm:$0xff]
    %vm102 = vcmask 392192
    %v104 = vsel %vm102, %v101, 0
    %106 = vmatprep.subr.mxu0 0.0
    %107 = vmatpush1.msra.mxu0 %v95
    %108 = vmatprep.subr.mxu0 0.0
    %109 = vmatpush1.msra.mxu0 %v96
    %110 = vmatprep.subr.mxu0 0.0
    %111 = vmatpush1.msra.mxu0 %v97
    %112 = vmatprep.subr.mxu0 0.0
    %113 = vmatpush1.msra.mxu0 %v98
    %114 = vmatprep.subr.mxu0 0.0
    %115 = vmatpush1.msra.mxu0 %v99
    %116 = vmatprep.subr.mxu0 0.0
    %117 = vmatpush1.msra.mxu0 %v100
    %118 = vmatprep.subr.mxu0 0.0
    %119 = vmatpush1.msra.mxu0 0.0
    %120 = vmatprep.subr.mxu0 0.0
    %121 = vmatpush1.msra.mxu0 0.0
    %122 = vmatprep.subr.mxu0 0.0
    %123 = vmatpush1.msra.mxu0 0.0
    %124 = vmatprep.subr.mxu0 0.0
    %125 = vmatpush1.msra.mxu0 0.0
    %126 = vmatprep.subr.mxu0 0.0
    %127 = vmatpush1.msra.mxu0 0.0
    %128 = vmatprep.subr.mxu0 0.0
    %129 = vmatpush1.msra.mxu0 0.0
    %130 = vmatprep.subr.mxu0 0.0
    %131 = vmatpush1.msra.mxu0 0.0
    %132 = vmatprep.subr.mxu0 0.0
    %133 = vmatpush1.msra.mxu0 0.0
    %134 = vmatprep.subr.mxu0 0.0
    %135 = vmatpush1.msra.mxu0 0.0
    %136 = vmatprep.subr.mxu0 0.0
    %137 = vmatpush1.msra.mxu0 0.0
    %138 = vmatprep.subr.mxu0 0.0
    %139 = vmatpush1.msra.mxu0 0.0
    %140 = vmatprep.subr.mxu0 0.0
    %141 = vmatpush1.msra.mxu0 0.0
    %142 = vmatprep.subr.mxu0 0.0
    %143 = vmatpush1.msra.mxu0 0.0
    %144 = vmatprep.subr.mxu0 0.0
    %145 = vmatpush1.msra.mxu0 0.0
    %146 = vmatprep.subr.mxu0 0.0
    %147 = vmatpush1.msra.mxu0 0.0
    %148 = vmatprep.subr.mxu0 0.0
    %149 = vmatpush1.msra.mxu0 0.0
    %150 = vmatprep.subr.mxu0 0.0
    %151 = vmatpush1.msra.mxu0 0.0
    %152 = vmatprep.subr.mxu0 0.0
    %153 = vmatpush1.msra.mxu0 0.0
    %154 = vmatprep.subr.mxu0 0.0
    %155 = vmatpush1.msra.mxu0 0.0
    %156 = vmatprep.subr.mxu0 0.0
    %157 = vmatpush1.msra.mxu0 0.0
    %158 = vmatprep.subr.mxu0 0.0
    %159 = vmatpush1.msra.mxu0 0.0
    %160 = vmatprep.subr.mxu0 0.0
    %161 = vmatpush1.msra.mxu0 0.0
    %162 = vmatprep.subr.mxu0 0.0
    %163 = vmatpush1.msra.mxu0 0.0
    %164 = vmatprep.subr.mxu0 0.0
    %165 = vmatpush1.msra.mxu0 0.0
    %166 = vmatprep.subr.mxu0 0.0
    %167 = vmatpush1.msra.mxu0 0.0
    %168 = vmatprep.subr.mxu0 0.0
    %169 = vmatpush1.msra.mxu0 0.0
    %170 = vmatprep.mubr.f32.mxu0 0.0
    %171 = vmatmul.mubr.f32.gmra.mrb[0].mxu0 %v104
    %v172 = vpop.f32.mrb[0].mxu0
    %v173 = vadd.f32 0.0, %v172
    %v174 = vpop.f32.mrb[0].mxu0
    %175 = vdwg.mxu0
    %v177 = vsel %vm102, %v93, 0
    %179 = vmatprep.subr.mxu0 0.0
    %180 = vmatpush1.msra.mxu0 %v87
    %181 = vmatprep.subr.mxu0 0.0
    %182 = vmatpush1.msra.mxu0 %v88
    %183 = vmatprep.subr.mxu0 0.0
    %184 = vmatpush1.msra.mxu0 %v89
    %185 = vmatprep.subr.mxu0 0.0
    %186 = vmatpush1.msra.mxu0 %v90
    %187 = vmatprep.subr.mxu0 0.0
    %188 = vmatpush1.msra.mxu0 %v91
    %189 = vmatprep.subr.mxu0 0.0
    %190 = vmatpush1.msra.mxu0 %v92
    %191 = vmatprep.subr.mxu0 0.0
    %192 = vmatpush1.msra.mxu0 0.0
    %193 = vmatprep.subr.mxu0 0.0
    %194 = vmatpush1.msra.mxu0 0.0
    %195 = vmatprep.subr.mxu0 0.0
    %196 = vmatpush1.msra.mxu0 0.0
    %197 = vmatprep.subr.mxu0 0.0
    %198 = vmatpush1.msra.mxu0 0.0
    %199 = vmatprep.subr.mxu0 0.0
    %200 = vmatpush1.msra.mxu0 0.0
    %201 = vmatprep.subr.mxu0 0.0
    %202 = vmatpush1.msra.mxu0 0.0
    %203 = vmatprep.subr.mxu0 0.0
    %204 = vmatpush1.msra.mxu0 0.0
    %205 = vmatprep.subr.mxu0 0.0
    %206 = vmatpush1.msra.mxu0 0.0
    %207 = vmatprep.subr.mxu0 0.0
    %208 = vmatpush1.msra.mxu0 0.0
    %209 = vmatprep.subr.mxu0 0.0
    %210 = vmatpush1.msra.mxu0 0.0
    %211 = vmatprep.subr.mxu0 0.0
    %212 = vmatpush1.msra.mxu0 0.0
    %213 = vmatprep.subr.mxu0 0.0
    %214 = vmatpush1.msra.mxu0 0.0
    %215 = vmatprep.subr.mxu0 0.0
    %216 = vmatpush1.msra.mxu0 0.0
    %217 = vmatprep.subr.mxu0 0.0
    %218 = vmatpush1.msra.mxu0 0.0
    %219 = vmatprep.subr.mxu0 0.0
    %220 = vmatpush1.msra.mxu0 0.0
    %221 = vmatprep.subr.mxu0 0.0
    %222 = vmatpush1.msra.mxu0 0.0
    %223 = vmatprep.subr.mxu0 0.0
    %224 = vmatpush1.msra.mxu0 0.0
    %225 = vmatprep.subr.mxu0 0.0
    %226 = vmatpush1.msra.mxu0 0.0
    %227 = vmatprep.subr.mxu0 0.0
    %228 = vmatpush1.msra.mxu0 0.0
    %229 = vmatprep.subr.mxu0 0.0
    %230 = vmatpush1.msra.mxu0 0.0
    %231 = vmatprep.subr.mxu0 0.0
    %232 = vmatpush1.msra.mxu0 0.0
    %233 = vmatprep.subr.mxu0 0.0
    %234 = vmatpush1.msra.mxu0 0.0
    %235 = vmatprep.subr.mxu0 0.0
    %236 = vmatpush1.msra.mxu0 0.0
    %237 = vmatprep.subr.mxu0 0.0
    %238 = vmatpush1.msra.mxu0 0.0
    %239 = vmatprep.subr.mxu0 0.0
    %240 = vmatpush1.msra.mxu0 0.0
    %241 = vmatprep.subr.mxu0 0.0
    %242 = vmatpush1.msra.mxu0 0.0
    %243 = vmatprep.mubr.f32.mxu0 0.0
    %244 = vmatmul.mubr.f32.gmra.mrb[0].mxu0 %v177
    %v245 = vpop.f32.mrb[0].mxu0
    %v246 = vadd.f32 %v173, %v245
    %v247 = vpop.f32.mrb[0].mxu0
    %248 = vdwg.mxu0
    %v249 = vld [vmem:[#allocation2 + $0x24] sm:$0xff]
    %v251 = vsel %vm102, %v249, 0
    %253 = vmatprep.subr.mxu0 0.0
    %254 = vmatpush1.msra.mxu0 %v95
    %255 = vmatprep.subr.mxu0 0.0
    %256 = vmatpush1.msra.mxu0 %v96
    %257 = vmatprep.subr.mxu0 0.0
    %258 = vmatpush1.msra.mxu0 %v97
    %259 = vmatprep.subr.mxu0 0.0
    %260 = vmatpush1.msra.mxu0 %v98
    %261 = vmatprep.subr.mxu0 0.0
    %262 = vmatpush1.msra.mxu0 %v99
    %263 = vmatprep.subr.mxu0 0.0
    %264 = vmatpush1.msra.mxu0 %v100
    %265 = vmatprep.subr.mxu0 0.0
    %266 = vmatpush1.msra.mxu0 0.0
    %267 = vmatprep.subr.mxu0 0.0
    %268 = vmatpush1.msra.mxu0 0.0
    %269 = vmatprep.subr.mxu0 0.0
    %270 = vmatpush1.msra.mxu0 0.0
    %271 = vmatprep.subr.mxu0 0.0
    %272 = vmatpush1.msra.mxu0 0.0
    %273 = vmatprep.subr.mxu0 0.0
    %274 = vmatpush1.msra.mxu0 0.0
    %275 = vmatprep.subr.mxu0 0.0
    %276 = vmatpush1.msra.mxu0 0.0
    %277 = vmatprep.subr.mxu0 0.0
    %278 = vmatpush1.msra.mxu0 0.0
    %279 = vmatprep.subr.mxu0 0.0
    %280 = vmatpush1.msra.mxu0 0.0
    %281 = vmatprep.subr.mxu0 0.0
    %282 = vmatpush1.msra.mxu0 0.0
    %283 = vmatprep.subr.mxu0 0.0
    %284 = vmatpush1.msra.mxu0 0.0
    %285 = vmatprep.subr.mxu0 0.0
    %286 = vmatpush1.msra.mxu0 0.0
    %287 = vmatprep.subr.mxu0 0.0
    %288 = vmatpush1.msra.mxu0 0.0
    %289 = vmatprep.subr.mxu0 0.0
    %290 = vmatpush1.msra.mxu0 0.0
    %291 = vmatprep.subr.mxu0 0.0
    %292 = vmatpush1.msra.mxu0 0.0
    %293 = vmatprep.subr.mxu0 0.0
    %294 = vmatpush1.msra.mxu0 0.0
    %295 = vmatprep.subr.mxu0 0.0
    %296 = vmatpush1.msra.mxu0 0.0
    %297 = vmatprep.subr.mxu0 0.0
    %298 = vmatpush1.msra.mxu0 0.0
    %299 = vmatprep.subr.mxu0 0.0
    %300 = vmatpush1.msra.mxu0 0.0
    %301 = vmatprep.subr.mxu0 0.0
    %302 = vmatpush1.msra.mxu0 0.0
    %303 = vmatprep.subr.mxu0 0.0
    %304 = vmatpush1.msra.mxu0 0.0
    %305 = vmatprep.subr.mxu0 0.0
    %306 = vmatpush1.msra.mxu0 0.0
    %307 = vmatprep.subr.mxu0 0.0
    %308 = vmatpush1.msra.mxu0 0.0
    %309 = vmatprep.subr.mxu0 0.0
    %310 = vmatpush1.msra.mxu0 0.0
    %311 = vmatprep.subr.mxu0 0.0
    %312 = vmatpush1.msra.mxu0 0.0
    %313 = vmatprep.subr.mxu0 0.0
    %314 = vmatpush1.msra.mxu0 0.0
    %315 = vmatprep.subr.mxu0 0.0
    %316 = vmatpush1.msra.mxu0 0.0
    %317 = vmatprep.mubr.f32.mxu0 0.0
    %318 = vmatmul.mubr.f32.gmra.mrb[0].mxu0 %v251
    %v319 = vpop.f32.mrb[0].mxu0
    %v320 = vadd.f32 0.0, %v319
    %v321 = vpop.f32.mrb[0].mxu0
    %322 = vdwg.mxu0
    %v324 = vsel %vm102, %v94, 0
    %326 = vmatprep.subr.mxu0 0.0
    %327 = vmatpush1.msra.mxu0 %v87
    %328 = vmatprep.subr.mxu0 0.0
    %329 = vmatpush1.msra.mxu0 %v88
    %330 = vmatprep.subr.mxu0 0.0
    %331 = vmatpush1.msra.mxu0 %v89
    %332 = vmatprep.subr.mxu0 0.0
    %333 = vmatpush1.msra.mxu0 %v90
    %334 = vmatprep.subr.mxu0 0.0
    %335 = vmatpush1.msra.mxu0 %v91
    %336 = vmatprep.subr.mxu0 0.0
    %337 = vmatpush1.msra.mxu0 %v92
    %338 = vmatprep.subr.mxu0 0.0
    %339 = vmatpush1.msra.mxu0 0.0
    %340 = vmatprep.subr.mxu0 0.0
    %341 = vmatpush1.msra.mxu0 0.0
    %342 = vmatprep.subr.mxu0 0.0
    %343 = vmatpush1.msra.mxu0 0.0
    %344 = vmatprep.subr.mxu0 0.0
    %345 = vmatpush1.msra.mxu0 0.0
    %346 = vmatprep.subr.mxu0 0.0
    %347 = vmatpush1.msra.mxu0 0.0
    %348 = vmatprep.subr.mxu0 0.0
    %349 = vmatpush1.msra.mxu0 0.0
    %350 = vmatprep.subr.mxu0 0.0
    %351 = vmatpush1.msra.mxu0 0.0
    %352 = vmatprep.subr.mxu0 0.0
    %353 = vmatpush1.msra.mxu0 0.0
    %354 = vmatprep.subr.mxu0 0.0
    %355 = vmatpush1.msra.mxu0 0.0
    %356 = vmatprep.subr.mxu0 0.0
    %357 = vmatpush1.msra.mxu0 0.0
    %358 = vmatprep.subr.mxu0 0.0
    %359 = vmatpush1.msra.mxu0 0.0
    %360 = vmatprep.subr.mxu0 0.0
    %361 = vmatpush1.msra.mxu0 0.0
    %362 = vmatprep.subr.mxu0 0.0
    %363 = vmatpush1.msra.mxu0 0.0
    %364 = vmatprep.subr.mxu0 0.0
    %365 = vmatpush1.msra.mxu0 0.0
    %366 = vmatprep.subr.mxu0 0.0
    %367 = vmatpush1.msra.mxu0 0.0
    %368 = vmatprep.subr.mxu0 0.0
    %369 = vmatpush1.msra.mxu0 0.0
    %370 = vmatprep.subr.mxu0 0.0
    %371 = vmatpush1.msra.mxu0 0.0
    %372 = vmatprep.subr.mxu0 0.0
    %373 = vmatpush1.msra.mxu0 0.0
    %374 = vmatprep.subr.mxu0 0.0
    %375 = vmatpush1.msra.mxu0 0.0
    %376 = vmatprep.subr.mxu0 0.0
    %377 = vmatpush1.msra.mxu0 0.0
    %378 = vmatprep.subr.mxu0 0.0
    %379 = vmatpush1.msra.mxu0 0.0
    %380 = vmatprep.subr.mxu0 0.0
    %381 = vmatpush1.msra.mxu0 0.0
    %382 = vmatprep.subr.mxu0 0.0
    %383 = vmatpush1.msra.mxu0 0.0
    %384 = vmatprep.subr.mxu0 0.0
    %385 = vmatpush1.msra.mxu0 0.0
    %386 = vmatprep.subr.mxu0 0.0
    %387 = vmatpush1.msra.mxu0 0.0
    %388 = vmatprep.subr.mxu0 0.0
    %389 = vmatpush1.msra.mxu0 0.0
    %390 = vmatprep.mubr.f32.mxu0 0.0
    %391 = vmatmul.mubr.f32.gmra.mrb[0].mxu0 %v324
    %v392 = vpop.f32.mrb[0].mxu0
    %v393 = vadd.f32 %v320, %v392
    %v394 = vpop.f32.mrb[0].mxu0
    %395 = vdwg.mxu0
    %v396 = vld [vmem:[#allocation5 + $0x60] sm:$0xff]
    %v397 = vld [vmem:[#allocation5 + $0x68] sm:$0xff]
    %v398 = vld [vmem:[#allocation5 + $0x70] sm:$0xff]
    %v399 = vld [vmem:[#allocation5 + $0x78] sm:$0xff]
    %v400 = vld [vmem:[#allocation5 + $0x80] sm:$0xff]
    %v401 = vld [vmem:[#allocation5 + $0x88] sm:$0xff]
    %402 = vmatprep.subr.mxu0 0.0
    %403 = vmatpush1.msra.mxu0 %v396
    %404 = vmatprep.subr.mxu0 0.0
    %405 = vmatpush1.msra.mxu0 %v397
    %406 = vmatprep.subr.mxu0 0.0
    %407 = vmatpush1.msra.mxu0 %v398
    %408 = vmatprep.subr.mxu0 0.0
    %409 = vmatpush1.msra.mxu0 %v399
    %410 = vmatprep.subr.mxu0 0.0
    %411 = vmatpush1.msra.mxu0 %v400
    %412 = vmatprep.subr.mxu0 0.0
    %413 = vmatpush1.msra.mxu0 %v401
    %414 = vmatprep.subr.mxu0 0.0
    %415 = vmatpush1.msra.mxu0 0.0
    %416 = vmatprep.subr.mxu0 0.0
    %417 = vmatpush1.msra.mxu0 0.0
    %418 = vmatprep.subr.mxu0 0.0
    %419 = vmatpush1.msra.mxu0 0.0
    %420 = vmatprep.subr.mxu0 0.0
    %421 = vmatpush1.msra.mxu0 0.0
    %422 = vmatprep.subr.mxu0 0.0
    %423 = vmatpush1.msra.mxu0 0.0
    %424 = vmatprep.subr.mxu0 0.0
    %425 = vmatpush1.msra.mxu0 0.0
    %426 = vmatprep.subr.mxu0 0.0
    %427 = vmatpush1.msra.mxu0 0.0
    %428 = vmatprep.subr.mxu0 0.0
    %429 = vmatpush1.msra.mxu0 0.0
    %430 = vmatprep.subr.mxu0 0.0
    %431 = vmatpush1.msra.mxu0 0.0
    %432 = vmatprep.subr.mxu0 0.0
    %433 = vmatpush1.msra.mxu0 0.0
    %434 = vmatprep.subr.mxu0 0.0
    %435 = vmatpush1.msra.mxu0 0.0
    %436 = vmatprep.subr.mxu0 0.0
    %437 = vmatpush1.msra.mxu0 0.0
    %438 = vmatprep.subr.mxu0 0.0
    %439 = vmatpush1.msra.mxu0 0.0
    %440 = vmatprep.subr.mxu0 0.0
    %441 = vmatpush1.msra.mxu0 0.0
    %442 = vmatprep.subr.mxu0 0.0
    %443 = vmatpush1.msra.mxu0 0.0
    %444 = vmatprep.subr.mxu0 0.0
    %445 = vmatpush1.msra.mxu0 0.0
    %446 = vmatprep.subr.mxu0 0.0
    %447 = vmatpush1.msra.mxu0 0.0
    %448 = vmatprep.subr.mxu0 0.0
    %449 = vmatpush1.msra.mxu0 0.0
    %450 = vmatprep.subr.mxu0 0.0
    %451 = vmatpush1.msra.mxu0 0.0
    %452 = vmatprep.subr.mxu0 0.0
    %453 = vmatpush1.msra.mxu0 0.0
    %454 = vmatprep.subr.mxu0 0.0
    %455 = vmatpush1.msra.mxu0 0.0
    %456 = vmatprep.subr.mxu0 0.0
    %457 = vmatpush1.msra.mxu0 0.0
    %458 = vmatprep.subr.mxu0 0.0
    %459 = vmatpush1.msra.mxu0 0.0
    %460 = vmatprep.subr.mxu0 0.0
    %461 = vmatpush1.msra.mxu0 0.0
    %462 = vmatprep.subr.mxu0 0.0
    %463 = vmatpush1.msra.mxu0 0.0
    %464 = vmatprep.subr.mxu0 0.0
    %465 = vmatpush1.msra.mxu0 0.0
    %466 = vmatprep.mubr.f32.mxu0 0.0
    %467 = vmatmul.mubr.f32.gmra.mrb[0].mxu0 %v324
    %v468 = vpop.f32.mrb[0].mxu0
    %v469 = vadd.f32 0.0, %v468
    %v470 = vpop.f32.mrb[0].mxu0
    %471 = vdwg.mxu0
    %v472 = vadd.f32 %v246, %v469
    %v473 = vld [vmem:[#allocation2 + $0x2] sm:$0xff]
    %v475 = vsel %vm102, %v473, 0
    %477 = vmatprep.subr.mxu0 0.0
    %478 = vmatpush1.msra.mxu0 %v396
    %479 = vmatprep.subr.mxu0 0.0
    %480 = vmatpush1.msra.mxu0 %v397
    %481 = vmatprep.subr.mxu0 0.0
    %482 = vmatpush1.msra.mxu0 %v398
    %483 = vmatprep.subr.mxu0 0.0
    %484 = vmatpush1.msra.mxu0 %v399
    %485 = vmatprep.subr.mxu0 0.0
    %486 = vmatpush1.msra.mxu0 %v400
    %487 = vmatprep.subr.mxu0 0.0
    %488 = vmatpush1.msra.mxu0 %v401
    %489 = vmatprep.subr.mxu0 0.0
    %490 = vmatpush1.msra.mxu0 0.0
    %491 = vmatprep.subr.mxu0 0.0
    %492 = vmatpush1.msra.mxu0 0.0
    %493 = vmatprep.subr.mxu0 0.0
    %494 = vmatpush1.msra.mxu0 0.0
    %495 = vmatprep.subr.mxu0 0.0
    %496 = vmatpush1.msra.mxu0 0.0
    %497 = vmatprep.subr.mxu0 0.0
    %498 = vmatpush1.msra.mxu0 0.0
    %499 = vmatprep.subr.mxu0 0.0
    %500 = vmatpush1.msra.mxu0 0.0
    %501 = vmatprep.subr.mxu0 0.0
    %502 = vmatpush1.msra.mxu0 0.0
    %503 = vmatprep.subr.mxu0 0.0
    %504 = vmatpush1.msra.mxu0 0.0
    %505 = vmatprep.subr.mxu0 0.0
    %506 = vmatpush1.msra.mxu0 0.0
    %507 = vmatprep.subr.mxu0 0.0
    %508 = vmatpush1.msra.mxu0 0.0
    %509 = vmatprep.subr.mxu0 0.0
    %510 = vmatpush1.msra.mxu0 0.0
    %511 = vmatprep.subr.mxu0 0.0
    %512 = vmatpush1.msra.mxu0 0.0
    %513 = vmatprep.subr.mxu0 0.0
    %514 = vmatpush1.msra.mxu0 0.0
    %515 = vmatprep.subr.mxu0 0.0
    %516 = vmatpush1.msra.mxu0 0.0
    %517 = vmatprep.subr.mxu0 0.0
    %518 = vmatpush1.msra.mxu0 0.0
    %519 = vmatprep.subr.mxu0 0.0
    %520 = vmatpush1.msra.mxu0 0.0
    %521 = vmatprep.subr.mxu0 0.0
    %522 = vmatpush1.msra.mxu0 0.0
    %523 = vmatprep.subr.mxu0 0.0
    %524 = vmatpush1.msra.mxu0 0.0
    %525 = vmatprep.subr.mxu0 0.0
    %526 = vmatpush1.msra.mxu0 0.0
    %527 = vmatprep.subr.mxu0 0.0
    %528 = vmatpush1.msra.mxu0 0.0
    %529 = vmatprep.subr.mxu0 0.0
    %530 = vmatpush1.msra.mxu0 0.0
    %531 = vmatprep.subr.mxu0 0.0
    %532 = vmatpush1.msra.mxu0 0.0
    %533 = vmatprep.subr.mxu0 0.0
    %534 = vmatpush1.msra.mxu0 0.0
    %535 = vmatprep.subr.mxu0 0.0
    %536 = vmatpush1.msra.mxu0 0.0
    %537 = vmatprep.subr.mxu0 0.0
    %538 = vmatpush1.msra.mxu0 0.0
    %539 = vmatprep.subr.mxu0 0.0
    %540 = vmatpush1.msra.mxu0 0.0
    %541 = vmatprep.mubr.f32.mxu0 0.0
    %542 = vmatmul.mubr.f32.gmra.mrb[0].mxu0 %v475
    %v543 = vpop.f32.mrb[0].mxu0
    %v544 = vadd.f32 0.0, %v543
    %v545 = vpop.f32.mrb[0].mxu0
    %546 = vdwg.mxu0
    %v547 = vadd.f32 %v393, %v544
    %v548 = vld [vmem:[#allocation5 + $0x90] sm:$0xff]
    %v549 = vld [vmem:[#allocation5 + $0x98] sm:$0xff]
    %v550 = vld [vmem:[#allocation5 + $0xa0] sm:$0xff]
    %v551 = vld [vmem:[#allocation5 + $0xa8] sm:$0xff]
    %v552 = vld [vmem:[#allocation5 + $0xb0] sm:$0xff]
    %v553 = vld [vmem:[#allocation5 + $0xb8] sm:$0xff]
    %554 = vmatprep.subr.mxu0 0.0
    %555 = vmatpush1.msra.mxu0 %v548
    %556 = vmatprep.subr.mxu0 0.0
    %557 = vmatpush1.msra.mxu0 %v549
    %558 = vmatprep.subr.mxu0 0.0
    %559 = vmatpush1.msra.mxu0 %v550
    %560 = vmatprep.subr.mxu0 0.0
    %561 = vmatpush1.msra.mxu0 %v551
    %562 = vmatprep.subr.mxu0 0.0
    %563 = vmatpush1.msra.mxu0 %v552
    %564 = vmatprep.subr.mxu0 0.0
    %565 = vmatpush1.msra.mxu0 %v553
    %566 = vmatprep.subr.mxu0 0.0
    %567 = vmatpush1.msra.mxu0 0.0
    %568 = vmatprep.subr.mxu0 0.0
    %569 = vmatpush1.msra.mxu0 0.0
    %570 = vmatprep.subr.mxu0 0.0
    %571 = vmatpush1.msra.mxu0 0.0
    %572 = vmatprep.subr.mxu0 0.0
    %573 = vmatpush1.msra.mxu0 0.0
    %574 = vmatprep.subr.mxu0 0.0
    %575 = vmatpush1.msra.mxu0 0.0
    %576 = vmatprep.subr.mxu0 0.0
    %577 = vmatpush1.msra.mxu0 0.0
    %578 = vmatprep.subr.mxu0 0.0
    %579 = vmatpush1.msra.mxu0 0.0
    %580 = vmatprep.subr.mxu0 0.0
    %581 = vmatpush1.msra.mxu0 0.0
    %582 = vmatprep.subr.mxu0 0.0
    %583 = vmatpush1.msra.mxu0 0.0
    %584 = vmatprep.subr.mxu0 0.0
    %585 = vmatpush1.msra.mxu0 0.0
    %586 = vmatprep.subr.mxu0 0.0
    %587 = vmatpush1.msra.mxu0 0.0
    %588 = vmatprep.subr.mxu0 0.0
    %589 = vmatpush1.msra.mxu0 0.0
    %590 = vmatprep.subr.mxu0 0.0
    %591 = vmatpush1.msra.mxu0 0.0
    %592 = vmatprep.subr.mxu0 0.0
    %593 = vmatpush1.msra.mxu0 0.0
    %594 = vmatprep.subr.mxu0 0.0
    %595 = vmatpush1.msra.mxu0 0.0
    %596 = vmatprep.subr.mxu0 0.0
    %597 = vmatpush1.msra.mxu0 0.0
    %598 = vmatprep.subr.mxu0 0.0
    %599 = vmatpush1.msra.mxu0 0.0
    %600 = vmatprep.subr.mxu0 0.0
    %601 = vmatpush1.msra.mxu0 0.0
    %602 = vmatprep.subr.mxu0 0.0
    %603 = vmatpush1.msra.mxu0 0.0
    %604 = vmatprep.subr.mxu0 0.0
    %605 = vmatpush1.msra.mxu0 0.0
    %606 = vmatprep.subr.mxu0 0.0
    %607 = vmatpush1.msra.mxu0 0.0
    %608 = vmatprep.subr.mxu0 0.0
    %609 = vmatpush1.msra.mxu0 0.0
    %610 = vmatprep.subr.mxu0 0.0
    %611 = vmatpush1.msra.mxu0 0.0
    %612 = vmatprep.subr.mxu0 0.0
    %613 = vmatpush1.msra.mxu0 0.0
    %614 = vmatprep.subr.mxu0 0.0
    %615 = vmatpush1.msra.mxu0 0.0
    %616 = vmatprep.subr.mxu0 0.0
    %617 = vmatpush1.msra.mxu0 0.0
    %618 = vmatprep.mubr.f32.mxu0 0.0
    %619 = vmatmul.mubr.f32.gmra.mrb[0].mxu0 %v251
    %v620 = vpop.f32.mrb[0].mxu0
    %v621 = vadd.f32 0.0, %v620
    %v622 = vpop.f32.mrb[0].mxu0
    %623 = vdwg.mxu0
    %v624 = vadd.f32 %v472, %v621
    %v625 = vld [vmem:[#allocation2 + $0xe] sm:$0xff]
    %v627 = vsel %vm102, %v625, 0
    %629 = vmatprep.subr.mxu0 0.0
    %630 = vmatpush1.msra.mxu0 %v548
    %631 = vmatprep.subr.mxu0 0.0
    %632 = vmatpush1.msra.mxu0 %v549
    %633 = vmatprep.subr.mxu0 0.0
    %634 = vmatpush1.msra.mxu0 %v550
    %635 = vmatprep.subr.mxu0 0.0
    %636 = vmatpush1.msra.mxu0 %v551
    %637 = vmatprep.subr.mxu0 0.0
    %638 = vmatpush1.msra.mxu0 %v552
    %639 = vmatprep.subr.mxu0 0.0
    %640 = vmatpush1.msra.mxu0 %v553
    %641 = vmatprep.subr.mxu0 0.0
    %642 = vmatpush1.msra.mxu0 0.0
    %643 = vmatprep.subr.mxu0 0.0
    %644 = vmatpush1.msra.mxu0 0.0
    %645 = vmatprep.subr.mxu0 0.0
    %646 = vmatpush1.msra.mxu0 0.0
    %647 = vmatprep.subr.mxu0 0.0
    %648 = vmatpush1.msra.mxu0 0.0
    %649 = vmatprep.subr.mxu0 0.0
    %650 = vmatpush1.msra.mxu0 0.0
    %651 = vmatprep.subr.mxu0 0.0
    %652 = vmatpush1.msra.mxu0 0.0
    %653 = vmatprep.subr.mxu0 0.0
    %654 = vmatpush1.msra.mxu0 0.0
    %655 = vmatprep.subr.mxu0 0.0
    %656 = vmatpush1.msra.mxu0 0.0
    %657 = vmatprep.subr.mxu0 0.0
    %658 = vmatpush1.msra.mxu0 0.0
    %659 = vmatprep.subr.mxu0 0.0
    %660 = vmatpush1.msra.mxu0 0.0
    %661 = vmatprep.subr.mxu0 0.0
    %662 = vmatpush1.msra.mxu0 0.0
    %663 = vmatprep.subr.mxu0 0.0
    %664 = vmatpush1.msra.mxu0 0.0
    %665 = vmatprep.subr.mxu0 0.0
    %666 = vmatpush1.msra.mxu0 0.0
    %667 = vmatprep.subr.mxu0 0.0
    %668 = vmatpush1.msra.mxu0 0.0
    %669 = vmatprep.subr.mxu0 0.0
    %670 = vmatpush1.msra.mxu0 0.0
    %671 = vmatprep.subr.mxu0 0.0
    %672 = vmatpush1.msra.mxu0 0.0
    %673 = vmatprep.subr.mxu0 0.0
    %674 = vmatpush1.msra.mxu0 0.0
    %675 = vmatprep.subr.mxu0 0.0
    %676 = vmatpush1.msra.mxu0 0.0
    %677 = vmatprep.subr.mxu0 0.0
    %678 = vmatpush1.msra.mxu0 0.0
    %679 = vmatprep.subr.mxu0 0.0
    %680 = vmatpush1.msra.mxu0 0.0
    %681 = vmatprep.subr.mxu0 0.0
    %682 = vmatpush1.msra.mxu0 0.0
    %683 = vmatprep.subr.mxu0 0.0
    %684 = vmatpush1.msra.mxu0 0.0
    %685 = vmatprep.subr.mxu0 0.0
    %686 = vmatpush1.msra.mxu0 0.0
    %687 = vmatprep.subr.mxu0 0.0
    %688 = vmatpush1.msra.mxu0 0.0
    %689 = vmatprep.subr.mxu0 0.0
    %690 = vmatpush1.msra.mxu0 0.0
    %691 = vmatprep.subr.mxu0 0.0
    %692 = vmatpush1.msra.mxu0 0.0
    %693 = vmatprep.mubr.f32.mxu0 0.0
    %694 = vmatmul.mubr.f32.gmra.mrb[0].mxu0 %v627
    %v695 = vpop.f32.mrb[0].mxu0
    %v696 = vadd.f32 0.0, %v695
    %v697 = vpop.f32.mrb[0].mxu0
    %698 = vdwg.mxu0
    %v699 = vadd.f32 %v547, %v696
    %v700 = vld [vmem:[#allocation5 + $0xc0] sm:$0xff]
    %v701 = vld [vmem:[#allocation5 + $0xc8] sm:$0xff]
    %v702 = vld [vmem:[#allocation5 + $0xd0] sm:$0xff]
    %v703 = vld [vmem:[#allocation5 + $0xd8] sm:$0xff]
    %v704 = vld [vmem:[#allocation5 + $0xe0] sm:$0xff]
    %v705 = vld [vmem:[#allocation5 + $0xe8] sm:$0xff]
    %706 = vmatprep.subr.mxu0 0.0
    %707 = vmatpush1.msra.mxu0 %v700
    %708 = vmatprep.subr.mxu0 0.0
    %709 = vmatpush1.msra.mxu0 %v701
    %710 = vmatprep.subr.mxu0 0.0
    %711 = vmatpush1.msra.mxu0 %v702
    %712 = vmatprep.subr.mxu0 0.0
    %713 = vmatpush1.msra.mxu0 %v703
    %714 = vmatprep.subr.mxu0 0.0
    %715 = vmatpush1.msra.mxu0 %v704
    %716 = vmatprep.subr.mxu0 0.0
    %717 = vmatpush1.msra.mxu0 %v705
    %718 = vmatprep.subr.mxu0 0.0
    %719 = vmatpush1.msra.mxu0 0.0
    %720 = vmatprep.subr.mxu0 0.0
    %721 = vmatpush1.msra.mxu0 0.0
    %722 = vmatprep.subr.mxu0 0.0
    %723 = vmatpush1.msra.mxu0 0.0
    %724 = vmatprep.subr.mxu0 0.0
    %725 = vmatpush1.msra.mxu0 0.0
    %726 = vmatprep.subr.mxu0 0.0
    %727 = vmatpush1.msra.mxu0 0.0
    %728 = vmatprep.subr.mxu0 0.0
    %729 = vmatpush1.msra.mxu0 0.0
    %730 = vmatprep.subr.mxu0 0.0
    %731 = vmatpush1.msra.mxu0 0.0
    %732 = vmatprep.subr.mxu0 0.0
    %733 = vmatpush1.msra.mxu0 0.0
    %734 = vmatprep.subr.mxu0 0.0
    %735 = vmatpush1.msra.mxu0 0.0
    %736 = vmatprep.subr.mxu0 0.0
    %737 = vmatpush1.msra.mxu0 0.0
    %738 = vmatprep.subr.mxu0 0.0
    %739 = vmatpush1.msra.mxu0 0.0
    %740 = vmatprep.subr.mxu0 0.0
    %741 = vmatpush1.msra.mxu0 0.0
    %742 = vmatprep.subr.mxu0 0.0
    %743 = vmatpush1.msra.mxu0 0.0
    %744 = vmatprep.subr.mxu0 0.0
    %745 = vmatpush1.msra.mxu0 0.0
    %746 = vmatprep.subr.mxu0 0.0
    %747 = vmatpush1.msra.mxu0 0.0
    %748 = vmatprep.subr.mxu0 0.0
    %749 = vmatpush1.msra.mxu0 0.0
    %750 = vmatprep.subr.mxu0 0.0
    %751 = vmatpush1.msra.mxu0 0.0
    %752 = vmatprep.subr.mxu0 0.0
    %753 = vmatpush1.msra.mxu0 0.0
    %754 = vmatprep.subr.mxu0 0.0
    %755 = vmatpush1.msra.mxu0 0.0
    %756 = vmatprep.subr.mxu0 0.0
    %757 = vmatpush1.msra.mxu0 0.0
    %758 = vmatprep.subr.mxu0 0.0
    %759 = vmatpush1.msra.mxu0 0.0
    %760 = vmatprep.subr.mxu0 0.0
    %761 = vmatpush1.msra.mxu0 0.0
    %762 = vmatprep.subr.mxu0 0.0
    %763 = vmatpush1.msra.mxu0 0.0
    %764 = vmatprep.subr.mxu0 0.0
    %765 = vmatpush1.msra.mxu0 0.0
    %766 = vmatprep.subr.mxu0 0.0
    %767 = vmatpush1.msra.mxu0 0.0
    %768 = vmatprep.subr.mxu0 0.0
    %769 = vmatpush1.msra.mxu0 0.0
    %770 = vmatprep.mubr.f32.mxu0 0.0
    %771 = vmatmul.mubr.f32.gmra.mrb[0].mxu0 %v475
    %v772 = vpop.f32.mrb[0].mxu0
    %v773 = vadd.f32 0.0, %v772
    %v774 = vpop.f32.mrb[0].mxu0
    %775 = vdwg.mxu0
    %v776 = vadd.f32 %v624, %v773
    %v777 = vld [vmem:[#allocation2 + $0x1a] sm:$0xff]
    %v779 = vsel %vm102, %v777, 0
    %781 = vmatprep.subr.mxu0 0.0
    %782 = vmatpush1.msra.mxu0 %v700
    %783 = vmatprep.subr.mxu0 0.0
    %784 = vmatpush1.msra.mxu0 %v701
    %785 = vmatprep.subr.mxu0 0.0
    %786 = vmatpush1.msra.mxu0 %v702
    %787 = vmatprep.subr.mxu0 0.0
    %788 = vmatpush1.msra.mxu0 %v703
    %789 = vmatprep.subr.mxu0 0.0
    %790 = vmatpush1.msra.mxu0 %v704
    %791 = vmatprep.subr.mxu0 0.0
    %792 = vmatpush1.msra.mxu0 %v705
    %793 = vmatprep.subr.mxu0 0.0
    %794 = vmatpush1.msra.mxu0 0.0
    %795 = vmatprep.subr.mxu0 0.0
    %796 = vmatpush1.msra.mxu0 0.0
    %797 = vmatprep.subr.mxu0 0.0
    %798 = vmatpush1.msra.mxu0 0.0
    %799 = vmatprep.subr.mxu0 0.0
    %800 = vmatpush1.msra.mxu0 0.0
    %801 = vmatprep.subr.mxu0 0.0
    %802 = vmatpush1.msra.mxu0 0.0
    %803 = vmatprep.subr.mxu0 0.0
    %804 = vmatpush1.msra.mxu0 0.0
    %805 = vmatprep.subr.mxu0 0.0
    %806 = vmatpush1.msra.mxu0 0.0
    %807 = vmatprep.subr.mxu0 0.0
    %808 = vmatpush1.msra.mxu0 0.0
    %809 = vmatprep.subr.mxu0 0.0
    %810 = vmatpush1.msra.mxu0 0.0
    %811 = vmatprep.subr.mxu0 0.0
    %812 = vmatpush1.msra.mxu0 0.0
    %813 = vmatprep.subr.mxu0 0.0
    %814 = vmatpush1.msra.mxu0 0.0
    %815 = vmatprep.subr.mxu0 0.0
    %816 = vmatpush1.msra.mxu0 0.0
    %817 = vmatprep.subr.mxu0 0.0
    %818 = vmatpush1.msra.mxu0 0.0
    %819 = vmatprep.subr.mxu0 0.0
    %820 = vmatpush1.msra.mxu0 0.0
    %821 = vmatprep.subr.mxu0 0.0
    %822 = vmatpush1.msra.mxu0 0.0
    %823 = vmatprep.subr.mxu0 0.0
    %824 = vmatpush1.msra.mxu0 0.0
    %825 = vmatprep.subr.mxu0 0.0
    %826 = vmatpush1.msra.mxu0 0.0
    %827 = vmatprep.subr.mxu0 0.0
    %828 = vmatpush1.msra.mxu0 0.0
    %829 = vmatprep.subr.mxu0 0.0
    %830 = vmatpush1.msra.mxu0 0.0
    %831 = vmatprep.subr.mxu0 0.0
    %832 = vmatpush1.msra.mxu0 0.0
    %833 = vmatprep.subr.mxu0 0.0
    %834 = vmatpush1.msra.mxu0 0.0
    %835 = vmatprep.subr.mxu0 0.0
    %836 = vmatpush1.msra.mxu0 0.0
    %837 = vmatprep.subr.mxu0 0.0
    %838 = vmatpush1.msra.mxu0 0.0
    %839 = vmatprep.subr.mxu0 0.0
    %840 = vmatpush1.msra.mxu0 0.0
    %841 = vmatprep.subr.mxu0 0.0
    %842 = vmatpush1.msra.mxu0 0.0
    %843 = vmatprep.subr.mxu0 0.0
    %844 = vmatpush1.msra.mxu0 0.0
    %845 = vmatprep.mubr.f32.mxu0 0.0
    %846 = vmatmul.mubr.f32.gmra.mrb[0].mxu0 %v779
    %v847 = vpop.f32.mrb[0].mxu0
    %v848 = vadd.f32 0.0, %v847
    %v849 = vpop.f32.mrb[0].mxu0
    %850 = vdwg.mxu0
    %v851 = vadd.f32 %v699, %v848
    %v852 = vld [vmem:[#allocation5 + $0xf0] sm:$0xff]
    %v853 = vld [vmem:[#allocation5 + $0xf8] sm:$0xff]
    %v854 = vld [vmem:[#allocation5 + $0x100] sm:$0xff]
    %v855 = vld [vmem:[#allocation5 + $0x108] sm:$0xff]
    %v856 = vld [vmem:[#allocation5 + $0x110] sm:$0xff]
    %v857 = vld [vmem:[#allocation5 + $0x118] sm:$0xff]
    %858 = vmatprep.subr.mxu0 0.0
    %859 = vmatpush1.msra.mxu0 %v852
    %860 = vmatprep.subr.mxu0 0.0
    %861 = vmatpush1.msra.mxu0 %v853
    %862 = vmatprep.subr.mxu0 0.0
    %863 = vmatpush1.msra.mxu0 %v854
    %864 = vmatprep.subr.mxu0 0.0
    %865 = vmatpush1.msra.mxu0 %v855
    %866 = vmatprep.subr.mxu0 0.0
    %867 = vmatpush1.msra.mxu0 %v856
    %868 = vmatprep.subr.mxu0 0.0
    %869 = vmatpush1.msra.mxu0 %v857
    %870 = vmatprep.subr.mxu0 0.0
    %871 = vmatpush1.msra.mxu0 0.0
    %872 = vmatprep.subr.mxu0 0.0
    %873 = vmatpush1.msra.mxu0 0.0
    %874 = vmatprep.subr.mxu0 0.0
    %875 = vmatpush1.msra.mxu0 0.0
    %876 = vmatprep.subr.mxu0 0.0
    %877 = vmatpush1.msra.mxu0 0.0
    %878 = vmatprep.subr.mxu0 0.0
    %879 = vmatpush1.msra.mxu0 0.0
    %880 = vmatprep.subr.mxu0 0.0
    %881 = vmatpush1.msra.mxu0 0.0
    %882 = vmatprep.subr.mxu0 0.0
    %883 = vmatpush1.msra.mxu0 0.0
    %884 = vmatprep.subr.mxu0 0.0
    %885 = vmatpush1.msra.mxu0 0.0
    %886 = vmatprep.subr.mxu0 0.0
    %887 = vmatpush1.msra.mxu0 0.0
    %888 = vmatprep.subr.mxu0 0.0
    %889 = vmatpush1.msra.mxu0 0.0
    %890 = vmatprep.subr.mxu0 0.0
    %891 = vmatpush1.msra.mxu0 0.0
    %892 = vmatprep.subr.mxu0 0.0
    %893 = vmatpush1.msra.mxu0 0.0
    %894 = vmatprep.subr.mxu0 0.0
    %895 = vmatpush1.msra.mxu0 0.0
    %896 = vmatprep.subr.mxu0 0.0
    %897 = vmatpush1.msra.mxu0 0.0
    %898 = vmatprep.subr.mxu0 0.0
    %899 = vmatpush1.msra.mxu0 0.0
    %900 = vmatprep.subr.mxu0 0.0
    %901 = vmatpush1.msra.mxu0 0.0
    %902 = vmatprep.subr.mxu0 0.0
    %903 = vmatpush1.msra.mxu0 0.0
    %904 = vmatprep.subr.mxu0 0.0
    %905 = vmatpush1.msra.mxu0 0.0
    %906 = vmatprep.subr.mxu0 0.0
    %907 = vmatpush1.msra.mxu0 0.0
    %908 = vmatprep.subr.mxu0 0.0
    %909 = vmatpush1.msra.mxu0 0.0
    %910 = vmatprep.subr.mxu0 0.0
    %911 = vmatpush1.msra.mxu0 0.0
    %912 = vmatprep.subr.mxu0 0.0
    %913 = vmatpush1.msra.mxu0 0.0
    %914 = vmatprep.subr.mxu0 0.0
    %915 = vmatpush1.msra.mxu0 0.0
    %916 = vmatprep.subr.mxu0 0.0
    %917 = vmatpush1.msra.mxu0 0.0
    %918 = vmatprep.subr.mxu0 0.0
    %919 = vmatpush1.msra.mxu0 0.0
    %920 = vmatprep.subr.mxu0 0.0
    %921 = vmatpush1.msra.mxu0 0.0
    %922 = vmatprep.mubr.f32.mxu0 0.0
    %923 = vmatmul.mubr.f32.gmra.mrb[0].mxu0 %v627
    %v924 = vpop.f32.mrb[0].mxu0
    %v925 = vadd.f32 0.0, %v924
    %v926 = vpop.f32.mrb[0].mxu0
    %927 = vdwg.mxu0
    %v928 = vadd.f32 %v776, %v925
    %v929 = vld [vmem:[#allocation2 + $0x26] sm:$0xff]
    %v931 = vsel %vm102, %v929, 0
    %933 = vmatprep.subr.mxu0 0.0
    %934 = vmatpush1.msra.mxu0 %v852
    %935 = vmatprep.subr.mxu0 0.0
    %936 = vmatpush1.msra.mxu0 %v853
    %937 = vmatprep.subr.mxu0 0.0
    %938 = vmatpush1.msra.mxu0 %v854
    %939 = vmatprep.subr.mxu0 0.0
    %940 = vmatpush1.msra.mxu0 %v855
    %941 = vmatprep.subr.mxu0 0.0
    %942 = vmatpush1.msra.mxu0 %v856
    %943 = vmatprep.subr.mxu0 0.0
    %944 = vmatpush1.msra.mxu0 %v857
    %945 = vmatprep.subr.mxu0 0.0
    %946 = vmatpush1.msra.mxu0 0.0
    %947 = vmatprep.subr.mxu0 0.0
    %948 = vmatpush1.msra.mxu0 0.0
    %949 = vmatprep.subr.mxu0 0.0
    %950 = vmatpush1.msra.mxu0 0.0
    %951 = vmatprep.subr.mxu0 0.0
    %952 = vmatpush1.msra.mxu0 0.0
    %953 = vmatprep.subr.mxu0 0.0
    %954 = vmatpush1.msra.mxu0 0.0
    %955 = vmatprep.subr.mxu0 0.0
    %956 = vmatpush1.msra.mxu0 0.0
    %957 = vmatprep.subr.mxu0 0.0
    %958 = vmatpush1.msra.mxu0 0.0
    %959 = vmatprep.subr.mxu0 0.0
    %960 = vmatpush1.msra.mxu0 0.0
    %961 = vmatprep.subr.mxu0 0.0
    %962 = vmatpush1.msra.mxu0 0.0
    %963 = vmatprep.subr.mxu0 0.0
    %964 = vmatpush1.msra.mxu0 0.0
    %965 = vmatprep.subr.mxu0 0.0
    %966 = vmatpush1.msra.mxu0 0.0
    %967 = vmatprep.subr.mxu0 0.0
    %968 = vmatpush1.msra.mxu0 0.0
    %969 = vmatprep.subr.mxu0 0.0
    %970 = vmatpush1.msra.mxu0 0.0
    %971 = vmatprep.subr.mxu0 0.0
    %972 = vmatpush1.msra.mxu0 0.0
    %973 = vmatprep.subr.mxu0 0.0
    %974 = vmatpush1.msra.mxu0 0.0
    %975 = vmatprep.subr.mxu0 0.0
    %976 = vmatpush1.msra.mxu0 0.0
    %977 = vmatprep.subr.mxu0 0.0
    %978 = vmatpush1.msra.mxu0 0.0
    %979 = vmatprep.subr.mxu0 0.0
    %980 = vmatpush1.msra.mxu0 0.0
    %981 = vmatprep.subr.mxu0 0.0
    %982 = vmatpush1.msra.mxu0 0.0
    %983 = vmatprep.subr.mxu0 0.0
    %984 = vmatpush1.msra.mxu0 0.0
    %985 = vmatprep.subr.mxu0 0.0
    %986 = vmatpush1.msra.mxu0 0.0
    %987 = vmatprep.subr.mxu0 0.0
    %988 = vmatpush1.msra.mxu0 0.0
    %989 = vmatprep.subr.mxu0 0.0
    %990 = vmatpush1.msra.mxu0 0.0
    %991 = vmatprep.subr.mxu0 0.0
    %992 = vmatpush1.msra.mxu0 0.0
    %993 = vmatprep.subr.mxu0 0.0
    %994 = vmatpush1.msra.mxu0 0.0
    %995 = vmatprep.subr.mxu0 0.0
    %996 = vmatpush1.msra.mxu0 0.0
    %997 = vmatprep.mubr.f32.mxu0 0.0
    %998 = vmatmul.mubr.f32.gmra.mrb[0].mxu0 %v931
    %v999 = vpop.f32.mrb[0].mxu0
    %v1000 = vadd.f32 0.0, %v999
    %v1001 = vpop.f32.mrb[0].mxu0
    %1002 = vdwg.mxu0
    %v1003 = vadd.f32 %v851, %v1000
    %v1004 = vld [vmem:[#allocation5 + $0x120] sm:$0xff]
    %v1005 = vld [vmem:[#allocation5 + $0x128] sm:$0xff]
    %v1006 = vld [vmem:[#allocation5 + $0x130] sm:$0xff]
    %v1007 = vld [vmem:[#allocation5 + $0x138] sm:$0xff]
    %v1008 = vld [vmem:[#allocation5 + $0x140] sm:$0xff]
    %v1009 = vld [vmem:[#allocation5 + $0x148] sm:$0xff]
    %1010 = vmatprep.subr.mxu0 0.0
    %1011 = vmatpush1.msra.mxu0 %v1004
    %1012 = vmatprep.subr.mxu0 0.0
    %1013 = vmatpush1.msra.mxu0 %v1005
    %1014 = vmatprep.subr.mxu0 0.0
    %1015 = vmatpush1.msra.mxu0 %v1006
    %1016 = vmatprep.subr.mxu0 0.0
    %1017 = vmatpush1.msra.mxu0 %v1007
    %1018 = vmatprep.subr.mxu0 0.0
    %1019 = vmatpush1.msra.mxu0 %v1008
    %1020 = vmatprep.subr.mxu0 0.0
    %1021 = vmatpush1.msra.mxu0 %v1009
    %1022 = vmatprep.subr.mxu0 0.0
    %1023 = vmatpush1.msra.mxu0 0.0
    %1024 = vmatprep.subr.mxu0 0.0
    %1025 = vmatpush1.msra.mxu0 0.0
    %1026 = vmatprep.subr.mxu0 0.0
    %1027 = vmatpush1.msra.mxu0 0.0
    %1028 = vmatprep.subr.mxu0 0.0
    %1029 = vmatpush1.msra.mxu0 0.0
    %1030 = vmatprep.subr.mxu0 0.0
    %1031 = vmatpush1.msra.mxu0 0.0
    %1032 = vmatprep.subr.mxu0 0.0
    %1033 = vmatpush1.msra.mxu0 0.0
    %1034 = vmatprep.subr.mxu0 0.0
    %1035 = vmatpush1.msra.mxu0 0.0
    %1036 = vmatprep.subr.mxu0 0.0
    %1037 = vmatpush1.msra.mxu0 0.0
    %1038 = vmatprep.subr.mxu0 0.0
    %1039 = vmatpush1.msra.mxu0 0.0
    %1040 = vmatprep.subr.mxu0 0.0
    %1041 = vmatpush1.msra.mxu0 0.0
    %1042 = vmatprep.subr.mxu0 0.0
    %1043 = vmatpush1.msra.mxu0 0.0
    %1044 = vmatprep.subr.mxu0 0.0
    %1045 = vmatpush1.msra.mxu0 0.0
    %1046 = vmatprep.subr.mxu0 0.0
    %1047 = vmatpush1.msra.mxu0 0.0
    %1048 = vmatprep.subr.mxu0 0.0
    %1049 = vmatpush1.msra.mxu0 0.0
    %1050 = vmatprep.subr.mxu0 0.0
    %1051 = vmatpush1.msra.mxu0 0.0
    %1052 = vmatprep.subr.mxu0 0.0
    %1053 = vmatpush1.msra.mxu0 0.0
    %1054 = vmatprep.subr.mxu0 0.0
    %1055 = vmatpush1.msra.mxu0 0.0
    %1056 = vmatprep.subr.mxu0 0.0
    %1057 = vmatpush1.msra.mxu0 0.0
    %1058 = vmatprep.subr.mxu0 0.0
    %1059 = vmatpush1.msra.mxu0 0.0
    %1060 = vmatprep.subr.mxu0 0.0
    %1061 = vmatpush1.msra.mxu0 0.0
    %1062 = vmatprep.subr.mxu0 0.0
    %1063 = vmatpush1.msra.mxu0 0.0
    %1064 = vmatprep.subr.mxu0 0.0
    %1065 = vmatpush1.msra.mxu0 0.0
    %1066 = vmatprep.subr.mxu0 0.0
    %1067 = vmatpush1.msra.mxu0 0.0
    %1068 = vmatprep.subr.mxu0 0.0
    %1069 = vmatpush1.msra.mxu0 0.0
    %1070 = vmatprep.subr.mxu0 0.0
    %1071 = vmatpush1.msra.mxu0 0.0
    %1072 = vmatprep.subr.mxu0 0.0
    %1073 = vmatpush1.msra.mxu0 0.0
    %1074 = vmatprep.mubr.f32.mxu0 0.0
    %1075 = vmatmul.mubr.f32.gmra.mrb[0].mxu0 %v779
    %v1076 = vpop.f32.mrb[0].mxu0
    %v1077 = vadd.f32 0.0, %v1076
    %v1078 = vpop.f32.mrb[0].mxu0
    %1079 = vdwg.mxu0
    %v1080 = vadd.f32 %v928, %v1077
    %v1081 = vld [vmem:[#allocation2 + $0x4] sm:$0xff]
    %v1083 = vsel %vm102, %v1081, 0
    %1085 = vmatprep.subr.mxu0 0.0
    %1086 = vmatpush1.msra.mxu0 %v1004
    %1087 = vmatprep.subr.mxu0 0.0
    %1088 = vmatpush1.msra.mxu0 %v1005
    %1089 = vmatprep.subr.mxu0 0.0
    %1090 = vmatpush1.msra.mxu0 %v1006
    %1091 = vmatprep.subr.mxu0 0.0
    %1092 = vmatpush1.msra.mxu0 %v1007
    %1093 = vmatprep.subr.mxu0 0.0
    %1094 = vmatpush1.msra.mxu0 %v1008
    %1095 = vmatprep.subr.mxu0 0.0
    %1096 = vmatpush1.msra.mxu0 %v1009
    %1097 = vmatprep.subr.mxu0 0.0
    %1098 = vmatpush1.msra.mxu0 0.0
    %1099 = vmatprep.subr.mxu0 0.0
    %1100 = vmatpush1.msra.mxu0 0.0
    %1101 = vmatprep.subr.mxu0 0.0
    %1102 = vmatpush1.msra.mxu0 0.0
    %1103 = vmatprep.subr.mxu0 0.0
    %1104 = vmatpush1.msra.mxu0 0.0
    %1105 = vmatprep.subr.mxu0 0.0
    %1106 = vmatpush1.msra.mxu0 0.0
    %1107 = vmatprep.subr.mxu0 0.0
    %1108 = vmatpush1.msra.mxu0 0.0
    %1109 = vmatprep.subr.mxu0 0.0
    %1110 = vmatpush1.msra.mxu0 0.0
    %1111 = vmatprep.subr.mxu0 0.0
    %1112 = vmatpush1.msra.mxu0 0.0
    %1113 = vmatprep.subr.mxu0 0.0
    %1114 = vmatpush1.msra.mxu0 0.0
    %1115 = vmatprep.subr.mxu0 0.0
    %1116 = vmatpush1.msra.mxu0 0.0
    %1117 = vmatprep.subr.mxu0 0.0
    %1118 = vmatpush1.msra.mxu0 0.0
    %1119 = vmatprep.subr.mxu0 0.0
    %1120 = vmatpush1.msra.mxu0 0.0
    %1121 = vmatprep.subr.mxu0 0.0
    %1122 = vmatpush1.msra.mxu0 0.0
    %1123 = vmatprep.subr.mxu0 0.0
    %1124 = vmatpush1.msra.mxu0 0.0
    %1125 = vmatprep.subr.mxu0 0.0
    %1126 = vmatpush1.msra.mxu0 0.0
    %1127 = vmatprep.subr.mxu0 0.0
    %1128 = vmatpush1.msra.mxu0 0.0
    %1129 = vmatprep.subr.mxu0 0.0
    %1130 = vmatpush1.msra.mxu0 0.0
    %1131 = vmatprep.subr.mxu0 0.0
    %1132 = vmatpush1.msra.mxu0 0.0
    %1133 = vmatprep.subr.mxu0 0.0
    %1134 = vmatpush1.msra.mxu0 0.0
    %1135 = vmatprep.subr.mxu0 0.0
    %1136 = vmatpush1.msra.mxu0 0.0
    %1137 = vmatprep.subr.mxu0 0.0
    %1138 = vmatpush1.msra.mxu0 0.0
    %1139 = vmatprep.subr.mxu0 0.0
    %1140 = vmatpush1.msra.mxu0 0.0
    %1141 = vmatprep.subr.mxu0 0.0
    %1142 = vmatpush1.msra.mxu0 0.0
    %1143 = vmatprep.subr.mxu0 0.0
    %1144 = vmatpush1.msra.mxu0 0.0
    %1145 = vmatprep.subr.mxu0 0.0
    %1146 = vmatpush1.msra.mxu0 0.0
    %1147 = vmatprep.subr.mxu0 0.0
    %1148 = vmatpush1.msra.mxu0 0.0
    %1149 = vmatprep.mubr.f32.mxu0 0.0
    %1150 = vmatmul.mubr.f32.gmra.mrb[0].mxu0 %v1083
    %v1151 = vpop.f32.mrb[0].mxu0
    %v1152 = vadd.f32 0.0, %v1151
    %v1153 = vpop.f32.mrb[0].mxu0
    %1154 = vdwg.mxu0
    %v1155 = vadd.f32 %v1003, %v1152
    %v1156 = vld [vmem:[#allocation8] sm:$0x1]
    %v1157 = vlaneseq
    %v1158 = vshrl.u32 %v1157, 7
    %v1159 = vsub.s32 0, %v1158
    %v1160 = vrot.slane %v1156, %v1159
    %v1161 = vadd.f32 %v1080, %v1160
    %v1162 = vmax.f32 %v1161, 0.0
    %v1163 = vadd.f32 %v1155, %v1160
    %v1164 = vmax.f32 %v1163, 0.0
    %v1165 = vlaneseq
    %v1166 = vand.u32 %v1165, 127
    %v1167 = vlaneseq
    %v1168 = vshrl.u32 %v1167, 7
    %v1169 = vadd.s32 %v1168, 8
    %v1170 = vadd.s32 %v1168, 16
    %v1171 = vadd.s32 %v1168, 24
    %v1172 = vadd.s32 %v1168, 32
    %v1173 = vadd.s32 %v1168, 40
    %v1174 = vadd.s32 %v1168, 48
    %v1175 = vadd.s32 %v1168, 56
    %v1176 = vadd.s32 %v1169, 16
    %v1177 = vadd.s32 %v1170, 16
    %v1178 = vadd.s32 %v1171, 16
    %v1179 = vadd.s32 %v1172, 16
    %v1180 = vadd.s32 %v1173, 16
    %v1181 = vadd.s32 %v1174, 16
    %v1182 = vadd.s32 %v1175, 16
    %vm1183 = vcmp.eq.s32.totalorder %v1166, %v1170
    %vm1184 = vcmp.eq.s32.totalorder %v1166, %v1176
    %vm1185 = vcmp.eq.s32.totalorder %v1166, %v1177
    %vm1186 = vcmp.eq.s32.totalorder %v1166, %v1178
    %vm1187 = vcmp.eq.s32.totalorder %v1166, %v1179
    %vm1188 = vcmp.eq.s32.totalorder %v1166, %v1180
    %vm1189 = vcmp.eq.s32.totalorder %v1166, %v1181
    %vm1190 = vcmp.eq.s32.totalorder %v1166, %v1182
    %v1191 = vsel %vm1183, 1.0, 0.0
    %v1192 = vsel %vm1184, 1.0, 0.0
    %v1193 = vsel %vm1185, 1.0, 0.0
    %v1194 = vsel %vm1186, 1.0, 0.0
    %v1195 = vsel %vm1187, 1.0, 0.0
    %v1196 = vsel %vm1188, 1.0, 0.0
    %v1197 = vsel %vm1189, 1.0, 0.0
    %v1198 = vsel %vm1190, 1.0, 0.0
    %vm1199 = vcmp.ge.s32.totalorder %v1166, 16
    %1201 = vrot.lane.b32.xlu0 %v1162, 64
    %v1202 = vpop.permute.xlu0 %1201
    %vm1203 = vcmask 523264
    %v1204 = vsel %vm1203, %v1202, 0
    %1206 = vmatprep.subr.mxu0 0.0
    %1207 = vmatpush1.msra.mxu0 %v1191
    %1208 = vmatprep.subr.mxu0 0.0
    %1209 = vmatpush1.msra.mxu0 %v1192
    %1210 = vmatprep.subr.mxu0 0.0
    %1211 = vmatpush1.msra.mxu0 %v1193
    %1212 = vmatprep.subr.mxu0 0.0
    %1213 = vmatpush1.msra.mxu0 %v1194
    %1214 = vmatprep.subr.mxu0 0.0
    %1215 = vmatpush1.msra.mxu0 %v1195
    %1216 = vmatprep.subr.mxu0 0.0
    %1217 = vmatpush1.msra.mxu0 %v1196
    %1218 = vmatprep.subr.mxu0 0.0
    %1219 = vmatpush1.msra.mxu0 %v1197
    %1220 = vmatprep.subr.mxu0 0.0
    %1221 = vmatpush1.msra.mxu0 %v1198
    %1222 = vmatprep.subr.mxu0 0.0
    %1223 = vmatpush1.msra.mxu0 0.0
    %1224 = vmatprep.subr.mxu0 0.0
    %1225 = vmatpush1.msra.mxu0 0.0
    %1226 = vmatprep.subr.mxu0 0.0
    %1227 = vmatpush1.msra.mxu0 0.0
    %1228 = vmatprep.subr.mxu0 0.0
    %1229 = vmatpush1.msra.mxu0 0.0
    %1230 = vmatprep.subr.mxu0 0.0
    %1231 = vmatpush1.msra.mxu0 0.0
    %1232 = vmatprep.subr.mxu0 0.0
    %1233 = vmatpush1.msra.mxu0 0.0
    %1234 = vmatprep.subr.mxu0 0.0
    %1235 = vmatpush1.msra.mxu0 0.0
    %1236 = vmatprep.subr.mxu0 0.0
    %1237 = vmatpush1.msra.mxu0 0.0
    %1238 = vmatprep.subr.mxu0 0.0
    %1239 = vmatpush1.msra.mxu0 0.0
    %1240 = vmatprep.subr.mxu0 0.0
    %1241 = vmatpush1.msra.mxu0 0.0
    %1242 = vmatprep.subr.mxu0 0.0
    %1243 = vmatpush1.msra.mxu0 0.0
    %1244 = vmatprep.subr.mxu0 0.0
    %1245 = vmatpush1.msra.mxu0 0.0
    %1246 = vmatprep.subr.mxu0 0.0
    %1247 = vmatpush1.msra.mxu0 0.0
    %1248 = vmatprep.subr.mxu0 0.0
    %1249 = vmatpush1.msra.mxu0 0.0
    %1250 = vmatprep.subr.mxu0 0.0
    %1251 = vmatpush1.msra.mxu0 0.0
    %1252 = vmatprep.subr.mxu0 0.0
    %1253 = vmatpush1.msra.mxu0 0.0
    %1254 = vmatprep.subr.mxu0 0.0
    %1255 = vmatpush1.msra.mxu0 0.0
    %1256 = vmatprep.subr.mxu0 0.0
    %1257 = vmatpush1.msra.mxu0 0.0
    %1258 = vmatprep.subr.mxu0 0.0
    %1259 = vmatpush1.msra.mxu0 0.0
    %1260 = vmatprep.subr.mxu0 0.0
    %1261 = vmatpush1.msra.mxu0 0.0
    %1262 = vmatprep.subr.mxu0 0.0
    %1263 = vmatpush1.msra.mxu0 0.0
    %1264 = vmatprep.subr.mxu0 0.0
    %1265 = vmatpush1.msra.mxu0 0.0
    %1266 = vmatprep.subr.mxu0 0.0
    %1267 = vmatpush1.msra.mxu0 0.0
    %1268 = vmatprep.subr.mxu0 0.0
    %1269 = vmatpush1.msra.mxu0 0.0
    %1270 = vmatprep.mubr.f32.mxu0 0.0
    %1271 = vmatmul.mubr.f32.gmra.mrb[0].mxu0 %v1204
    %v1272 = vpop.f32.mrb[0].mxu0
    %v1273 = vadd.f32 0.0, %v1272
    %v1274 = vpop.f32.mrb[0].mxu0
    %1275 = vdwg.mxu0
    %v1276 = vsel %vm1199, %v1273, -1e+30
    %v1278 = vmax.f32 %v1162, %v1202
    %v1279 = vmax.f32 %v1278, %v1276
    %1281 = vrot.lane.b32.xlu0 %v1164, 64
    %v1282 = vpop.permute.xlu0 %1281
    %v1283 = vsel %vm1203, %v1282, 0
    %1285 = vmatprep.subr.mxu0 0.0
    %1286 = vmatpush1.msra.mxu0 %v1191
    %1287 = vmatprep.subr.mxu0 0.0
    %1288 = vmatpush1.msra.mxu0 %v1192
    %1289 = vmatprep.subr.mxu0 0.0
    %1290 = vmatpush1.msra.mxu0 %v1193
    %1291 = vmatprep.subr.mxu0 0.0
    %1292 = vmatpush1.msra.mxu0 %v1194
    %1293 = vmatprep.subr.mxu0 0.0
    %1294 = vmatpush1.msra.mxu0 %v1195
    %1295 = vmatprep.subr.mxu0 0.0
    %1296 = vmatpush1.msra.mxu0 %v1196
    %1297 = vmatprep.subr.mxu0 0.0
    %1298 = vmatpush1.msra.mxu0 %v1197
    %1299 = vmatprep.subr.mxu0 0.0
    %1300 = vmatpush1.msra.mxu0 %v1198
    %1301 = vmatprep.subr.mxu0 0.0
    %1302 = vmatpush1.msra.mxu0 0.0
    %1303 = vmatprep.subr.mxu0 0.0
    %1304 = vmatpush1.msra.mxu0 0.0
    %1305 = vmatprep.subr.mxu0 0.0
    %1306 = vmatpush1.msra.mxu0 0.0
    %1307 = vmatprep.subr.mxu0 0.0
    %1308 = vmatpush1.msra.mxu0 0.0
    %1309 = vmatprep.subr.mxu0 0.0
    %1310 = vmatpush1.msra.mxu0 0.0
    %1311 = vmatprep.subr.mxu0 0.0
    %1312 = vmatpush1.msra.mxu0 0.0
    %1313 = vmatprep.subr.mxu0 0.0
    %1314 = vmatpush1.msra.mxu0 0.0
    %1315 = vmatprep.subr.mxu0 0.0
    %1316 = vmatpush1.msra.mxu0 0.0
    %1317 = vmatprep.subr.mxu0 0.0
    %1318 = vmatpush1.msra.mxu0 0.0
    %1319 = vmatprep.subr.mxu0 0.0
    %1320 = vmatpush1.msra.mxu0 0.0
    %1321 = vmatprep.subr.mxu0 0.0
    %1322 = vmatpush1.msra.mxu0 0.0
    %1323 = vmatprep.subr.mxu0 0.0
    %1324 = vmatpush1.msra.mxu0 0.0
    %1325 = vmatprep.subr.mxu0 0.0
    %1326 = vmatpush1.msra.mxu0 0.0
    %1327 = vmatprep.subr.mxu0 0.0
    %1328 = vmatpush1.msra.mxu0 0.0
    %1329 = vmatprep.subr.mxu0 0.0
    %1330 = vmatpush1.msra.mxu0 0.0
    %1331 = vmatprep.subr.mxu0 0.0
    %1332 = vmatpush1.msra.mxu0 0.0
    %1333 = vmatprep.subr.mxu0 0.0
    %1334 = vmatpush1.msra.mxu0 0.0
    %1335 = vmatprep.subr.mxu0 0.0
    %1336 = vmatpush1.msra.mxu0 0.0
    %1337 = vmatprep.subr.mxu0 0.0
    %1338 = vmatpush1.msra.mxu0 0.0
    %1339 = vmatprep.subr.mxu0 0.0
    %1340 = vmatpush1.msra.mxu0 0.0
    %1341 = vmatprep.subr.mxu0 0.0
    %1342 = vmatpush1.msra.mxu0 0.0
    %1343 = vmatprep.subr.mxu0 0.0
    %1344 = vmatpush1.msra.mxu0 0.0
    %1345 = vmatprep.subr.mxu0 0.0
    %1346 = vmatpush1.msra.mxu0 0.0
    %1347 = vmatprep.subr.mxu0 0.0
    %1348 = vmatpush1.msra.mxu0 0.0
    %1349 = vmatprep.mubr.f32.mxu0 0.0
    %1350 = vmatmul.mubr.f32.gmra.mrb[0].mxu0 %v1283
    %v1351 = vpop.f32.mrb[0].mxu0
    %v1352 = vadd.f32 0.0, %v1351
    %v1353 = vpop.f32.mrb[0].mxu0
    %1354 = vdwg.mxu0
    %v1355 = vsel %vm1199, %v1352, -1e+30
    %v1357 = vmax.f32 %v1164, %v1282
    %v1358 = vmax.f32 %v1357, %v1355
    %v1359 = vadd.s32 %v1166, 2
    %vm1360 = vcmp.eq.s32.totalorder %v1168, %v1359
    %v1361 = vsel %vm1360, 1.0, 0.0
    %vm1362 = vcmp.ge.s32.totalorder %v1168, 2
    %vm1363 = vcmask 64512
    %v1365 = vsel %vm1363, %v1361, 0
    %1367 = vmatprep.subr.mxu0 0.0
    %1368 = vmatpush1.msra.mxu0 %v1358
    %1369 = vmatprep.subr.mxu0 0.0
    %1370 = vmatpush1.msra.mxu0 0.0
    %1371 = vmatprep.subr.mxu0 0.0
    %1372 = vmatpush1.msra.mxu0 0.0
    %1373 = vmatprep.subr.mxu0 0.0
    %1374 = vmatpush1.msra.mxu0 0.0
    %1375 = vmatprep.subr.mxu0 0.0
    %1376 = vmatpush1.msra.mxu0 0.0
    %1377 = vmatprep.subr.mxu0 0.0
    %1378 = vmatpush1.msra.mxu0 0.0
    %1379 = vmatprep.subr.mxu0 0.0
    %1380 = vmatpush1.msra.mxu0 0.0
    %1381 = vmatprep.subr.mxu0 0.0
    %1382 = vmatpush1.msra.mxu0 0.0
    %1383 = vmatprep.subr.mxu0 0.0
    %1384 = vmatpush1.msra.mxu0 0.0
    %1385 = vmatprep.subr.mxu0 0.0
    %1386 = vmatpush1.msra.mxu0 0.0
    %1387 = vmatprep.subr.mxu0 0.0
    %1388 = vmatpush1.msra.mxu0 0.0
    %1389 = vmatprep.subr.mxu0 0.0
    %1390 = vmatpush1.msra.mxu0 0.0
    %1391 = vmatprep.subr.mxu0 0.0
    %1392 = vmatpush1.msra.mxu0 0.0
    %1393 = vmatprep.subr.mxu0 0.0
    %1394 = vmatpush1.msra.mxu0 0.0
    %1395 = vmatprep.subr.mxu0 0.0
    %1396 = vmatpush1.msra.mxu0 0.0
    %1397 = vmatprep.subr.mxu0 0.0
    %1398 = vmatpush1.msra.mxu0 0.0
    %1399 = vmatprep.subr.mxu0 0.0
    %1400 = vmatpush1.msra.mxu0 0.0
    %1401 = vmatprep.subr.mxu0 0.0
    %1402 = vmatpush1.msra.mxu0 0.0
    %1403 = vmatprep.subr.mxu0 0.0
    %1404 = vmatpush1.msra.mxu0 0.0
    %1405 = vmatprep.subr.mxu0 0.0
    %1406 = vmatpush1.msra.mxu0 0.0
    %1407 = vmatprep.subr.mxu0 0.0
    %1408 = vmatpush1.msra.mxu0 0.0
    %1409 = vmatprep.subr.mxu0 0.0
    %1410 = vmatpush1.msra.mxu0 0.0
    %1411 = vmatprep.subr.mxu0 0.0
    %1412 = vmatpush1.msra.mxu0 0.0
    %1413 = vmatprep.subr.mxu0 0.0
    %1414 = vmatpush1.msra.mxu0 0.0
    %1415 = vmatprep.subr.mxu0 0.0
    %1416 = vmatpush1.msra.mxu0 0.0
    %1417 = vmatprep.subr.mxu0 0.0
    %1418 = vmatpush1.msra.mxu0 0.0
    %1419 = vmatprep.subr.mxu0 0.0
    %1420 = vmatpush1.msra.mxu0 0.0
    %1421 = vmatprep.subr.mxu0 0.0
    %1422 = vmatpush1.msra.mxu0 0.0
    %1423 = vmatprep.subr.mxu0 0.0
    %1424 = vmatpush1.msra.mxu0 0.0
    %1425 = vmatprep.subr.mxu0 0.0
    %1426 = vmatpush1.msra.mxu0 0.0
    %1427 = vmatprep.subr.mxu0 0.0
    %1428 = vmatpush1.msra.mxu0 0.0
    %1429 = vmatprep.subr.mxu0 0.0
    %1430 = vmatpush1.msra.mxu0 0.0
    %1431 = vmatprep.mubr.f32.mxu0 0.0
    %1432 = vmatmul.mubr.f32.gmra.mrb[0].mxu0 %v1365
    %v1433 = vpop.f32.mrb[0].mxu0
    %v1434 = vadd.f32 0.0, %v1433
    %v1435 = vpop.f32.mrb[0].mxu0
    %1436 = vdwg.mxu0
    %v1437 = vsel %vm1362, %v1434, -1e+30
    %v1438 = vmax.f32 %v1279, %v1358
    %v1439 = vmax.f32 %v1438, %v1437
    %v1440 = vadd.s32 %v1166, 4294967294
    %vm1441 = vcmp.eq.s32.totalorder %v1168, %v1440
    %v1442 = vsel %vm1441, 1.0, 0.0
    %v1443 = vld [vmem:[#allocation5 + $0x190] sm:$0xff]
    %v1444 = vld [vmem:[#allocation5 + $0x198] sm:$0xff]
    %v1445 = vld [vmem:[#allocation5 + $0x1a0] sm:$0xff]
    %v1446 = vld [vmem:[#allocation5 + $0x1a8] sm:$0xff]
    %v1447 = vld [vmem:[#allocation5 + $0x1b0] sm:$0xff]
    %v1448 = vld [vmem:[#allocation5 + $0x1b8] sm:$0xff]
    %v1449 = vld [vmem:[#allocation5 + $0x1c0] sm:$0xff]
    %v1450 = vld [vmem:[#allocation5 + $0x1c8] sm:$0xff]
    %1451 = vmatprep.subr.mxu0 0.0
    %1452 = vmatpush1.msra.mxu0 %v1439
    %1453 = vmatprep.subr.mxu0 0.0
    %1454 = vmatpush1.msra.mxu0 0.0
    %1455 = vmatprep.subr.mxu0 0.0
    %1456 = vmatpush1.msra.mxu0 0.0
    %1457 = vmatprep.subr.mxu0 0.0
    %1458 = vmatpush1.msra.mxu0 0.0
    %1459 = vmatprep.subr.mxu0 0.0
    %1460 = vmatpush1.msra.mxu0 0.0
    %1461 = vmatprep.subr.mxu0 0.0
    %1462 = vmatpush1.msra.mxu0 0.0
    %1463 = vmatprep.subr.mxu0 0.0
    %1464 = vmatpush1.msra.mxu0 0.0
    %1465 = vmatprep.subr.mxu0 0.0
    %1466 = vmatpush1.msra.mxu0 0.0
    %1467 = vmatprep.subr.mxu0 0.0
    %1468 = vmatpush1.msra.mxu0 0.0
    %1469 = vmatprep.subr.mxu0 0.0
    %1470 = vmatpush1.msra.mxu0 0.0
    %1471 = vmatprep.subr.mxu0 0.0
    %1472 = vmatpush1.msra.mxu0 0.0
    %1473 = vmatprep.subr.mxu0 0.0
    %1474 = vmatpush1.msra.mxu0 0.0
    %1475 = vmatprep.subr.mxu0 0.0
    %1476 = vmatpush1.msra.mxu0 0.0
    %1477 = vmatprep.subr.mxu0 0.0
    %1478 = vmatpush1.msra.mxu0 0.0
    %1479 = vmatprep.subr.mxu0 0.0
    %1480 = vmatpush1.msra.mxu0 0.0
    %1481 = vmatprep.subr.mxu0 0.0
    %1482 = vmatpush1.msra.mxu0 0.0
    %1483 = vmatprep.subr.mxu0 0.0
    %1484 = vmatpush1.msra.mxu0 0.0
    %1485 = vmatprep.subr.mxu0 0.0
    %1486 = vmatpush1.msra.mxu0 0.0
    %1487 = vmatprep.subr.mxu0 0.0
    %1488 = vmatpush1.msra.mxu0 0.0
    %1489 = vmatprep.subr.mxu0 0.0
    %1490 = vmatpush1.msra.mxu0 0.0
    %1491 = vmatprep.subr.mxu0 0.0
    %1492 = vmatpush1.msra.mxu0 0.0
    %1493 = vmatprep.subr.mxu0 0.0
    %1494 = vmatpush1.msra.mxu0 0.0
    %1495 = vmatprep.subr.mxu0 0.0
    %1496 = vmatpush1.msra.mxu0 0.0
    %1497 = vmatprep.subr.mxu0 0.0
    %1498 = vmatpush1.msra.mxu0 0.0
    %1499 = vmatprep.subr.mxu0 0.0
    %1500 = vmatpush1.msra.mxu0 0.0
    %1501 = vmatprep.subr.mxu0 0.0
    %1502 = vmatpush1.msra.mxu0 0.0
    %1503 = vmatprep.subr.mxu0 0.0
    %1504 = vmatpush1.msra.mxu0 0.0
    %1505 = vmatprep.subr.mxu0 0.0
    %1506 = vmatpush1.msra.mxu0 0.0
    %1507 = vmatprep.subr.mxu0 0.0
    %1508 = vmatpush1.msra.mxu0 0.0
    %1509 = vmatprep.subr.mxu0 0.0
    %1510 = vmatpush1.msra.mxu0 0.0
    %1511 = vmatprep.subr.mxu0 0.0
    %1512 = vmatpush1.msra.mxu0 0.0
    %1513 = vmatprep.subr.mxu0 0.0
    %1514 = vmatpush1.msra.mxu0 0.0
    %1515 = vmatprep.mubr.f32.mxu0 0.0
    %1516 = vmatmul.mubr.f32.gmra.mrb[0].mxu0 %v1365
    %v1517 = vpop.f32.mrb[0].mxu0
    %v1518 = vadd.f32 0.0, %v1517
    %v1519 = vpop.f32.mrb[0].mxu0
    %1520 = vdwg.mxu0
    %v1521 = vld [vmem:[#allocation5 + $0x150] sm:$0xff]
    %v1522 = vld [vmem:[#allocation5 + $0x158] sm:$0xff]
    %v1523 = vld [vmem:[#allocation5 + $0x160] sm:$0xff]
    %v1524 = vld [vmem:[#allocation5 + $0x168] sm:$0xff]
    %v1525 = vld [vmem:[#allocation5 + $0x170] sm:$0xff]
    %v1526 = vld [vmem:[#allocation5 + $0x178] sm:$0xff]
    %v1527 = vld [vmem:[#allocation5 + $0x180] sm:$0xff]
    %v1528 = vld [vmem:[#allocation5 + $0x188] sm:$0xff]
    %v1530 = vsel %vm1203, %v1518, 0
    %1532 = vmatprep.subr.mxu0 0.0
    %1533 = vmatpush1.msra.mxu0 %v1521
    %1534 = vmatprep.subr.mxu0 0.0
    %1535 = vmatpush1.msra.mxu0 %v1522
    %1536 = vmatprep.subr.mxu0 0.0
    %1537 = vmatpush1.msra.mxu0 %v1523
    %1538 = vmatprep.subr.mxu0 0.0
    %1539 = vmatpush1.msra.mxu0 %v1524
    %1540 = vmatprep.subr.mxu0 0.0
    %1541 = vmatpush1.msra.mxu0 %v1525
    %1542 = vmatprep.subr.mxu0 0.0
    %1543 = vmatpush1.msra.mxu0 %v1526
    %1544 = vmatprep.subr.mxu0 0.0
    %1545 = vmatpush1.msra.mxu0 %v1527
    %1546 = vmatprep.subr.mxu0 0.0
    %1547 = vmatpush1.msra.mxu0 %v1528
    %1548 = vmatprep.subr.mxu0 0.0
    %1549 = vmatpush1.msra.mxu0 0.0
    %1550 = vmatprep.subr.mxu0 0.0
    %1551 = vmatpush1.msra.mxu0 0.0
    %1552 = vmatprep.subr.mxu0 0.0
    %1553 = vmatpush1.msra.mxu0 0.0
    %1554 = vmatprep.subr.mxu0 0.0
    %1555 = vmatpush1.msra.mxu0 0.0
    %1556 = vmatprep.subr.mxu0 0.0
    %1557 = vmatpush1.msra.mxu0 0.0
    %1558 = vmatprep.subr.mxu0 0.0
    %1559 = vmatpush1.msra.mxu0 0.0
    %1560 = vmatprep.subr.mxu0 0.0
    %1561 = vmatpush1.msra.mxu0 0.0
    %1562 = vmatprep.subr.mxu0 0.0
    %1563 = vmatpush1.msra.mxu0 0.0
    %1564 = vmatprep.subr.mxu0 0.0
    %1565 = vmatpush1.msra.mxu0 0.0
    %1566 = vmatprep.subr.mxu0 0.0
    %1567 = vmatpush1.msra.mxu0 0.0
    %1568 = vmatprep.subr.mxu0 0.0
    %1569 = vmatpush1.msra.mxu0 0.0
    %1570 = vmatprep.subr.mxu0 0.0
    %1571 = vmatpush1.msra.mxu0 0.0
    %1572 = vmatprep.subr.mxu0 0.0
    %1573 = vmatpush1.msra.mxu0 0.0
    %1574 = vmatprep.subr.mxu0 0.0
    %1575 = vmatpush1.msra.mxu0 0.0
    %1576 = vmatprep.subr.mxu0 0.0
    %1577 = vmatpush1.msra.mxu0 0.0
    %1578 = vmatprep.subr.mxu0 0.0
    %1579 = vmatpush1.msra.mxu0 0.0
    %1580 = vmatprep.subr.mxu0 0.0
    %1581 = vmatpush1.msra.mxu0 0.0
    %1582 = vmatprep.subr.mxu0 0.0
    %1583 = vmatpush1.msra.mxu0 0.0
    %1584 = vmatprep.subr.mxu0 0.0
    %1585 = vmatpush1.msra.mxu0 0.0
    %1586 = vmatprep.subr.mxu0 0.0
    %1587 = vmatpush1.msra.mxu0 0.0
    %1588 = vmatprep.subr.mxu0 0.0
    %1589 = vmatpush1.msra.mxu0 0.0
    %1590 = vmatprep.subr.mxu0 0.0
    %1591 = vmatpush1.msra.mxu0 0.0
    %1592 = vmatprep.subr.mxu0 0.0
    %1593 = vmatpush1.msra.mxu0 0.0
    %1594 = vmatprep.subr.mxu0 0.0
    %1595 = vmatpush1.msra.mxu0 0.0
    %1596 = vmatprep.mubr.f32.mxu0 0.0
    %1597 = vmatmul.mubr.f32.gmra.mrb[0].mxu0 %v1530
    %v1598 = vpop.f32.mrb[0].mxu0
    %v1599 = vadd.f32 0.0, %v1598
    %v1600 = vpop.f32.mrb[0].mxu0
    %1601 = vdwg.mxu0
    %v1603 = vsel %vm1203, %v1439, 0
    %1605 = vmatprep.subr.mxu0 0.0
    %1606 = vmatpush1.msra.mxu0 %v1443
    %1607 = vmatprep.subr.mxu0 0.0
    %1608 = vmatpush1.msra.mxu0 %v1444
    %1609 = vmatprep.subr.mxu0 0.0
    %1610 = vmatpush1.msra.mxu0 %v1445
    %1611 = vmatprep.subr.mxu0 0.0
    %1612 = vmatpush1.msra.mxu0 %v1446
    %1613 = vmatprep.subr.mxu0 0.0
    %1614 = vmatpush1.msra.mxu0 %v1447
    %1615 = vmatprep.subr.mxu0 0.0
    %1616 = vmatpush1.msra.mxu0 %v1448
    %1617 = vmatprep.subr.mxu0 0.0
    %1618 = vmatpush1.msra.mxu0 %v1449
    %1619 = vmatprep.subr.mxu0 0.0
    %1620 = vmatpush1.msra.mxu0 %v1450
    %1621 = vmatprep.subr.mxu0 0.0
    %1622 = vmatpush1.msra.mxu0 0.0
    %1623 = vmatprep.subr.mxu0 0.0
    %1624 = vmatpush1.msra.mxu0 0.0
    %1625 = vmatprep.subr.mxu0 0.0
    %1626 = vmatpush1.msra.mxu0 0.0
    %1627 = vmatprep.subr.mxu0 0.0
    %1628 = vmatpush1.msra.mxu0 0.0
    %1629 = vmatprep.subr.mxu0 0.0
    %1630 = vmatpush1.msra.mxu0 0.0
    %1631 = vmatprep.subr.mxu0 0.0
    %1632 = vmatpush1.msra.mxu0 0.0
    %1633 = vmatprep.subr.mxu0 0.0
    %1634 = vmatpush1.msra.mxu0 0.0
    %1635 = vmatprep.subr.mxu0 0.0
    %1636 = vmatpush1.msra.mxu0 0.0
    %1637 = vmatprep.subr.mxu0 0.0
    %1638 = vmatpush1.msra.mxu0 0.0
    %1639 = vmatprep.subr.mxu0 0.0
    %1640 = vmatpush1.msra.mxu0 0.0
    %1641 = vmatprep.subr.mxu0 0.0
    %1642 = vmatpush1.msra.mxu0 0.0
    %1643 = vmatprep.subr.mxu0 0.0
    %1644 = vmatpush1.msra.mxu0 0.0
    %1645 = vmatprep.subr.mxu0 0.0
    %1646 = vmatpush1.msra.mxu0 0.0
    %1647 = vmatprep.subr.mxu0 0.0
    %1648 = vmatpush1.msra.mxu0 0.0
    %1649 = vmatprep.subr.mxu0 0.0
    %1650 = vmatpush1.msra.mxu0 0.0
    %1651 = vmatprep.subr.mxu0 0.0
    %1652 = vmatpush1.msra.mxu0 0.0
    %1653 = vmatprep.subr.mxu0 0.0
    %1654 = vmatpush1.msra.mxu0 0.0
    %1655 = vmatprep.subr.mxu0 0.0
    %1656 = vmatpush1.msra.mxu0 0.0
    %1657 = vmatprep.subr.mxu0 0.0
    %1658 = vmatpush1.msra.mxu0 0.0
    %1659 = vmatprep.subr.mxu0 0.0
    %1660 = vmatpush1.msra.mxu0 0.0
    %1661 = vmatprep.subr.mxu0 0.0
    %1662 = vmatpush1.msra.mxu0 0.0
    %1663 = vmatprep.subr.mxu0 0.0
    %1664 = vmatpush1.msra.mxu0 0.0
    %1665 = vmatprep.subr.mxu0 0.0
    %1666 = vmatpush1.msra.mxu0 0.0
    %1667 = vmatprep.subr.mxu0 0.0
    %1668 = vmatpush1.msra.mxu0 0.0
    %1669 = vmatprep.mubr.f32.mxu0 0.0
    %1670 = vmatmul.mubr.f32.gmra.mrb[0].mxu0 %v1603
    %v1671 = vpop.f32.mrb[0].mxu0
    %v1672 = vadd.f32 %v1599, %v1671
    %v1673 = vpop.f32.mrb[0].mxu0
    %1674 = vdwg.mxu0
    %v1676 = vsel %vm1363, %v1442, 0
    %1678 = vmatprep.subr.mxu0 0.0
    %1679 = vmatpush1.msra.mxu0 %v1439
    %1680 = vmatprep.subr.mxu0 0.0
    %1681 = vmatpush1.msra.mxu0 0.0
    %1682 = vmatprep.subr.mxu0 0.0
    %1683 = vmatpush1.msra.mxu0 0.0
    %1684 = vmatprep.subr.mxu0 0.0
    %1685 = vmatpush1.msra.mxu0 0.0
    %1686 = vmatprep.subr.mxu0 0.0
    %1687 = vmatpush1.msra.mxu0 0.0
    %1688 = vmatprep.subr.mxu0 0.0
    %1689 = vmatpush1.msra.mxu0 0.0
    %1690 = vmatprep.subr.mxu0 0.0
    %1691 = vmatpush1.msra.mxu0 0.0
    %1692 = vmatprep.subr.mxu0 0.0
    %1693 = vmatpush1.msra.mxu0 0.0
    %1694 = vmatprep.subr.mxu0 0.0
    %1695 = vmatpush1.msra.mxu0 0.0
    %1696 = vmatprep.subr.mxu0 0.0
    %1697 = vmatpush1.msra.mxu0 0.0
    %1698 = vmatprep.subr.mxu0 0.0
    %1699 = vmatpush1.msra.mxu0 0.0
    %1700 = vmatprep.subr.mxu0 0.0
    %1701 = vmatpush1.msra.mxu0 0.0
    %1702 = vmatprep.subr.mxu0 0.0
    %1703 = vmatpush1.msra.mxu0 0.0
    %1704 = vmatprep.subr.mxu0 0.0
    %1705 = vmatpush1.msra.mxu0 0.0
    %1706 = vmatprep.subr.mxu0 0.0
    %1707 = vmatpush1.msra.mxu0 0.0
    %1708 = vmatprep.subr.mxu0 0.0
    %1709 = vmatpush1.msra.mxu0 0.0
    %1710 = vmatprep.subr.mxu0 0.0
    %1711 = vmatpush1.msra.mxu0 0.0
    %1712 = vmatprep.subr.mxu0 0.0
    %1713 = vmatpush1.msra.mxu0 0.0
    %1714 = vmatprep.subr.mxu0 0.0
    %1715 = vmatpush1.msra.mxu0 0.0
    %1716 = vmatprep.subr.mxu0 0.0
    %1717 = vmatpush1.msra.mxu0 0.0
    %1718 = vmatprep.subr.mxu0 0.0
    %1719 = vmatpush1.msra.mxu0 0.0
    %1720 = vmatprep.subr.mxu0 0.0
    %1721 = vmatpush1.msra.mxu0 0.0
    %1722 = vmatprep.subr.mxu0 0.0
    %1723 = vmatpush1.msra.mxu0 0.0
    %1724 = vmatprep.subr.mxu0 0.0
    %1725 = vmatpush1.msra.mxu0 0.0
    %1726 = vmatprep.subr.mxu0 0.0
    %1727 = vmatpush1.msra.mxu0 0.0
    %1728 = vmatprep.subr.mxu0 0.0
    %1729 = vmatpush1.msra.mxu0 0.0
    %1730 = vmatprep.subr.mxu0 0.0
    %1731 = vmatpush1.msra.mxu0 0.0
    %1732 = vmatprep.subr.mxu0 0.0
    %1733 = vmatpush1.msra.mxu0 0.0
    %1734 = vmatprep.subr.mxu0 0.0
    %1735 = vmatpush1.msra.mxu0 0.0
    %1736 = vmatprep.subr.mxu0 0.0
    %1737 = vmatpush1.msra.mxu0 0.0
    %1738 = vmatprep.subr.mxu0 0.0
    %1739 = vmatpush1.msra.mxu0 0.0
    %1740 = vmatprep.subr.mxu0 0.0
    %1741 = vmatpush1.msra.mxu0 0.0
    %1742 = vmatprep.mubr.f32.mxu0 0.0
    %1743 = vmatmul.mubr.f32.gmra.mrb[0].mxu0 %v1676
    %v1744 = vpop.f32.mrb[0].mxu0
    %v1745 = vadd.f32 0.0, %v1744
    %v1746 = vpop.f32.mrb[0].mxu0
    %1747 = vdwg.mxu0
    %v1748 = vld [vmem:[#allocation5 + $0x1d0] sm:$0xff]
    %v1749 = vld [vmem:[#allocation5 + $0x1d8] sm:$0xff]
    %v1750 = vld [vmem:[#allocation5 + $0x1e0] sm:$0xff]
    %v1751 = vld [vmem:[#allocation5 + $0x1e8] sm:$0xff]
    %v1752 = vld [vmem:[#allocation5 + $0x1f0] sm:$0xff]
    %v1753 = vld [vmem:[#allocation5 + $0x1f8] sm:$0xff]
    %v1754 = vld [vmem:[#allocation5 + $0x200] sm:$0xff]
    %v1755 = vld [vmem:[#allocation5 + $0x208] sm:$0xff]
    %v1757 = vsel %vm1203, %v1745, 0
    %1759 = vmatprep.subr.mxu0 0.0
    %1760 = vmatpush1.msra.mxu0 %v1748
    %1761 = vmatprep.subr.mxu0 0.0
    %1762 = vmatpush1.msra.mxu0 %v1749
    %1763 = vmatprep.subr.mxu0 0.0
    %1764 = vmatpush1.msra.mxu0 %v1750
    %1765 = vmatprep.subr.mxu0 0.0
    %1766 = vmatpush1.msra.mxu0 %v1751
    %1767 = vmatprep.subr.mxu0 0.0
    %1768 = vmatpush1.msra.mxu0 %v1752
    %1769 = vmatprep.subr.mxu0 0.0
    %1770 = vmatpush1.msra.mxu0 %v1753
    %1771 = vmatprep.subr.mxu0 0.0
    %1772 = vmatpush1.msra.mxu0 %v1754
    %1773 = vmatprep.subr.mxu0 0.0
    %1774 = vmatpush1.msra.mxu0 %v1755
    %1775 = vmatprep.subr.mxu0 0.0
    %1776 = vmatpush1.msra.mxu0 0.0
    %1777 = vmatprep.subr.mxu0 0.0
    %1778 = vmatpush1.msra.mxu0 0.0
    %1779 = vmatprep.subr.mxu0 0.0
    %1780 = vmatpush1.msra.mxu0 0.0
    %1781 = vmatprep.subr.mxu0 0.0
    %1782 = vmatpush1.msra.mxu0 0.0
    %1783 = vmatprep.subr.mxu0 0.0
    %1784 = vmatpush1.msra.mxu0 0.0
    %1785 = vmatprep.subr.mxu0 0.0
    %1786 = vmatpush1.msra.mxu0 0.0
    %1787 = vmatprep.subr.mxu0 0.0
    %1788 = vmatpush1.msra.mxu0 0.0
    %1789 = vmatprep.subr.mxu0 0.0
    %1790 = vmatpush1.msra.mxu0 0.0
    %1791 = vmatprep.subr.mxu0 0.0
    %1792 = vmatpush1.msra.mxu0 0.0
    %1793 = vmatprep.subr.mxu0 0.0
    %1794 = vmatpush1.msra.mxu0 0.0
    %1795 = vmatprep.subr.mxu0 0.0
    %1796 = vmatpush1.msra.mxu0 0.0
    %1797 = vmatprep.subr.mxu0 0.0
    %1798 = vmatpush1.msra.mxu0 0.0
    %1799 = vmatprep.subr.mxu0 0.0
    %1800 = vmatpush1.msra.mxu0 0.0
    %1801 = vmatprep.subr.mxu0 0.0
    %1802 = vmatpush1.msra.mxu0 0.0
    %1803 = vmatprep.subr.mxu0 0.0
    %1804 = vmatpush1.msra.mxu0 0.0
    %1805 = vmatprep.subr.mxu0 0.0
    %1806 = vmatpush1.msra.mxu0 0.0
    %1807 = vmatprep.subr.mxu0 0.0
    %1808 = vmatpush1.msra.mxu0 0.0
    %1809 = vmatprep.subr.mxu0 0.0
    %1810 = vmatpush1.msra.mxu0 0.0
    %1811 = vmatprep.subr.mxu0 0.0
    %1812 = vmatpush1.msra.mxu0 0.0
    %1813 = vmatprep.subr.mxu0 0.0
    %1814 = vmatpush1.msra.mxu0 0.0
    %1815 = vmatprep.subr.mxu0 0.0
    %1816 = vmatpush1.msra.mxu0 0.0
    %1817 = vmatprep.subr.mxu0 0.0
    %1818 = vmatpush1.msra.mxu0 0.0
    %1819 = vmatprep.subr.mxu0 0.0
    %1820 = vmatpush1.msra.mxu0 0.0
    %1821 = vmatprep.subr.mxu0 0.0
    %1822 = vmatpush1.msra.mxu0 0.0
    %1823 = vmatprep.mubr.f32.mxu0 0.0
    %1824 = vmatmul.mubr.f32.gmra.mrb[0].mxu0 %v1757
    %v1825 = vpop.f32.mrb[0].mxu0
    %v1826 = vadd.f32 0.0, %v1825
    %v1827 = vpop.f32.mrb[0].mxu0
    %1828 = vdwg.mxu0
    %v1829 = vadd.f32 %v1672, %v1826
    %v1830 = vld [vmem:[#allocation8 + $0x1] sm:$0x1]
    %v1831 = vlaneseq
    %v1832 = vshrl.u32 %v1831, 7
    %v1833 = vsub.s32 0, %v1832
    %v1834 = vrot.slane %v1830, %v1833
    %v1835 = vadd.f32 %v1829, %v1834
    %v1836 = vmax.f32 %v1835, 0.0
    %1837 = vmatprep.subr.mxu0 0.0
    %1838 = vmatpush1.msra.mxu0 %v1836
    %1839 = vmatprep.subr.mxu0 0.0
    %1840 = vmatpush1.msra.mxu0 0.0
    %1841 = vmatprep.subr.mxu0 0.0
    %1842 = vmatpush1.msra.mxu0 0.0
    %1843 = vmatprep.subr.mxu0 0.0
    %1844 = vmatpush1.msra.mxu0 0.0
    %1845 = vmatprep.subr.mxu0 0.0
    %1846 = vmatpush1.msra.mxu0 0.0
    %1847 = vmatprep.subr.mxu0 0.0
    %1848 = vmatpush1.msra.mxu0 0.0
    %1849 = vmatprep.subr.mxu0 0.0
    %1850 = vmatpush1.msra.mxu0 0.0
    %1851 = vmatprep.subr.mxu0 0.0
    %1852 = vmatpush1.msra.mxu0 0.0
    %1853 = vmatprep.subr.mxu0 0.0
    %1854 = vmatpush1.msra.mxu0 0.0
    %1855 = vmatprep.subr.mxu0 0.0
    %1856 = vmatpush1.msra.mxu0 0.0
    %1857 = vmatprep.subr.mxu0 0.0
    %1858 = vmatpush1.msra.mxu0 0.0
    %1859 = vmatprep.subr.mxu0 0.0
    %1860 = vmatpush1.msra.mxu0 0.0
    %1861 = vmatprep.subr.mxu0 0.0
    %1862 = vmatpush1.msra.mxu0 0.0
    %1863 = vmatprep.subr.mxu0 0.0
    %1864 = vmatpush1.msra.mxu0 0.0
    %1865 = vmatprep.subr.mxu0 0.0
    %1866 = vmatpush1.msra.mxu0 0.0
    %1867 = vmatprep.subr.mxu0 0.0
    %1868 = vmatpush1.msra.mxu0 0.0
    %1869 = vmatprep.subr.mxu0 0.0
    %1870 = vmatpush1.msra.mxu0 0.0
    %1871 = vmatprep.subr.mxu0 0.0
    %1872 = vmatpush1.msra.mxu0 0.0
    %1873 = vmatprep.subr.mxu0 0.0
    %1874 = vmatpush1.msra.mxu0 0.0
    %1875 = vmatprep.subr.mxu0 0.0
    %1876 = vmatpush1.msra.mxu0 0.0
    %1877 = vmatprep.subr.mxu0 0.0
    %1878 = vmatpush1.msra.mxu0 0.0
    %1879 = vmatprep.subr.mxu0 0.0
    %1880 = vmatpush1.msra.mxu0 0.0
    %1881 = vmatprep.subr.mxu0 0.0
    %1882 = vmatpush1.msra.mxu0 0.0
    %1883 = vmatprep.subr.mxu0 0.0
    %1884 = vmatpush1.msra.mxu0 0.0
    %1885 = vmatprep.subr.mxu0 0.0
    %1886 = vmatpush1.msra.mxu0 0.0
    %1887 = vmatprep.subr.mxu0 0.0
    %1888 = vmatpush1.msra.mxu0 0.0
    %1889 = vmatprep.subr.mxu0 0.0
    %1890 = vmatpush1.msra.mxu0 0.0
    %1891 = vmatprep.subr.mxu0 0.0
    %1892 = vmatpush1.msra.mxu0 0.0
    %1893 = vmatprep.subr.mxu0 0.0
    %1894 = vmatpush1.msra.mxu0 0.0
    %1895 = vmatprep.subr.mxu0 0.0
    %1896 = vmatpush1.msra.mxu0 0.0
    %1897 = vmatprep.subr.mxu0 0.0
    %1898 = vmatpush1.msra.mxu0 0.0
    %1899 = vmatprep.subr.mxu0 0.0
    %1900 = vmatpush1.msra.mxu0 0.0
    %1901 = vmatprep.mubr.f32.mxu0 0.0
    %1902 = vmatmul.mubr.f32.gmra.mrb[0].mxu0 %v1365
    %v1903 = vpop.f32.mrb[0].mxu0
    %v1904 = vadd.f32 0.0, %v1903
    %v1905 = vpop.f32.mrb[0].mxu0
    %1906 = vdwg.mxu0
    %1915 = vrot.lane.b32.xlu0 %v1521, 64
    %v1916 = vpop.permute.xlu0 %1915
    %1917 = vrot.lane.b32.xlu0 %v1522, 64
    %v1918 = vpop.permute.xlu0 %1917
    %1919 = vrot.lane.b32.xlu0 %v1523, 64
    %v1920 = vpop.permute.xlu0 %1919
    %1921 = vrot.lane.b32.xlu0 %v1524, 64
    %v1922 = vpop.permute.xlu0 %1921
    %1923 = vrot.lane.b32.xlu0 %v1525, 64
    %v1924 = vpop.permute.xlu0 %1923
    %1925 = vrot.lane.b32.xlu0 %v1526, 64
    %v1926 = vpop.permute.xlu0 %1925
    %1927 = vrot.lane.b32.xlu0 %v1527, 64
    %v1928 = vpop.permute.xlu0 %1927
    %1929 = vrot.lane.b32.xlu0 %v1528, 64
    %v1930 = vpop.permute.xlu0 %1929
    %v1940 = vsel %vm1203, %v1904, 0
    %1942 = vmatprep.subr.mxu0 0.0
    %1943 = vmatpush1.msra.mxu0 %v1916
    %1944 = vmatprep.subr.mxu0 0.0
    %1945 = vmatpush1.msra.mxu0 %v1918
    %1946 = vmatprep.subr.mxu0 0.0
    %1947 = vmatpush1.msra.mxu0 %v1920
    %1948 = vmatprep.subr.mxu0 0.0
    %1949 = vmatpush1.msra.mxu0 %v1922
    %1950 = vmatprep.subr.mxu0 0.0
    %1951 = vmatpush1.msra.mxu0 %v1924
    %1952 = vmatprep.subr.mxu0 0.0
    %1953 = vmatpush1.msra.mxu0 %v1926
    %1954 = vmatprep.subr.mxu0 0.0
    %1955 = vmatpush1.msra.mxu0 %v1928
    %1956 = vmatprep.subr.mxu0 0.0
    %1957 = vmatpush1.msra.mxu0 %v1930
    %1958 = vmatprep.subr.mxu0 0.0
    %1959 = vmatpush1.msra.mxu0 0.0
    %1960 = vmatprep.subr.mxu0 0.0
    %1961 = vmatpush1.msra.mxu0 0.0
    %1962 = vmatprep.subr.mxu0 0.0
    %1963 = vmatpush1.msra.mxu0 0.0
    %1964 = vmatprep.subr.mxu0 0.0
    %1965 = vmatpush1.msra.mxu0 0.0
    %1966 = vmatprep.subr.mxu0 0.0
    %1967 = vmatpush1.msra.mxu0 0.0
    %1968 = vmatprep.subr.mxu0 0.0
    %1969 = vmatpush1.msra.mxu0 0.0
    %1970 = vmatprep.subr.mxu0 0.0
    %1971 = vmatpush1.msra.mxu0 0.0
    %1972 = vmatprep.subr.mxu0 0.0
    %1973 = vmatpush1.msra.mxu0 0.0
    %1974 = vmatprep.subr.mxu0 0.0
    %1975 = vmatpush1.msra.mxu0 0.0
    %1976 = vmatprep.subr.mxu0 0.0
    %1977 = vmatpush1.msra.mxu0 0.0
    %1978 = vmatprep.subr.mxu0 0.0
    %1979 = vmatpush1.msra.mxu0 0.0
    %1980 = vmatprep.subr.mxu0 0.0
    %1981 = vmatpush1.msra.mxu0 0.0
    %1982 = vmatprep.subr.mxu0 0.0
    %1983 = vmatpush1.msra.mxu0 0.0
    %1984 = vmatprep.subr.mxu0 0.0
    %1985 = vmatpush1.msra.mxu0 0.0
    %1986 = vmatprep.subr.mxu0 0.0
    %1987 = vmatpush1.msra.mxu0 0.0
    %1988 = vmatprep.subr.mxu0 0.0
    %1989 = vmatpush1.msra.mxu0 0.0
    %1990 = vmatprep.subr.mxu0 0.0
    %1991 = vmatpush1.msra.mxu0 0.0
    %1992 = vmatprep.subr.mxu0 0.0
    %1993 = vmatpush1.msra.mxu0 0.0
    %1994 = vmatprep.subr.mxu0 0.0
    %1995 = vmatpush1.msra.mxu0 0.0
    %1996 = vmatprep.subr.mxu0 0.0
    %1997 = vmatpush1.msra.mxu0 0.0
    %1998 = vmatprep.subr.mxu0 0.0
    %1999 = vmatpush1.msra.mxu0 0.0
    %2000 = vmatprep.subr.mxu0 0.0
    %2001 = vmatpush1.msra.mxu0 0.0
    %2002 = vmatprep.subr.mxu0 0.0
    %2003 = vmatpush1.msra.mxu0 0.0
    %2004 = vmatprep.subr.mxu0 0.0
    %2005 = vmatpush1.msra.mxu0 0.0
    %2006 = vmatprep.mubr.f32.mxu0 0.0
    %2007 = vmatmul.mubr.f32.gmra.mrb[0].mxu0 %v1940
    %v2008 = vpop.f32.mrb[0].mxu0
    %v2009 = vadd.f32 0.0, %v2008
    %v2010 = vpop.f32.mrb[0].mxu0
    %2011 = vdwg.mxu0
    %2020 = vrot.lane.b32.xlu0 %v1443, 64
    %v2021 = vpop.permute.xlu0 %2020
    %2022 = vrot.lane.b32.xlu0 %v1444, 64
    %v2023 = vpop.permute.xlu0 %2022
    %2024 = vrot.lane.b32.xlu0 %v1445, 64
    %v2025 = vpop.permute.xlu0 %2024
    %2026 = vrot.lane.b32.xlu0 %v1446, 64
    %v2027 = vpop.permute.xlu0 %2026
    %2028 = vrot.lane.b32.xlu0 %v1447, 64
    %v2029 = vpop.permute.xlu0 %2028
    %2030 = vrot.lane.b32.xlu0 %v1448, 64
    %v2031 = vpop.permute.xlu0 %2030
    %2032 = vrot.lane.b32.xlu0 %v1449, 64
    %v2033 = vpop.permute.xlu0 %2032
    %2034 = vrot.lane.b32.xlu0 %v1450, 64
    %v2035 = vpop.permute.xlu0 %2034
    %v2045 = vsel %vm1203, %v1836, 0
    %2047 = vmatprep.subr.mxu0 0.0
    %2048 = vmatpush1.msra.mxu0 %v2021
    %2049 = vmatprep.subr.mxu0 0.0
    %2050 = vmatpush1.msra.mxu0 %v2023
    %2051 = vmatprep.subr.mxu0 0.0
    %2052 = vmatpush1.msra.mxu0 %v2025
    %2053 = vmatprep.subr.mxu0 0.0
    %2054 = vmatpush1.msra.mxu0 %v2027
    %2055 = vmatprep.subr.mxu0 0.0
    %2056 = vmatpush1.msra.mxu0 %v2029
    %2057 = vmatprep.subr.mxu0 0.0
    %2058 = vmatpush1.msra.mxu0 %v2031
    %2059 = vmatprep.subr.mxu0 0.0
    %2060 = vmatpush1.msra.mxu0 %v2033
    %2061 = vmatprep.subr.mxu0 0.0
    %2062 = vmatpush1.msra.mxu0 %v2035
    %2063 = vmatprep.subr.mxu0 0.0
    %2064 = vmatpush1.msra.mxu0 0.0
    %2065 = vmatprep.subr.mxu0 0.0
    %2066 = vmatpush1.msra.mxu0 0.0
    %2067 = vmatprep.subr.mxu0 0.0
    %2068 = vmatpush1.msra.mxu0 0.0
    %2069 = vmatprep.subr.mxu0 0.0
    %2070 = vmatpush1.msra.mxu0 0.0
    %2071 = vmatprep.subr.mxu0 0.0
    %2072 = vmatpush1.msra.mxu0 0.0
    %2073 = vmatprep.subr.mxu0 0.0
    %2074 = vmatpush1.msra.mxu0 0.0
    %2075 = vmatprep.subr.mxu0 0.0
    %2076 = vmatpush1.msra.mxu0 0.0
    %2077 = vmatprep.subr.mxu0 0.0
    %2078 = vmatpush1.msra.mxu0 0.0
    %2079 = vmatprep.subr.mxu0 0.0
    %2080 = vmatpush1.msra.mxu0 0.0
    %2081 = vmatprep.subr.mxu0 0.0
    %2082 = vmatpush1.msra.mxu0 0.0
    %2083 = vmatprep.subr.mxu0 0.0
    %2084 = vmatpush1.msra.mxu0 0.0
    %2085 = vmatprep.subr.mxu0 0.0
    %2086 = vmatpush1.msra.mxu0 0.0
    %2087 = vmatprep.subr.mxu0 0.0
    %2088 = vmatpush1.msra.mxu0 0.0
    %2089 = vmatprep.subr.mxu0 0.0
    %2090 = vmatpush1.msra.mxu0 0.0
    %2091 = vmatprep.subr.mxu0 0.0
    %2092 = vmatpush1.msra.mxu0 0.0
    %2093 = vmatprep.subr.mxu0 0.0
    %2094 = vmatpush1.msra.mxu0 0.0
    %2095 = vmatprep.subr.mxu0 0.0
    %2096 = vmatpush1.msra.mxu0 0.0
    %2097 = vmatprep.subr.mxu0 0.0
    %2098 = vmatpush1.msra.mxu0 0.0
    %2099 = vmatprep.subr.mxu0 0.0
    %2100 = vmatpush1.msra.mxu0 0.0
    %2101 = vmatprep.subr.mxu0 0.0
    %2102 = vmatpush1.msra.mxu0 0.0
    %2103 = vmatprep.subr.mxu0 0.0
    %2104 = vmatpush1.msra.mxu0 0.0
    %2105 = vmatprep.subr.mxu0 0.0
    %2106 = vmatpush1.msra.mxu0 0.0
    %2107 = vmatprep.subr.mxu0 0.0
    %2108 = vmatpush1.msra.mxu0 0.0
    %2109 = vmatprep.subr.mxu0 0.0
    %2110 = vmatpush1.msra.mxu0 0.0
    %2111 = vmatprep.mubr.f32.mxu0 0.0
    %2112 = vmatmul.mubr.f32.gmra.mrb[0].mxu0 %v2045
    %v2113 = vpop.f32.mrb[0].mxu0
    %v2114 = vadd.f32 %v2009, %v2113
    %v2115 = vpop.f32.mrb[0].mxu0
    %2116 = vdwg.mxu0
    %2117 = vmatprep.subr.mxu0 0.0
    %2118 = vmatpush1.msra.mxu0 %v1836
    %2119 = vmatprep.subr.mxu0 0.0
    %2120 = vmatpush1.msra.mxu0 0.0
    %2121 = vmatprep.subr.mxu0 0.0
    %2122 = vmatpush1.msra.mxu0 0.0
    %2123 = vmatprep.subr.mxu0 0.0
    %2124 = vmatpush1.msra.mxu0 0.0
    %2125 = vmatprep.subr.mxu0 0.0
    %2126 = vmatpush1.msra.mxu0 0.0
    %2127 = vmatprep.subr.mxu0 0.0
    %2128 = vmatpush1.msra.mxu0 0.0
    %2129 = vmatprep.subr.mxu0 0.0
    %2130 = vmatpush1.msra.mxu0 0.0
    %2131 = vmatprep.subr.mxu0 0.0
    %2132 = vmatpush1.msra.mxu0 0.0
    %2133 = vmatprep.subr.mxu0 0.0
    %2134 = vmatpush1.msra.mxu0 0.0
    %2135 = vmatprep.subr.mxu0 0.0
    %2136 = vmatpush1.msra.mxu0 0.0
    %2137 = vmatprep.subr.mxu0 0.0
    %2138 = vmatpush1.msra.mxu0 0.0
    %2139 = vmatprep.subr.mxu0 0.0
    %2140 = vmatpush1.msra.mxu0 0.0
    %2141 = vmatprep.subr.mxu0 0.0
    %2142 = vmatpush1.msra.mxu0 0.0
    %2143 = vmatprep.subr.mxu0 0.0
    %2144 = vmatpush1.msra.mxu0 0.0
    %2145 = vmatprep.subr.mxu0 0.0
    %2146 = vmatpush1.msra.mxu0 0.0
    %2147 = vmatprep.subr.mxu0 0.0
    %2148 = vmatpush1.msra.mxu0 0.0
    %2149 = vmatprep.subr.mxu0 0.0
    %2150 = vmatpush1.msra.mxu0 0.0
    %2151 = vmatprep.subr.mxu0 0.0
    %2152 = vmatpush1.msra.mxu0 0.0
    %2153 = vmatprep.subr.mxu0 0.0
    %2154 = vmatpush1.msra.mxu0 0.0
    %2155 = vmatprep.subr.mxu0 0.0
    %2156 = vmatpush1.msra.mxu0 0.0
    %2157 = vmatprep.subr.mxu0 0.0
    %2158 = vmatpush1.msra.mxu0 0.0
    %2159 = vmatprep.subr.mxu0 0.0
    %2160 = vmatpush1.msra.mxu0 0.0
    %2161 = vmatprep.subr.mxu0 0.0
    %2162 = vmatpush1.msra.mxu0 0.0
    %2163 = vmatprep.subr.mxu0 0.0
    %2164 = vmatpush1.msra.mxu0 0.0
    %2165 = vmatprep.subr.mxu0 0.0
    %2166 = vmatpush1.msra.mxu0 0.0
    %2167 = vmatprep.subr.mxu0 0.0
    %2168 = vmatpush1.msra.mxu0 0.0
    %2169 = vmatprep.subr.mxu0 0.0
    %2170 = vmatpush1.msra.mxu0 0.0
    %2171 = vmatprep.subr.mxu0 0.0
    %2172 = vmatpush1.msra.mxu0 0.0
    %2173 = vmatprep.subr.mxu0 0.0
    %2174 = vmatpush1.msra.mxu0 0.0
    %2175 = vmatprep.subr.mxu0 0.0
    %2176 = vmatpush1.msra.mxu0 0.0
    %2177 = vmatprep.subr.mxu0 0.0
    %2178 = vmatpush1.msra.mxu0 0.0
    %2179 = vmatprep.subr.mxu0 0.0
    %2180 = vmatpush1.msra.mxu0 0.0
    %2181 = vmatprep.mubr.f32.mxu0 0.0
    %2182 = vmatmul.mubr.f32.gmra.mrb[0].mxu0 %v1676
    %v2183 = vpop.f32.mrb[0].mxu0
    %v2184 = vadd.f32 0.0, %v2183
    %v2185 = vpop.f32.mrb[0].mxu0
    %2186 = vdwg.mxu0
    %2195 = vrot.lane.b32.xlu0 %v1748, 64
    %v2196 = vpop.permute.xlu0 %2195
    %2197 = vrot.lane.b32.xlu0 %v1749, 64
    %v2198 = vpop.permute.xlu0 %2197
    %2199 = vrot.lane.b32.xlu0 %v1750, 64
    %v2200 = vpop.permute.xlu0 %2199
    %2201 = vrot.lane.b32.xlu0 %v1751, 64
    %v2202 = vpop.permute.xlu0 %2201
    %2203 = vrot.lane.b32.xlu0 %v1752, 64
    %v2204 = vpop.permute.xlu0 %2203
    %2205 = vrot.lane.b32.xlu0 %v1753, 64
    %v2206 = vpop.permute.xlu0 %2205
    %2207 = vrot.lane.b32.xlu0 %v1754, 64
    %v2208 = vpop.permute.xlu0 %2207
    %2209 = vrot.lane.b32.xlu0 %v1755, 64
    %v2210 = vpop.permute.xlu0 %2209
    %v2220 = vsel %vm1203, %v2184, 0
    %2222 = vmatprep.subr.mxu0 0.0
    %2223 = vmatpush1.msra.mxu0 %v2196
    %2224 = vmatprep.subr.mxu0 0.0
    %2225 = vmatpush1.msra.mxu0 %v2198
    %2226 = vmatprep.subr.mxu0 0.0
    %2227 = vmatpush1.msra.mxu0 %v2200
    %2228 = vmatprep.subr.mxu0 0.0
    %2229 = vmatpush1.msra.mxu0 %v2202
    %2230 = vmatprep.subr.mxu0 0.0
    %2231 = vmatpush1.msra.mxu0 %v2204
    %2232 = vmatprep.subr.mxu0 0.0
    %2233 = vmatpush1.msra.mxu0 %v2206
    %2234 = vmatprep.subr.mxu0 0.0
    %2235 = vmatpush1.msra.mxu0 %v2208
    %2236 = vmatprep.subr.mxu0 0.0
    %2237 = vmatpush1.msra.mxu0 %v2210
    %2238 = vmatprep.subr.mxu0 0.0
    %2239 = vmatpush1.msra.mxu0 0.0
    %2240 = vmatprep.subr.mxu0 0.0
    %2241 = vmatpush1.msra.mxu0 0.0
    %2242 = vmatprep.subr.mxu0 0.0
    %2243 = vmatpush1.msra.mxu0 0.0
    %2244 = vmatprep.subr.mxu0 0.0
    %2245 = vmatpush1.msra.mxu0 0.0
    %2246 = vmatprep.subr.mxu0 0.0
    %2247 = vmatpush1.msra.mxu0 0.0
    %2248 = vmatprep.subr.mxu0 0.0
    %2249 = vmatpush1.msra.mxu0 0.0
    %2250 = vmatprep.subr.mxu0 0.0
    %2251 = vmatpush1.msra.mxu0 0.0
    %2252 = vmatprep.subr.mxu0 0.0
    %2253 = vmatpush1.msra.mxu0 0.0
    %2254 = vmatprep.subr.mxu0 0.0
    %2255 = vmatpush1.msra.mxu0 0.0
    %2256 = vmatprep.subr.mxu0 0.0
    %2257 = vmatpush1.msra.mxu0 0.0
    %2258 = vmatprep.subr.mxu0 0.0
    %2259 = vmatpush1.msra.mxu0 0.0
    %2260 = vmatprep.subr.mxu0 0.0
    %2261 = vmatpush1.msra.mxu0 0.0
    %2262 = vmatprep.subr.mxu0 0.0
    %2263 = vmatpush1.msra.mxu0 0.0
    %2264 = vmatprep.subr.mxu0 0.0
    %2265 = vmatpush1.msra.mxu0 0.0
    %2266 = vmatprep.subr.mxu0 0.0
    %2267 = vmatpush1.msra.mxu0 0.0
    %2268 = vmatprep.subr.mxu0 0.0
    %2269 = vmatpush1.msra.mxu0 0.0
    %2270 = vmatprep.subr.mxu0 0.0
    %2271 = vmatpush1.msra.mxu0 0.0
    %2272 = vmatprep.subr.mxu0 0.0
    %2273 = vmatpush1.msra.mxu0 0.0
    %2274 = vmatprep.subr.mxu0 0.0
    %2275 = vmatpush1.msra.mxu0 0.0
    %2276 = vmatprep.subr.mxu0 0.0
    %2277 = vmatpush1.msra.mxu0 0.0
    %2278 = vmatprep.subr.mxu0 0.0
    %2279 = vmatpush1.msra.mxu0 0.0
    %2280 = vmatprep.subr.mxu0 0.0
    %2281 = vmatpush1.msra.mxu0 0.0
    %2282 = vmatprep.subr.mxu0 0.0
    %2283 = vmatpush1.msra.mxu0 0.0
    %2284 = vmatprep.subr.mxu0 0.0
    %2285 = vmatpush1.msra.mxu0 0.0
    %2286 = vmatprep.mubr.f32.mxu0 0.0
    %2287 = vmatmul.mubr.f32.gmra.mrb[0].mxu0 %v2220
    %v2288 = vpop.f32.mrb[0].mxu0
    %v2289 = vadd.f32 0.0, %v2288
    %v2290 = vpop.f32.mrb[0].mxu0
    %2291 = vdwg.mxu0
    %v2292 = vadd.f32 %v2114, %v2289
    %v2293 = vld [vmem:[#allocation8 + $0x2] sm:$0x1]
    %v2294 = vlaneseq
    %v2295 = vshrl.u32 %v2294, 7
    %v2296 = vsub.s32 0, %v2295
    %v2297 = vrot.slane %v2293, %v2296
    %v2298 = vadd.f32 %v2292, %v2297
    %v2299 = vadd.f32 %v2298, %v1439
    %v2300 = vmax.f32 %v2299, 0.0
    %v2302 = vrot.slane %v2300, 2
    %v2304 = vadd.f32 %v2300, %v2302
    %v2305 = vrot.slane %v2300, 4
    %v2307 = vadd.f32 %v2304, %v2305
    %v2308 = vrot.slane %v2300, 6
    %v2310 = vadd.f32 %v2307, %v2308
    %2312 = vrot.lane.b32.xlu0 %v2310, 112
    %v2313 = vpop.permute.xlu0 %2312
    %v2315 = vadd.f32 %v2310, %v2313
    %2316 = vrot.lane.b32.xlu0 %v2310, 96
    %v2317 = vpop.permute.xlu0 %2316
    %v2319 = vadd.f32 %v2315, %v2317
    %2320 = vrot.lane.b32.xlu0 %v2310, 80
    %v2321 = vpop.permute.xlu0 %2320
    %v2323 = vadd.f32 %v2319, %v2321
    %v2324 = vmul.f32 %v2323, 0.0625
    %v2325 = vld [vmem:[#allocation7] sm:$0xff]
    %v2326 = vld [vmem:[#allocation7 + $0x8] sm:$0xff]
    %v2327 = vld [vmem:[#allocation8 + $0x3] sm:$0x1]
    %v2328 = vlaneseq
    %v2329 = vshrl.u32 %v2328, 7
    %v2330 = vsub.s32 0, %v2329
    %v2331 = vrot.slane %v2327, %v2330
    %vm2332 = vcmask 130048
    %v2334 = vsel %vm2332, %v2324, 0
    %2336 = vmatprep.subr.mxu0 0.0
    %2337 = vmatpush1.msra.mxu0 %v2325
    %2338 = vmatprep.subr.mxu0 0.0
    %2339 = vmatpush1.msra.mxu0 %v2326
    %2340 = vmatprep.subr.mxu0 0.0
    %2341 = vmatpush1.msra.mxu0 0.0
    %2342 = vmatprep.subr.mxu0 0.0
    %2343 = vmatpush1.msra.mxu0 0.0
    %2344 = vmatprep.subr.mxu0 0.0
    %2345 = vmatpush1.msra.mxu0 0.0
    %2346 = vmatprep.subr.mxu0 0.0
    %2347 = vmatpush1.msra.mxu0 0.0
    %2348 = vmatprep.subr.mxu0 0.0
    %2349 = vmatpush1.msra.mxu0 0.0
    %2350 = vmatprep.subr.mxu0 0.0
    %2351 = vmatpush1.msra.mxu0 0.0
    %2352 = vmatprep.subr.mxu0 0.0
    %2353 = vmatpush1.msra.mxu0 0.0
    %2354 = vmatprep.subr.mxu0 0.0
    %2355 = vmatpush1.msra.mxu0 0.0
    %2356 = vmatprep.subr.mxu0 0.0
    %2357 = vmatpush1.msra.mxu0 0.0
    %2358 = vmatprep.subr.mxu0 0.0
    %2359 = vmatpush1.msra.mxu0 0.0
    %2360 = vmatprep.subr.mxu0 0.0
    %2361 = vmatpush1.msra.mxu0 0.0
    %2362 = vmatprep.subr.mxu0 0.0
    %2363 = vmatpush1.msra.mxu0 0.0
    %2364 = vmatprep.subr.mxu0 0.0
    %2365 = vmatpush1.msra.mxu0 0.0
    %2366 = vmatprep.subr.mxu0 0.0
    %2367 = vmatpush1.msra.mxu0 0.0
    %2368 = vmatprep.subr.mxu0 0.0
    %2369 = vmatpush1.msra.mxu0 0.0
    %2370 = vmatprep.subr.mxu0 0.0
    %2371 = vmatpush1.msra.mxu0 0.0
    %2372 = vmatprep.subr.mxu0 0.0
    %2373 = vmatpush1.msra.mxu0 0.0
    %2374 = vmatprep.subr.mxu0 0.0
    %2375 = vmatpush1.msra.mxu0 0.0
    %2376 = vmatprep.subr.mxu0 0.0
    %2377 = vmatpush1.msra.mxu0 0.0
    %2378 = vmatprep.subr.mxu0 0.0
    %2379 = vmatpush1.msra.mxu0 0.0
    %2380 = vmatprep.subr.mxu0 0.0
    %2381 = vmatpush1.msra.mxu0 0.0
    %2382 = vmatprep.subr.mxu0 0.0
    %2383 = vmatpush1.msra.mxu0 0.0
    %2384 = vmatprep.subr.mxu0 0.0
    %2385 = vmatpush1.msra.mxu0 0.0
    %2386 = vmatprep.subr.mxu0 0.0
    %2387 = vmatpush1.msra.mxu0 0.0
    %2388 = vmatprep.subr.mxu0 0.0
    %2389 = vmatpush1.msra.mxu0 0.0
    %2390 = vmatprep.subr.mxu0 0.0
    %2391 = vmatpush1.msra.mxu0 0.0
    %2392 = vmatprep.subr.mxu0 0.0
    %2393 = vmatpush1.msra.mxu0 0.0
    %2394 = vmatprep.subr.mxu0 0.0
    %2395 = vmatpush1.msra.mxu0 0.0
    %2396 = vmatprep.subr.mxu0 0.0
    %2397 = vmatpush1.msra.mxu0 0.0
    %2398 = vmatprep.subr.mxu0 0.0
    %2399 = vmatpush1.msra.mxu0 0.0
    %2400 = vmatprep.mubr.f32.mxu0 0.0
    %2401 = vmatmul.mubr.f32.gmra.mrb[0].mxu0 %v2334
    %v2402 = vpop.f32.mrb[0].mxu0
    %v2403 = vadd.f32 %v2331, %v2402
    %v2404 = vpop.f32.mrb[0].mxu0
    %2405 = vdwg.mxu0
    %v2406 = vmul.f32 %v2403, 0.5
    %v2407 = vtanh.pop %v2406
    %v2408 = vmul.f32 %v2407, 0.5
    %v2409 = vadd.f32 %v2408, 0.5
    %v2410 = vmul.f32 %v2403, %v2409
    %v2411 = vld [vmem:[#allocation10] sm:$0x3]
    %v2412 = vld [vmem:[#allocation7 + $0x10] sm:$0xff]
    %v2413 = vld [vmem:[#allocation7 + $0x18] sm:$0xff]
    %v2414 = vld [vmem:[#allocation7 + $0x20] sm:$0xff]
    %v2415 = vld [vmem:[#allocation7 + $0x28] sm:$0xff]
    %v2416 = vld [vmem:[#allocation8 + $0x4] sm:$0x1]
    %v2417 = vlaneseq
    %v2418 = vshrl.u32 %v2417, 7
    %v2419 = vsub.s32 0, %v2418
    %v2420 = vrot.slane %v2416, %v2419
    %vm2421 = vcmask 261120
    %v2423 = vsel %vm2421, %v2410, 0
    %2425 = vmatprep.subr.mxu0 0.0
    %2426 = vmatpush1.msra.mxu0 %v2412
    %2427 = vmatprep.subr.mxu0 0.0
    %2428 = vmatpush1.msra.mxu0 %v2413
    %2429 = vmatprep.subr.mxu0 0.0
    %2430 = vmatpush1.msra.mxu0 %v2414
    %2431 = vmatprep.subr.mxu0 0.0
    %2432 = vmatpush1.msra.mxu0 %v2415
    %2433 = vmatprep.subr.mxu0 0.0
    %2434 = vmatpush1.msra.mxu0 0.0
    %2435 = vmatprep.subr.mxu0 0.0
    %2436 = vmatpush1.msra.mxu0 0.0
    %2437 = vmatprep.subr.mxu0 0.0
    %2438 = vmatpush1.msra.mxu0 0.0
    %2439 = vmatprep.subr.mxu0 0.0
    %2440 = vmatpush1.msra.mxu0 0.0
    %2441 = vmatprep.subr.mxu0 0.0
    %2442 = vmatpush1.msra.mxu0 0.0
    %2443 = vmatprep.subr.mxu0 0.0
    %2444 = vmatpush1.msra.mxu0 0.0
    %2445 = vmatprep.subr.mxu0 0.0
    %2446 = vmatpush1.msra.mxu0 0.0
    %2447 = vmatprep.subr.mxu0 0.0
    %2448 = vmatpush1.msra.mxu0 0.0
    %2449 = vmatprep.subr.mxu0 0.0
    %2450 = vmatpush1.msra.mxu0 0.0
    %2451 = vmatprep.subr.mxu0 0.0
    %2452 = vmatpush1.msra.mxu0 0.0
    %2453 = vmatprep.subr.mxu0 0.0
    %2454 = vmatpush1.msra.mxu0 0.0
    %2455 = vmatprep.subr.mxu0 0.0
    %2456 = vmatpush1.msra.mxu0 0.0
    %2457 = vmatprep.subr.mxu0 0.0
    %2458 = vmatpush1.msra.mxu0 0.0
    %2459 = vmatprep.subr.mxu0 0.0
    %2460 = vmatpush1.msra.mxu0 0.0
    %2461 = vmatprep.subr.mxu0 0.0
    %2462 = vmatpush1.msra.mxu0 0.0
    %2463 = vmatprep.subr.mxu0 0.0
    %2464 = vmatpush1.msra.mxu0 0.0
    %2465 = vmatprep.subr.mxu0 0.0
    %2466 = vmatpush1.msra.mxu0 0.0
    %2467 = vmatprep.subr.mxu0 0.0
    %2468 = vmatpush1.msra.mxu0 0.0
    %2469 = vmatprep.subr.mxu0 0.0
    %2470 = vmatpush1.msra.mxu0 0.0
    %2471 = vmatprep.subr.mxu0 0.0
    %2472 = vmatpush1.msra.mxu0 0.0
    %2473 = vmatprep.subr.mxu0 0.0
    %2474 = vmatpush1.msra.mxu0 0.0
    %2475 = vmatprep.subr.mxu0 0.0
    %2476 = vmatpush1.msra.mxu0 0.0
    %2477 = vmatprep.subr.mxu0 0.0
    %2478 = vmatpush1.msra.mxu0 0.0
    %2479 = vmatprep.subr.mxu0 0.0
    %2480 = vmatpush1.msra.mxu0 0.0
    %2481 = vmatprep.subr.mxu0 0.0
    %2482 = vmatpush1.msra.mxu0 0.0
    %2483 = vmatprep.subr.mxu0 0.0
    %2484 = vmatpush1.msra.mxu0 0.0
    %2485 = vmatprep.subr.mxu0 0.0
    %2486 = vmatpush1.msra.mxu0 0.0
    %2487 = vmatprep.subr.mxu0 0.0
    %2488 = vmatpush1.msra.mxu0 0.0
    %2489 = vmatprep.mubr.f32.mxu0 0.0
    %2490 = vmatmul.mubr.f32.gmra.mrb[0].mxu0 %v2423
    %v2491 = vpop.f32.mrb[0].mxu0
    %v2492 = vadd.f32 %v2420, %v2491
    %v2493 = vpop.f32.mrb[0].mxu0
    %2494 = vdwg.mxu0
    %v2495 = vmul.f32 %v2492, 0.5
    %v2496 = vtanh.pop %v2495
    %v2497 = vmul.f32 %v2496, 0.5
    %v2498 = vadd.f32 %v2497, 0.5
    %v2499 = vmul.f32 %v2492, %v2498
    %v2500 = vmax.f32 %v2492, 0.0
    %v2501 = vand.u32 2147483647, %v2492
    %v2502 = vsub.f32 0.0, %v2501
    %v2503 = vmul.f32 %v2502, 1.442695
    %v2504 = vpow.pop %v2503
    %v2505 = vadd.f32 %v2504, 1.0
    %v2506 = vlog2.pop %v2505
    %v2507 = vmul.f32 %v2506, 0.6931472
    %v2508 = vadd.f32 %v2500, %v2507
    %v2509 = vadd.f32 %v2508, 1e-08
    %v2510 = vlog2.pop %v2509
    %v2511 = vmul.f32 %v2510, 0.6931472
    %v2512 = vadd.f32 %v2511, 1.4189385
    %v2513 = vsub.f32 0.9, %v2512
    %v2514 = vmax.f32 %v2513, 0.0
    %2516 = vrot.lane.b32.xlu0 %v2514, 96
    %v2517 = vpop.permute.xlu0 %2516
    %vm2519 = vcmask 254976
    %v2520 = vsel %vm2519, %v2517, 0.0
    %2521 = vadd.xlane.f32.xlu0 %v2520
    %v2522 = vpop.xlane.xlu0 %2521
    %vm2523 = vcmask 1041408
    %v2524 = vsel %vm2523, %v2522, 0.0
    %v2525 = vrot.slane %v2524, 4
    %v2526 = vadd.f32 %v2524, %v2525
    %v2527 = vrot.slane %v2526, 2
    %v2528 = vadd.f32 %v2526, %v2527
    %v2529 = vrot.slane %v2528, 1
    %v2530 = vadd.f32 %v2528, %v2529
    %v2531 = vmul.f32 %v2530, 0.015625
    %2533 = vrot.lane.b32.xlu0 %v2411, 32
    %v2534 = vpop.permute.xlu0 %2533
    %v2536 = vmul.f32 %v2509, %v2534
    %2538 = vrot.lane.b32.xlu0 %v2536, 96
    %v2539 = vpop.permute.xlu0 %2538
    %v2541 = vadd.f32 %v2499, %v2539
    %v2542 = vld [vmem:[#allocation8 + $0x5] sm:$0x1]
    %v2543 = vlaneseq
    %v2544 = vshrl.u32 %v2543, 7
    %v2545 = vsub.s32 0, %v2544
    %v2546 = vrot.slane %v2542, %v2545
    %v2547 = vmul.f32 %v2541, %v2546
    %v2548 = vld [vmem:[#allocation8 + $0x6] sm:$0x1]
    %v2549 = vlaneseq
    %v2550 = vshrl.u32 %v2549, 7
    %v2551 = vsub.s32 0, %v2550
    %v2552 = vrot.slane %v2548, %v2551
    %v2553 = vadd.f32 %v2547, %v2552
    %v2554 = vmul.f32 %v2553, 0.5
    %v2555 = vtanh.pop %v2554
    %v2556 = vmul.f32 %v2555, 0.5
    %v2557 = vadd.f32 %v2556, 0.5
    %v2558 = vmul.f32 %v2553, %v2557
    %v2559 = vld [vmem:[#allocation7 + $0xf0] sm:$0xff]
    %v2560 = vld [vmem:[#allocation7 + $0xf8] sm:$0xff]
    %v2561 = vld [vmem:[#allocation7 + $0x100] sm:$0xff]
    %v2562 = vld [vmem:[#allocation7 + $0x108] sm:$0xff]
    %v2563 = vld [vmem:[#allocation8 + $0xf] sm:$0x1]
    %v2564 = vlaneseq
    %v2565 = vshrl.u32 %v2564, 7
    %v2566 = vsub.s32 0, %v2565
    %v2567 = vrot.slane %v2563, %v2566
    %v2569 = vsel %vm2421, %v2558, 0
    %2571 = vmatprep.subr.mxu0 0.0
    %2572 = vmatpush1.msra.mxu0 %v2559
    %2573 = vmatprep.subr.mxu0 0.0
    %2574 = vmatpush1.msra.mxu0 %v2560
    %2575 = vmatprep.subr.mxu0 0.0
    %2576 = vmatpush1.msra.mxu0 %v2561
    %2577 = vmatprep.subr.mxu0 0.0
    %2578 = vmatpush1.msra.mxu0 %v2562
    %2579 = vmatprep.subr.mxu0 0.0
    %2580 = vmatpush1.msra.mxu0 0.0
    %2581 = vmatprep.subr.mxu0 0.0
    %2582 = vmatpush1.msra.mxu0 0.0
    %2583 = vmatprep.subr.mxu0 0.0
    %2584 = vmatpush1.msra.mxu0 0.0
    %2585 = vmatprep.subr.mxu0 0.0
    %2586 = vmatpush1.msra.mxu0 0.0
    %2587 = vmatprep.subr.mxu0 0.0
    %2588 = vmatpush1.msra.mxu0 0.0
    %2589 = vmatprep.subr.mxu0 0.0
    %2590 = vmatpush1.msra.mxu0 0.0
    %2591 = vmatprep.subr.mxu0 0.0
    %2592 = vmatpush1.msra.mxu0 0.0
    %2593 = vmatprep.subr.mxu0 0.0
    %2594 = vmatpush1.msra.mxu0 0.0
    %2595 = vmatprep.subr.mxu0 0.0
    %2596 = vmatpush1.msra.mxu0 0.0
    %2597 = vmatprep.subr.mxu0 0.0
    %2598 = vmatpush1.msra.mxu0 0.0
    %2599 = vmatprep.subr.mxu0 0.0
    %2600 = vmatpush1.msra.mxu0 0.0
    %2601 = vmatprep.subr.mxu0 0.0
    %2602 = vmatpush1.msra.mxu0 0.0
    %2603 = vmatprep.subr.mxu0 0.0
    %2604 = vmatpush1.msra.mxu0 0.0
    %2605 = vmatprep.subr.mxu0 0.0
    %2606 = vmatpush1.msra.mxu0 0.0
    %2607 = vmatprep.subr.mxu0 0.0
    %2608 = vmatpush1.msra.mxu0 0.0
    %2609 = vmatprep.subr.mxu0 0.0
    %2610 = vmatpush1.msra.mxu0 0.0
    %2611 = vmatprep.subr.mxu0 0.0
    %2612 = vmatpush1.msra.mxu0 0.0
    %2613 = vmatprep.subr.mxu0 0.0
    %2614 = vmatpush1.msra.mxu0 0.0
    %2615 = vmatprep.subr.mxu0 0.0
    %2616 = vmatpush1.msra.mxu0 0.0
    %2617 = vmatprep.subr.mxu0 0.0
    %2618 = vmatpush1.msra.mxu0 0.0
    %2619 = vmatprep.subr.mxu0 0.0
    %2620 = vmatpush1.msra.mxu0 0.0
    %2621 = vmatprep.subr.mxu0 0.0
    %2622 = vmatpush1.msra.mxu0 0.0
    %2623 = vmatprep.subr.mxu0 0.0
    %2624 = vmatpush1.msra.mxu0 0.0
    %2625 = vmatprep.subr.mxu0 0.0
    %2626 = vmatpush1.msra.mxu0 0.0
    %2627 = vmatprep.subr.mxu0 0.0
    %2628 = vmatpush1.msra.mxu0 0.0
    %2629 = vmatprep.subr.mxu0 0.0
    %2630 = vmatpush1.msra.mxu0 0.0
    %2631 = vmatprep.subr.mxu0 0.0
    %2632 = vmatpush1.msra.mxu0 0.0
    %2633 = vmatprep.subr.mxu0 0.0
    %2634 = vmatpush1.msra.mxu0 0.0
    %2635 = vmatprep.mubr.f32.mxu0 0.0
    %2636 = vmatmul.mubr.f32.gmra.mrb[0].mxu0 %v2569
    %v2637 = vpop.f32.mrb[0].mxu0
    %v2638 = vadd.f32 %v2567, %v2637
    %v2639 = vpop.f32.mrb[0].mxu0
    %2640 = vdwg.mxu0
    %vm2641 = vcmask 58368
    %v2642 = vsel %vm2641, %v2638, -inf
    %2643 = vmax.xlane.f32.xlu0 %v2642
    %v2644 = vpop.xlane.xlu0 %2643
    %v2645 = vsub.f32 %v2638, %v2644
    %v2646 = vmul.f32 %v2645, 1.442695
    %v2647 = vpow.pop %v2646
    %v2648 = vsel %vm2641, %v2647, 0.0
    %2649 = vadd.xlane.f32.xlu0 %v2648
    %v2650 = vpop.xlane.xlu0 %2649
    %v2651 = vrcp.pop %v2650
    %v2652 = vmul.f32 %v2647, %v2651
    %v2653 = vld [vmem:[#allocation7 + $0x30] sm:$0xff]
    %v2654 = vld [vmem:[#allocation7 + $0x38] sm:$0xff]
    %v2655 = vld [vmem:[#allocation7 + $0x40] sm:$0xff]
    %v2656 = vld [vmem:[#allocation7 + $0x48] sm:$0xff]
    %v2657 = vld [vmem:[#allocation8 + $0x7] sm:$0x1]
    %v2658 = vlaneseq
    %v2659 = vshrl.u32 %v2658, 7
    %v2660 = vsub.s32 0, %v2659
    %v2661 = vrot.slane %v2657, %v2660
    %2662 = vmatprep.subr.mxu0 0.0
    %2663 = vmatpush1.msra.mxu0 %v2653
    %2664 = vmatprep.subr.mxu0 0.0
    %2665 = vmatpush1.msra.mxu0 %v2654
    %2666 = vmatprep.subr.mxu0 0.0
    %2667 = vmatpush1.msra.mxu0 %v2655
    %2668 = vmatprep.subr.mxu0 0.0
    %2669 = vmatpush1.msra.mxu0 %v2656
    %2670 = vmatprep.subr.mxu0 0.0
    %2671 = vmatpush1.msra.mxu0 0.0
    %2672 = vmatprep.subr.mxu0 0.0
    %2673 = vmatpush1.msra.mxu0 0.0
    %2674 = vmatprep.subr.mxu0 0.0
    %2675 = vmatpush1.msra.mxu0 0.0
    %2676 = vmatprep.subr.mxu0 0.0
    %2677 = vmatpush1.msra.mxu0 0.0
    %2678 = vmatprep.subr.mxu0 0.0
    %2679 = vmatpush1.msra.mxu0 0.0
    %2680 = vmatprep.subr.mxu0 0.0
    %2681 = vmatpush1.msra.mxu0 0.0
    %2682 = vmatprep.subr.mxu0 0.0
    %2683 = vmatpush1.msra.mxu0 0.0
    %2684 = vmatprep.subr.mxu0 0.0
    %2685 = vmatpush1.msra.mxu0 0.0
    %2686 = vmatprep.subr.mxu0 0.0
    %2687 = vmatpush1.msra.mxu0 0.0
    %2688 = vmatprep.subr.mxu0 0.0
    %2689 = vmatpush1.msra.mxu0 0.0
    %2690 = vmatprep.subr.mxu0 0.0
    %2691 = vmatpush1.msra.mxu0 0.0
    %2692 = vmatprep.subr.mxu0 0.0
    %2693 = vmatpush1.msra.mxu0 0.0
    %2694 = vmatprep.subr.mxu0 0.0
    %2695 = vmatpush1.msra.mxu0 0.0
    %2696 = vmatprep.subr.mxu0 0.0
    %2697 = vmatpush1.msra.mxu0 0.0
    %2698 = vmatprep.subr.mxu0 0.0
    %2699 = vmatpush1.msra.mxu0 0.0
    %2700 = vmatprep.subr.mxu0 0.0
    %2701 = vmatpush1.msra.mxu0 0.0
    %2702 = vmatprep.subr.mxu0 0.0
    %2703 = vmatpush1.msra.mxu0 0.0
    %2704 = vmatprep.subr.mxu0 0.0
    %2705 = vmatpush1.msra.mxu0 0.0
    %2706 = vmatprep.subr.mxu0 0.0
    %2707 = vmatpush1.msra.mxu0 0.0
    %2708 = vmatprep.subr.mxu0 0.0
    %2709 = vmatpush1.msra.mxu0 0.0
    %2710 = vmatprep.subr.mxu0 0.0
    %2711 = vmatpush1.msra.mxu0 0.0
    %2712 = vmatprep.subr.mxu0 0.0
    %2713 = vmatpush1.msra.mxu0 0.0
    %2714 = vmatprep.subr.mxu0 0.0
    %2715 = vmatpush1.msra.mxu0 0.0
    %2716 = vmatprep.subr.mxu0 0.0
    %2717 = vmatpush1.msra.mxu0 0.0
    %2718 = vmatprep.subr.mxu0 0.0
    %2719 = vmatpush1.msra.mxu0 0.0
    %2720 = vmatprep.subr.mxu0 0.0
    %2721 = vmatpush1.msra.mxu0 0.0
    %2722 = vmatprep.subr.mxu0 0.0
    %2723 = vmatpush1.msra.mxu0 0.0
    %2724 = vmatprep.subr.mxu0 0.0
    %2725 = vmatpush1.msra.mxu0 0.0
    %2726 = vmatprep.mubr.f32.mxu0 0.0
    %2727 = vmatmul.mubr.f32.gmra.mrb[0].mxu0 %v2569
    %v2728 = vpop.f32.mrb[0].mxu0
    %v2729 = vadd.f32 %v2661, %v2728
    %v2730 = vpop.f32.mrb[0].mxu0
    %2731 = vdwg.mxu0
    %v2732 = vmax.f32 %v2729, 0.0
    %v2733 = vld [vmem:[#allocation7 + $0x50] sm:$0xff]
    %v2734 = vld [vmem:[#allocation7 + $0x58] sm:$0xff]
    %v2735 = vld [vmem:[#allocation7 + $0x60] sm:$0xff]
    %v2736 = vld [vmem:[#allocation7 + $0x68] sm:$0xff]
    %v2737 = vld [vmem:[#allocation7 + $0x70] sm:$0xff]
    %v2738 = vld [vmem:[#allocation7 + $0x78] sm:$0xff]
    %v2739 = vld [vmem:[#allocation7 + $0x80] sm:$0xff]
    %v2740 = vld [vmem:[#allocation7 + $0x88] sm:$0xff]
    %v2741 = vld [vmem:[#allocation8 + $0x8] sm:$0x1]
    %v2742 = vlaneseq
    %v2743 = vshrl.u32 %v2742, 7
    %v2744 = vsub.s32 0, %v2743
    %v2745 = vrot.slane %v2741, %v2744
    %v2747 = vsel %vm1203, %v2732, 0
    %2749 = vmatprep.subr.mxu0 0.0
    %2750 = vmatpush1.msra.mxu0 %v2733
    %2751 = vmatprep.subr.mxu0 0.0
    %2752 = vmatpush1.msra.mxu0 %v2734
    %2753 = vmatprep.subr.mxu0 0.0
    %2754 = vmatpush1.msra.mxu0 %v2735
    %2755 = vmatprep.subr.mxu0 0.0
    %2756 = vmatpush1.msra.mxu0 %v2736
    %2757 = vmatprep.subr.mxu0 0.0
    %2758 = vmatpush1.msra.mxu0 %v2737
    %2759 = vmatprep.subr.mxu0 0.0
    %2760 = vmatpush1.msra.mxu0 %v2738
    %2761 = vmatprep.subr.mxu0 0.0
    %2762 = vmatpush1.msra.mxu0 %v2739
    %2763 = vmatprep.subr.mxu0 0.0
    %2764 = vmatpush1.msra.mxu0 %v2740
    %2765 = vmatprep.subr.mxu0 0.0
    %2766 = vmatpush1.msra.mxu0 0.0
    %2767 = vmatprep.subr.mxu0 0.0
    %2768 = vmatpush1.msra.mxu0 0.0
    %2769 = vmatprep.subr.mxu0 0.0
    %2770 = vmatpush1.msra.mxu0 0.0
    %2771 = vmatprep.subr.mxu0 0.0
    %2772 = vmatpush1.msra.mxu0 0.0
    %2773 = vmatprep.subr.mxu0 0.0
    %2774 = vmatpush1.msra.mxu0 0.0
    %2775 = vmatprep.subr.mxu0 0.0
    %2776 = vmatpush1.msra.mxu0 0.0
    %2777 = vmatprep.subr.mxu0 0.0
    %2778 = vmatpush1.msra.mxu0 0.0
    %2779 = vmatprep.subr.mxu0 0.0
    %2780 = vmatpush1.msra.mxu0 0.0
    %2781 = vmatprep.subr.mxu0 0.0
    %2782 = vmatpush1.msra.mxu0 0.0
    %2783 = vmatprep.subr.mxu0 0.0
    %2784 = vmatpush1.msra.mxu0 0.0
    %2785 = vmatprep.subr.mxu0 0.0
    %2786 = vmatpush1.msra.mxu0 0.0
    %2787 = vmatprep.subr.mxu0 0.0
    %2788 = vmatpush1.msra.mxu0 0.0
    %2789 = vmatprep.subr.mxu0 0.0
    %2790 = vmatpush1.msra.mxu0 0.0
    %2791 = vmatprep.subr.mxu0 0.0
    %2792 = vmatpush1.msra.mxu0 0.0
    %2793 = vmatprep.subr.mxu0 0.0
    %2794 = vmatpush1.msra.mxu0 0.0
    %2795 = vmatprep.subr.mxu0 0.0
    %2796 = vmatpush1.msra.mxu0 0.0
    %2797 = vmatprep.subr.mxu0 0.0
    %2798 = vmatpush1.msra.mxu0 0.0
    %2799 = vmatprep.subr.mxu0 0.0
    %2800 = vmatpush1.msra.mxu0 0.0
    %2801 = vmatprep.subr.mxu0 0.0
    %2802 = vmatpush1.msra.mxu0 0.0
    %2803 = vmatprep.subr.mxu0 0.0
    %2804 = vmatpush1.msra.mxu0 0.0
    %2805 = vmatprep.subr.mxu0 0.0
    %2806 = vmatpush1.msra.mxu0 0.0
    %2807 = vmatprep.subr.mxu0 0.0
    %2808 = vmatpush1.msra.mxu0 0.0
    %2809 = vmatprep.subr.mxu0 0.0
    %2810 = vmatpush1.msra.mxu0 0.0
    %2811 = vmatprep.subr.mxu0 0.0
    %2812 = vmatpush1.msra.mxu0 0.0
    %2813 = vmatprep.mubr.f32.mxu0 0.0
    %2814 = vmatmul.mubr.f32.gmra.mrb[0].mxu0 %v2747
    %v2815 = vpop.f32.mrb[0].mxu0
    %v2816 = vadd.f32 %v2745, %v2815
    %v2817 = vpop.f32.mrb[0].mxu0
    %2818 = vdwg.mxu0
    %v2819 = vmax.f32 %v2816, 0.0
    %v2820 = vld [vmem:[#allocation7 + $0x90] sm:$0xff]
    %v2821 = vld [vmem:[#allocation7 + $0x98] sm:$0xff]
    %v2822 = vld [vmem:[#allocation7 + $0xa0] sm:$0xff]
    %v2823 = vld [vmem:[#allocation7 + $0xa8] sm:$0xff]
    %v2824 = vld [vmem:[#allocation7 + $0xb0] sm:$0xff]
    %v2825 = vld [vmem:[#allocation7 + $0xb8] sm:$0xff]
    %v2826 = vld [vmem:[#allocation7 + $0xc0] sm:$0xff]
    %v2827 = vld [vmem:[#allocation7 + $0xc8] sm:$0xff]
    %v2828 = vld [vmem:[#allocation8 + $0x9] sm:$0x1]
    %v2829 = vlaneseq
    %v2830 = vshrl.u32 %v2829, 7
    %v2831 = vsub.s32 0, %v2830
    %v2832 = vrot.slane %v2828, %v2831
    %v2834 = vsel %vm1203, %v2819, 0
    %2836 = vmatprep.subr.mxu0 0.0
    %2837 = vmatpush1.msra.mxu0 %v2820
    %2838 = vmatprep.subr.mxu0 0.0
    %2839 = vmatpush1.msra.mxu0 %v2821
    %2840 = vmatprep.subr.mxu0 0.0
    %2841 = vmatpush1.msra.mxu0 %v2822
    %2842 = vmatprep.subr.mxu0 0.0
    %2843 = vmatpush1.msra.mxu0 %v2823
    %2844 = vmatprep.subr.mxu0 0.0
    %2845 = vmatpush1.msra.mxu0 %v2824
    %2846 = vmatprep.subr.mxu0 0.0
    %2847 = vmatpush1.msra.mxu0 %v2825
    %2848 = vmatprep.subr.mxu0 0.0
    %2849 = vmatpush1.msra.mxu0 %v2826
    %2850 = vmatprep.subr.mxu0 0.0
    %2851 = vmatpush1.msra.mxu0 %v2827
    %2852 = vmatprep.subr.mxu0 0.0
    %2853 = vmatpush1.msra.mxu0 0.0
    %2854 = vmatprep.subr.mxu0 0.0
    %2855 = vmatpush1.msra.mxu0 0.0
    %2856 = vmatprep.subr.mxu0 0.0
    %2857 = vmatpush1.msra.mxu0 0.0
    %2858 = vmatprep.subr.mxu0 0.0
    %2859 = vmatpush1.msra.mxu0 0.0
    %2860 = vmatprep.subr.mxu0 0.0
    %2861 = vmatpush1.msra.mxu0 0.0
    %2862 = vmatprep.subr.mxu0 0.0
    %2863 = vmatpush1.msra.mxu0 0.0
    %2864 = vmatprep.subr.mxu0 0.0
    %2865 = vmatpush1.msra.mxu0 0.0
    %2866 = vmatprep.subr.mxu0 0.0
    %2867 = vmatpush1.msra.mxu0 0.0
    %2868 = vmatprep.subr.mxu0 0.0
    %2869 = vmatpush1.msra.mxu0 0.0
    %2870 = vmatprep.subr.mxu0 0.0
    %2871 = vmatpush1.msra.mxu0 0.0
    %2872 = vmatprep.subr.mxu0 0.0
    %2873 = vmatpush1.msra.mxu0 0.0
    %2874 = vmatprep.subr.mxu0 0.0
    %2875 = vmatpush1.msra.mxu0 0.0
    %2876 = vmatprep.subr.mxu0 0.0
    %2877 = vmatpush1.msra.mxu0 0.0
    %2878 = vmatprep.subr.mxu0 0.0
    %2879 = vmatpush1.msra.mxu0 0.0
    %2880 = vmatprep.subr.mxu0 0.0
    %2881 = vmatpush1.msra.mxu0 0.0
    %2882 = vmatprep.subr.mxu0 0.0
    %2883 = vmatpush1.msra.mxu0 0.0
    %2884 = vmatprep.subr.mxu0 0.0
    %2885 = vmatpush1.msra.mxu0 0.0
    %2886 = vmatprep.subr.mxu0 0.0
    %2887 = vmatpush1.msra.mxu0 0.0
    %2888 = vmatprep.subr.mxu0 0.0
    %2889 = vmatpush1.msra.mxu0 0.0
    %2890 = vmatprep.subr.mxu0 0.0
    %2891 = vmatpush1.msra.mxu0 0.0
    %2892 = vmatprep.subr.mxu0 0.0
    %2893 = vmatpush1.msra.mxu0 0.0
    %2894 = vmatprep.subr.mxu0 0.0
    %2895 = vmatpush1.msra.mxu0 0.0
    %2896 = vmatprep.subr.mxu0 0.0
    %2897 = vmatpush1.msra.mxu0 0.0
    %2898 = vmatprep.subr.mxu0 0.0
    %2899 = vmatpush1.msra.mxu0 0.0
    %2900 = vmatprep.mubr.f32.mxu0 0.0
    %2901 = vmatmul.mubr.f32.gmra.mrb[0].mxu0 %v2834
    %v2902 = vpop.f32.mrb[0].mxu0
    %v2903 = vadd.f32 %v2832, %v2902
    %v2904 = vpop.f32.mrb[0].mxu0
    %2905 = vdwg.mxu0
    %v2906 = vadd.f32 %v2558, %v2903
    %v2907 = vld [vmem:[#allocation8 + $0xa] sm:$0x1]
    %v2908 = vlaneseq
    %v2909 = vshrl.u32 %v2908, 7
    %v2910 = vsub.s32 0, %v2909
    %v2911 = vrot.slane %v2907, %v2910
    %v2912 = vmul.f32 %v2906, %v2911
    %v2913 = vld [vmem:[#allocation8 + $0xb] sm:$0x1]
    %v2914 = vlaneseq
    %v2915 = vshrl.u32 %v2914, 7
    %v2916 = vsub.s32 0, %v2915
    %v2917 = vrot.slane %v2913, %v2916
    %v2918 = vadd.f32 %v2912, %v2917
    %v2919 = vmul.f32 %v2918, 0.5
    %v2920 = vtanh.pop %v2919
    %v2921 = vmul.f32 %v2920, 0.5
    %v2922 = vadd.f32 %v2921, 0.5
    %v2923 = vmul.f32 %v2918, %v2922
    %v2924 = vld [vmem:[#allocation10 + $0x2] sm:$0x3]
    %v2925 = vld [vmem:[#allocation7 + $0xd0] sm:$0xff]
    %v2926 = vld [vmem:[#allocation7 + $0xd8] sm:$0xff]
    %v2927 = vld [vmem:[#allocation7 + $0xe0] sm:$0xff]
    %v2928 = vld [vmem:[#allocation7 + $0xe8] sm:$0xff]
    %v2929 = vld [vmem:[#allocation8 + $0xc] sm:$0x1]
    %v2930 = vlaneseq
    %v2931 = vshrl.u32 %v2930, 7
    %v2932 = vsub.s32 0, %v2931
    %v2933 = vrot.slane %v2929, %v2932
    %v2935 = vsel %vm2421, %v2923, 0
    %2937 = vmatprep.subr.mxu0 0.0
    %2938 = vmatpush1.msra.mxu0 %v2925
    %2939 = vmatprep.subr.mxu0 0.0
    %2940 = vmatpush1.msra.mxu0 %v2926
    %2941 = vmatprep.subr.mxu0 0.0
    %2942 = vmatpush1.msra.mxu0 %v2927
    %2943 = vmatprep.subr.mxu0 0.0
    %2944 = vmatpush1.msra.mxu0 %v2928
    %2945 = vmatprep.subr.mxu0 0.0
    %2946 = vmatpush1.msra.mxu0 0.0
    %2947 = vmatprep.subr.mxu0 0.0
    %2948 = vmatpush1.msra.mxu0 0.0
    %2949 = vmatprep.subr.mxu0 0.0
    %2950 = vmatpush1.msra.mxu0 0.0
    %2951 = vmatprep.subr.mxu0 0.0
    %2952 = vmatpush1.msra.mxu0 0.0
    %2953 = vmatprep.subr.mxu0 0.0
    %2954 = vmatpush1.msra.mxu0 0.0
    %2955 = vmatprep.subr.mxu0 0.0
    %2956 = vmatpush1.msra.mxu0 0.0
    %2957 = vmatprep.subr.mxu0 0.0
    %2958 = vmatpush1.msra.mxu0 0.0
    %2959 = vmatprep.subr.mxu0 0.0
    %2960 = vmatpush1.msra.mxu0 0.0
    %2961 = vmatprep.subr.mxu0 0.0
    %2962 = vmatpush1.msra.mxu0 0.0
    %2963 = vmatprep.subr.mxu0 0.0
    %2964 = vmatpush1.msra.mxu0 0.0
    %2965 = vmatprep.subr.mxu0 0.0
    %2966 = vmatpush1.msra.mxu0 0.0
    %2967 = vmatprep.subr.mxu0 0.0
    %2968 = vmatpush1.msra.mxu0 0.0
    %2969 = vmatprep.subr.mxu0 0.0
    %2970 = vmatpush1.msra.mxu0 0.0
    %2971 = vmatprep.subr.mxu0 0.0
    %2972 = vmatpush1.msra.mxu0 0.0
    %2973 = vmatprep.subr.mxu0 0.0
    %2974 = vmatpush1.msra.mxu0 0.0
    %2975 = vmatprep.subr.mxu0 0.0
    %2976 = vmatpush1.msra.mxu0 0.0
    %2977 = vmatprep.subr.mxu0 0.0
    %2978 = vmatpush1.msra.mxu0 0.0
    %2979 = vmatprep.subr.mxu0 0.0
    %2980 = vmatpush1.msra.mxu0 0.0
    %2981 = vmatprep.subr.mxu0 0.0
    %2982 = vmatpush1.msra.mxu0 0.0
    %2983 = vmatprep.subr.mxu0 0.0
    %2984 = vmatpush1.msra.mxu0 0.0
    %2985 = vmatprep.subr.mxu0 0.0
    %2986 = vmatpush1.msra.mxu0 0.0
    %2987 = vmatprep.subr.mxu0 0.0
    %2988 = vmatpush1.msra.mxu0 0.0
    %2989 = vmatprep.subr.mxu0 0.0
    %2990 = vmatpush1.msra.mxu0 0.0
    %2991 = vmatprep.subr.mxu0 0.0
    %2992 = vmatpush1.msra.mxu0 0.0
    %2993 = vmatprep.subr.mxu0 0.0
    %2994 = vmatpush1.msra.mxu0 0.0
    %2995 = vmatprep.subr.mxu0 0.0
    %2996 = vmatpush1.msra.mxu0 0.0
    %2997 = vmatprep.subr.mxu0 0.0
    %2998 = vmatpush1.msra.mxu0 0.0
    %2999 = vmatprep.subr.mxu0 0.0
    %3000 = vmatpush1.msra.mxu0 0.0
    %3001 = vmatprep.mubr.f32.mxu0 0.0
    %3002 = vmatmul.mubr.f32.gmra.mrb[0].mxu0 %v2935
    %v3003 = vpop.f32.mrb[0].mxu0
    %v3004 = vadd.f32 %v2933, %v3003
    %v3005 = vpop.f32.mrb[0].mxu0
    %3006 = vdwg.mxu0
    %v3007 = vmul.f32 %v3004, 0.5
    %v3008 = vtanh.pop %v3007
    %v3009 = vmul.f32 %v3008, 0.5
    %v3010 = vadd.f32 %v3009, 0.5
    %v3011 = vmul.f32 %v3004, %v3010
    %v3012 = vmax.f32 %v3004, 0.0
    %v3013 = vand.u32 2147483647, %v3004
    %v3014 = vsub.f32 0.0, %v3013
    %v3015 = vmul.f32 %v3014, 1.442695
    %v3016 = vpow.pop %v3015
    %v3017 = vadd.f32 %v3016, 1.0
    %v3018 = vlog2.pop %v3017
    %v3019 = vmul.f32 %v3018, 0.6931472
    %v3020 = vadd.f32 %v3012, %v3019
    %v3021 = vadd.f32 %v3020, 1e-08
    %v3022 = vlog2.pop %v3021
    %v3023 = vmul.f32 %v3022, 0.6931472
    %v3024 = vadd.f32 %v3023, 1.4189385
    %v3025 = vsub.f32 0.9, %v3024
    %v3026 = vmax.f32 %v3025, 0.0
    %3028 = vrot.lane.b32.xlu0 %v3026, 96
    %v3029 = vpop.permute.xlu0 %3028
    %v3031 = vsel %vm2519, %v3029, 0.0
    %3032 = vadd.xlane.f32.xlu0 %v3031
    %v3033 = vpop.xlane.xlu0 %3032
    %v3034 = vsel %vm2523, %v3033, 0.0
    %v3035 = vrot.slane %v3034, 4
    %v3036 = vadd.f32 %v3034, %v3035
    %v3037 = vrot.slane %v3036, 2
    %v3038 = vadd.f32 %v3036, %v3037
    %v3039 = vrot.slane %v3038, 1
    %v3040 = vadd.f32 %v3038, %v3039
    %v3041 = vmul.f32 %v3040, 0.015625
    %3043 = vrot.lane.b32.xlu0 %v2924, 32
    %v3044 = vpop.permute.xlu0 %3043
    %v3046 = vmul.f32 %v3021, %v3044
    %3048 = vrot.lane.b32.xlu0 %v3046, 96
    %v3049 = vpop.permute.xlu0 %3048
    %v3051 = vadd.f32 %v3011, %v3049
    %v3052 = vld [vmem:[#allocation8 + $0xd] sm:$0x1]
    %v3053 = vlaneseq
    %v3054 = vshrl.u32 %v3053, 7
    %v3055 = vsub.s32 0, %v3054
    %v3056 = vrot.slane %v3052, %v3055
    %v3057 = vmul.f32 %v3051, %v3056
    %v3058 = vld [vmem:[#allocation8 + $0xe] sm:$0x1]
    %v3059 = vlaneseq
    %v3060 = vshrl.u32 %v3059, 7
    %v3061 = vsub.s32 0, %v3060
    %v3062 = vrot.slane %v3058, %v3061
    %v3063 = vadd.f32 %v3057, %v3062
    %v3064 = vmul.f32 %v3063, 0.5
    %v3065 = vtanh.pop %v3064
    %v3066 = vmul.f32 %v3065, 0.5
    %v3067 = vadd.f32 %v3066, 0.5
    %v3068 = vmul.f32 %v3063, %v3067
    %v3070 = vsel %vm2421, %v3068, 0
    %3072 = vmatprep.subr.mxu0 0.0
    %3073 = vmatpush1.msra.mxu0 %v2559
    %3074 = vmatprep.subr.mxu0 0.0
    %3075 = vmatpush1.msra.mxu0 %v2560
    %3076 = vmatprep.subr.mxu0 0.0
    %3077 = vmatpush1.msra.mxu0 %v2561
    %3078 = vmatprep.subr.mxu0 0.0
    %3079 = vmatpush1.msra.mxu0 %v2562
    %3080 = vmatprep.subr.mxu0 0.0
    %3081 = vmatpush1.msra.mxu0 0.0
    %3082 = vmatprep.subr.mxu0 0.0
    %3083 = vmatpush1.msra.mxu0 0.0
    %3084 = vmatprep.subr.mxu0 0.0
    %3085 = vmatpush1.msra.mxu0 0.0
    %3086 = vmatprep.subr.mxu0 0.0
    %3087 = vmatpush1.msra.mxu0 0.0
    %3088 = vmatprep.subr.mxu0 0.0
    %3089 = vmatpush1.msra.mxu0 0.0
    %3090 = vmatprep.subr.mxu0 0.0
    %3091 = vmatpush1.msra.mxu0 0.0
    %3092 = vmatprep.subr.mxu0 0.0
    %3093 = vmatpush1.msra.mxu0 0.0
    %3094 = vmatprep.subr.mxu0 0.0
    %3095 = vmatpush1.msra.mxu0 0.0
    %3096 = vmatprep.subr.mxu0 0.0
    %3097 = vmatpush1.msra.mxu0 0.0
    %3098 = vmatprep.subr.mxu0 0.0
    %3099 = vmatpush1.msra.mxu0 0.0
    %3100 = vmatprep.subr.mxu0 0.0
    %3101 = vmatpush1.msra.mxu0 0.0
    %3102 = vmatprep.subr.mxu0 0.0
    %3103 = vmatpush1.msra.mxu0 0.0
    %3104 = vmatprep.subr.mxu0 0.0
    %3105 = vmatpush1.msra.mxu0 0.0
    %3106 = vmatprep.subr.mxu0 0.0
    %3107 = vmatpush1.msra.mxu0 0.0
    %3108 = vmatprep.subr.mxu0 0.0
    %3109 = vmatpush1.msra.mxu0 0.0
    %3110 = vmatprep.subr.mxu0 0.0
    %3111 = vmatpush1.msra.mxu0 0.0
    %3112 = vmatprep.subr.mxu0 0.0
    %3113 = vmatpush1.msra.mxu0 0.0
    %3114 = vmatprep.subr.mxu0 0.0
    %3115 = vmatpush1.msra.mxu0 0.0
    %3116 = vmatprep.subr.mxu0 0.0
    %3117 = vmatpush1.msra.mxu0 0.0
    %3118 = vmatprep.subr.mxu0 0.0
    %3119 = vmatpush1.msra.mxu0 0.0
    %3120 = vmatprep.subr.mxu0 0.0
    %3121 = vmatpush1.msra.mxu0 0.0
    %3122 = vmatprep.subr.mxu0 0.0
    %3123 = vmatpush1.msra.mxu0 0.0
    %3124 = vmatprep.subr.mxu0 0.0
    %3125 = vmatpush1.msra.mxu0 0.0
    %3126 = vmatprep.subr.mxu0 0.0
    %3127 = vmatpush1.msra.mxu0 0.0
    %3128 = vmatprep.subr.mxu0 0.0
    %3129 = vmatpush1.msra.mxu0 0.0
    %3130 = vmatprep.subr.mxu0 0.0
    %3131 = vmatpush1.msra.mxu0 0.0
    %3132 = vmatprep.subr.mxu0 0.0
    %3133 = vmatpush1.msra.mxu0 0.0
    %3134 = vmatprep.subr.mxu0 0.0
    %3135 = vmatpush1.msra.mxu0 0.0
    %3136 = vmatprep.mubr.f32.mxu0 0.0
    %3137 = vmatmul.mubr.f32.gmra.mrb[0].mxu0 %v3070
    %v3138 = vpop.f32.mrb[0].mxu0
    %v3139 = vadd.f32 %v2567, %v3138
    %v3140 = vpop.f32.mrb[0].mxu0
    %3141 = vdwg.mxu0
    %v3142 = vsel %vm2641, %v3139, -inf
    %3143 = vmax.xlane.f32.xlu0 %v3142
    %v3144 = vpop.xlane.xlu0 %3143
    %v3145 = vsub.f32 %v3139, %v3144
    %v3146 = vmul.f32 %v3145, 1.442695
    %v3147 = vpow.pop %v3146
    %v3148 = vsel %vm2641, %v3147, 0.0
    %3149 = vadd.xlane.f32.xlu0 %v3148
    %v3150 = vpop.xlane.xlu0 %3149
    %v3151 = vrcp.pop %v3150
    %v3152 = vmul.f32 %v3147, %v3151
    %v3153 = vadd.s32 %v1166, 128
    %vm3154 = vcmp.eq.s32.totalorder %v1166, %v1168
    %vm3155 = vcmp.eq.s32.totalorder %v3153, %v1168
    %vm3156 = vcmp.eq.s32.totalorder %v1166, %v1169
    %vm3157 = vcmp.eq.s32.totalorder %v3153, %v1169
    %v3158 = vsel %vm3154, 1.0, 0.0
    %v3159 = vsel %vm3155, 1.0, 0.0
    %v3160 = vsel %vm3156, 1.0, 0.0
    %v3161 = vsel %vm3157, 1.0, 0.0
    %vm3162 = vcmp.eq.s32.totalorder %v3153, %v1170
    %vm3163 = vcmp.eq.s32.totalorder %v3153, %v1176
    %vm3164 = vcmp.eq.s32.totalorder %v3153, %v1177
    %vm3165 = vcmp.eq.s32.totalorder %v3153, %v1178
    %v3166 = vsel %vm3162, 1.0, 0.0
    %v3167 = vsel %vm3163, 1.0, 0.0
    %v3168 = vsel %vm3164, 1.0, 0.0
    %v3169 = vsel %vm3165, 1.0, 0.0
    %3170 = vmatprep.subr.mxu0 %v3166
    %3171 = vmatpush1.msra.mxu0 %v1191
    %3172 = vmatprep.subr.mxu0 %v3167
    %3173 = vmatpush1.msra.mxu0 %v1192
    %3174 = vmatprep.subr.mxu0 %v3168
    %3175 = vmatpush1.msra.mxu0 %v1193
    %3176 = vmatprep.subr.mxu0 %v3169
    %3177 = vmatpush1.msra.mxu0 %v1194
    %3178 = vmatprep.subr.mxu0 0.0
    %3179 = vmatpush1.msra.mxu0 0.0
    %3180 = vmatprep.subr.mxu0 0.0
    %3181 = vmatpush1.msra.mxu0 0.0
    %3182 = vmatprep.subr.mxu0 0.0
    %3183 = vmatpush1.msra.mxu0 0.0
    %3184 = vmatprep.subr.mxu0 0.0
    %3185 = vmatpush1.msra.mxu0 0.0
    %3186 = vmatprep.subr.mxu0 0.0
    %3187 = vmatpush1.msra.mxu0 0.0
    %3188 = vmatprep.subr.mxu0 0.0
    %3189 = vmatpush1.msra.mxu0 0.0
    %3190 = vmatprep.subr.mxu0 0.0
    %3191 = vmatpush1.msra.mxu0 0.0
    %3192 = vmatprep.subr.mxu0 0.0
    %3193 = vmatpush1.msra.mxu0 0.0
    %3194 = vmatprep.subr.mxu0 0.0
    %3195 = vmatpush1.msra.mxu0 0.0
    %3196 = vmatprep.subr.mxu0 0.0
    %3197 = vmatpush1.msra.mxu0 0.0
    %3198 = vmatprep.subr.mxu0 0.0
    %3199 = vmatpush1.msra.mxu0 0.0
    %3200 = vmatprep.subr.mxu0 0.0
    %3201 = vmatpush1.msra.mxu0 0.0
    %3202 = vmatprep.subr.mxu0 0.0
    %3203 = vmatpush1.msra.mxu0 0.0
    %3204 = vmatprep.subr.mxu0 0.0
    %3205 = vmatpush1.msra.mxu0 0.0
    %3206 = vmatprep.subr.mxu0 0.0
    %3207 = vmatpush1.msra.mxu0 0.0
    %3208 = vmatprep.subr.mxu0 0.0
    %3209 = vmatpush1.msra.mxu0 0.0
    %3210 = vmatprep.subr.mxu0 0.0
    %3211 = vmatpush1.msra.mxu0 0.0
    %3212 = vmatprep.subr.mxu0 0.0
    %3213 = vmatpush1.msra.mxu0 0.0
    %3214 = vmatprep.subr.mxu0 0.0
    %3215 = vmatpush1.msra.mxu0 0.0
    %3216 = vmatprep.subr.mxu0 0.0
    %3217 = vmatpush1.msra.mxu0 0.0
    %3218 = vmatprep.subr.mxu0 0.0
    %3219 = vmatpush1.msra.mxu0 0.0
    %3220 = vmatprep.subr.mxu0 0.0
    %3221 = vmatpush1.msra.mxu0 0.0
    %3222 = vmatprep.subr.mxu0 0.0
    %3223 = vmatpush1.msra.mxu0 0.0
    %3224 = vmatprep.subr.mxu0 0.0
    %3225 = vmatpush1.msra.mxu0 0.0
    %3226 = vmatprep.subr.mxu0 0.0
    %3227 = vmatpush1.msra.mxu0 0.0
    %3228 = vmatprep.subr.mxu0 0.0
    %3229 = vmatpush1.msra.mxu0 0.0
    %3230 = vmatprep.subr.mxu0 0.0
    %3231 = vmatpush1.msra.mxu0 0.0
    %3232 = vmatprep.subr.mxu0 0.0
    %3233 = vmatpush1.msra.mxu0 0.0
    %3234 = vmatprep.mubr.f32.mxu0 0.0
    %3235 = vmatmul.mubr.f32.gmra.mrb[0].mxu0 %v2569
    %v3236 = vpop.f32.mrb[0].mxu0
    %v3237 = vadd.f32 0.0, %v3236
    %v3238 = vpop.f32.mrb[0].mxu0
    %v3239 = vadd.f32 0.0, %v3238
    %3240 = vdwg.mxu0
    %3241 = vmatprep.subr.mxu0 %v3159
    %3242 = vmatpush1.msra.mxu0 %v3158
    %3243 = vmatprep.subr.mxu0 %v3161
    %3244 = vmatpush1.msra.mxu0 %v3160
    %3245 = vmatprep.subr.mxu0 0.0
    %3246 = vmatpush1.msra.mxu0 0.0
    %3247 = vmatprep.subr.mxu0 0.0
    %3248 = vmatpush1.msra.mxu0 0.0
    %3249 = vmatprep.subr.mxu0 0.0
    %3250 = vmatpush1.msra.mxu0 0.0
    %3251 = vmatprep.subr.mxu0 0.0
    %3252 = vmatpush1.msra.mxu0 0.0
    %3253 = vmatprep.subr.mxu0 0.0
    %3254 = vmatpush1.msra.mxu0 0.0
    %3255 = vmatprep.subr.mxu0 0.0
    %3256 = vmatpush1.msra.mxu0 0.0
    %3257 = vmatprep.subr.mxu0 0.0
    %3258 = vmatpush1.msra.mxu0 0.0
    %3259 = vmatprep.subr.mxu0 0.0
    %3260 = vmatpush1.msra.mxu0 0.0
    %3261 = vmatprep.subr.mxu0 0.0
    %3262 = vmatpush1.msra.mxu0 0.0
    %3263 = vmatprep.subr.mxu0 0.0
    %3264 = vmatpush1.msra.mxu0 0.0
    %3265 = vmatprep.subr.mxu0 0.0
    %3266 = vmatpush1.msra.mxu0 0.0
    %3267 = vmatprep.subr.mxu0 0.0
    %3268 = vmatpush1.msra.mxu0 0.0
    %3269 = vmatprep.subr.mxu0 0.0
    %3270 = vmatpush1.msra.mxu0 0.0
    %3271 = vmatprep.subr.mxu0 0.0
    %3272 = vmatpush1.msra.mxu0 0.0
    %3273 = vmatprep.subr.mxu0 0.0
    %3274 = vmatpush1.msra.mxu0 0.0
    %3275 = vmatprep.subr.mxu0 0.0
    %3276 = vmatpush1.msra.mxu0 0.0
    %3277 = vmatprep.subr.mxu0 0.0
    %3278 = vmatpush1.msra.mxu0 0.0
    %3279 = vmatprep.subr.mxu0 0.0
    %3280 = vmatpush1.msra.mxu0 0.0
    %3281 = vmatprep.subr.mxu0 0.0
    %3282 = vmatpush1.msra.mxu0 0.0
    %3283 = vmatprep.subr.mxu0 0.0
    %3284 = vmatpush1.msra.mxu0 0.0
    %3285 = vmatprep.subr.mxu0 0.0
    %3286 = vmatpush1.msra.mxu0 0.0
    %3287 = vmatprep.subr.mxu0 0.0
    %3288 = vmatpush1.msra.mxu0 0.0
    %3289 = vmatprep.subr.mxu0 0.0
    %3290 = vmatpush1.msra.mxu0 0.0
    %3291 = vmatprep.subr.mxu0 0.0
    %3292 = vmatpush1.msra.mxu0 0.0
    %3293 = vmatprep.subr.mxu0 0.0
    %3294 = vmatpush1.msra.mxu0 0.0
    %3295 = vmatprep.subr.mxu0 0.0
    %3296 = vmatpush1.msra.mxu0 0.0
    %3297 = vmatprep.subr.mxu0 0.0
    %3298 = vmatpush1.msra.mxu0 0.0
    %3299 = vmatprep.subr.mxu0 0.0
    %3300 = vmatpush1.msra.mxu0 0.0
    %3301 = vmatprep.subr.mxu0 0.0
    %3302 = vmatpush1.msra.mxu0 0.0
    %3303 = vmatprep.subr.mxu0 0.0
    %3304 = vmatpush1.msra.mxu0 0.0
    %3305 = vmatprep.mubr.f32.mxu0 0.0
    %3306 = vmatmul.mubr.f32.gmra.mrb[0].mxu0 %v2334
    %v3307 = vpop.f32.mrb[0].mxu0
    %v3308 = vadd.f32 %v3237, %v3307
    %v3309 = vpop.f32.mrb[0].mxu0
    %v3310 = vadd.f32 %v3239, %v3309
    %3311 = vdwg.mxu0
    %v3312 = vadd.s32 %v1169, 48
    %v3313 = vadd.s32 %v1170, 48
    %v3314 = vadd.s32 %v1171, 48
    %vm3315 = vcmp.eq.s32.totalorder %v1166, %v1174
    %vm3316 = vcmp.eq.s32.totalorder %v3153, %v1174
    %vm3317 = vcmp.eq.s32.totalorder %v1166, %v3312
    %vm3318 = vcmp.eq.s32.totalorder %v3153, %v3312
    %vm3319 = vcmp.eq.s32.totalorder %v1166, %v3313
    %vm3320 = vcmp.eq.s32.totalorder %v3153, %v3313
    %vm3321 = vcmp.eq.s32.totalorder %v1166, %v3314
    %vm3322 = vcmp.eq.s32.totalorder %v3153, %v3314
    %v3323 = vsel %vm3315, 1.0, 0.0
    %v3324 = vsel %vm3316, 1.0, 0.0
    %v3325 = vsel %vm3317, 1.0, 0.0
    %v3326 = vsel %vm3318, 1.0, 0.0
    %v3327 = vsel %vm3319, 1.0, 0.0
    %v3328 = vsel %vm3320, 1.0, 0.0
    %v3329 = vsel %vm3321, 1.0, 0.0
    %v3330 = vsel %vm3322, 1.0, 0.0
    %v3332 = vsel %vm2421, %v2903, 0
    %3334 = vmatprep.subr.mxu0 %v3324
    %3335 = vmatpush1.msra.mxu0 %v3323
    %3336 = vmatprep.subr.mxu0 %v3326
    %3337 = vmatpush1.msra.mxu0 %v3325
    %3338 = vmatprep.subr.mxu0 %v3328
    %3339 = vmatpush1.msra.mxu0 %v3327
    %3340 = vmatprep.subr.mxu0 %v3330
    %3341 = vmatpush1.msra.mxu0 %v3329
    %3342 = vmatprep.subr.mxu0 0.0
    %3343 = vmatpush1.msra.mxu0 0.0
    %3344 = vmatprep.subr.mxu0 0.0
    %3345 = vmatpush1.msra.mxu0 0.0
    %3346 = vmatprep.subr.mxu0 0.0
    %3347 = vmatpush1.msra.mxu0 0.0
    %3348 = vmatprep.subr.mxu0 0.0
    %3349 = vmatpush1.msra.mxu0 0.0
    %3350 = vmatprep.subr.mxu0 0.0
    %3351 = vmatpush1.msra.mxu0 0.0
    %3352 = vmatprep.subr.mxu0 0.0
    %3353 = vmatpush1.msra.mxu0 0.0
    %3354 = vmatprep.subr.mxu0 0.0
    %3355 = vmatpush1.msra.mxu0 0.0
    %3356 = vmatprep.subr.mxu0 0.0
    %3357 = vmatpush1.msra.mxu0 0.0
    %3358 = vmatprep.subr.mxu0 0.0
    %3359 = vmatpush1.msra.mxu0 0.0
    %3360 = vmatprep.subr.mxu0 0.0
    %3361 = vmatpush1.msra.mxu0 0.0
    %3362 = vmatprep.subr.mxu0 0.0
    %3363 = vmatpush1.msra.mxu0 0.0
    %3364 = vmatprep.subr.mxu0 0.0
    %3365 = vmatpush1.msra.mxu0 0.0
    %3366 = vmatprep.subr.mxu0 0.0
    %3367 = vmatpush1.msra.mxu0 0.0
    %3368 = vmatprep.subr.mxu0 0.0
    %3369 = vmatpush1.msra.mxu0 0.0
    %3370 = vmatprep.subr.mxu0 0.0
    %3371 = vmatpush1.msra.mxu0 0.0
    %3372 = vmatprep.subr.mxu0 0.0
    %3373 = vmatpush1.msra.mxu0 0.0
    %3374 = vmatprep.subr.mxu0 0.0
    %3375 = vmatpush1.msra.mxu0 0.0
    %3376 = vmatprep.subr.mxu0 0.0
    %3377 = vmatpush1.msra.mxu0 0.0
    %3378 = vmatprep.subr.mxu0 0.0
    %3379 = vmatpush1.msra.mxu0 0.0
    %3380 = vmatprep.subr.mxu0 0.0
    %3381 = vmatpush1.msra.mxu0 0.0
    %3382 = vmatprep.subr.mxu0 0.0
    %3383 = vmatpush1.msra.mxu0 0.0
    %3384 = vmatprep.subr.mxu0 0.0
    %3385 = vmatpush1.msra.mxu0 0.0
    %3386 = vmatprep.subr.mxu0 0.0
    %3387 = vmatpush1.msra.mxu0 0.0
    %3388 = vmatprep.subr.mxu0 0.0
    %3389 = vmatpush1.msra.mxu0 0.0
    %3390 = vmatprep.subr.mxu0 0.0
    %3391 = vmatpush1.msra.mxu0 0.0
    %3392 = vmatprep.subr.mxu0 0.0
    %3393 = vmatpush1.msra.mxu0 0.0
    %3394 = vmatprep.subr.mxu0 0.0
    %3395 = vmatpush1.msra.mxu0 0.0
    %3396 = vmatprep.subr.mxu0 0.0
    %3397 = vmatpush1.msra.mxu0 0.0
    %3398 = vmatprep.mubr.f32.mxu0 0.0
    %3399 = vmatmul.mubr.f32.gmra.mrb[0].mxu0 %v3332
    %v3400 = vpop.f32.mrb[0].mxu0
    %v3401 = vadd.f32 0.0, %v3400
    %v3402 = vpop.f32.mrb[0].mxu0
    %v3403 = vadd.f32 0.0, %v3402
    %3404 = vdwg.mxu0
    %v3405 = vadd.f32 %v3308, %v3401
    %v3406 = vadd.f32 %v3310, %v3403
    %v3407 = vadd.s32 %v1168, 80
    %v3408 = vadd.s32 %v1169, 80
    %v3409 = vadd.s32 %v1170, 80
    %v3410 = vadd.s32 %v1171, 80
    %vm3411 = vcmp.eq.s32.totalorder %v1166, %v3407
    %vm3412 = vcmp.eq.s32.totalorder %v3153, %v3407
    %vm3413 = vcmp.eq.s32.totalorder %v1166, %v3408
    %vm3414 = vcmp.eq.s32.totalorder %v3153, %v3408
    %vm3415 = vcmp.eq.s32.totalorder %v1166, %v3409
    %vm3416 = vcmp.eq.s32.totalorder %v3153, %v3409
    %vm3417 = vcmp.eq.s32.totalorder %v1166, %v3410
    %vm3418 = vcmp.eq.s32.totalorder %v3153, %v3410
    %v3419 = vsel %vm3411, 1.0, 0.0
    %v3420 = vsel %vm3412, 1.0, 0.0
    %v3421 = vsel %vm3413, 1.0, 0.0
    %v3422 = vsel %vm3414, 1.0, 0.0
    %v3423 = vsel %vm3415, 1.0, 0.0
    %v3424 = vsel %vm3416, 1.0, 0.0
    %v3425 = vsel %vm3417, 1.0, 0.0
    %v3426 = vsel %vm3418, 1.0, 0.0
    %3427 = vmatprep.subr.mxu0 %v3420
    %3428 = vmatpush1.msra.mxu0 %v3419
    %3429 = vmatprep.subr.mxu0 %v3422
    %3430 = vmatpush1.msra.mxu0 %v3421
    %3431 = vmatprep.subr.mxu0 %v3424
    %3432 = vmatpush1.msra.mxu0 %v3423
    %3433 = vmatprep.subr.mxu0 %v3426
    %3434 = vmatpush1.msra.mxu0 %v3425
    %3435 = vmatprep.subr.mxu0 0.0
    %3436 = vmatpush1.msra.mxu0 0.0
    %3437 = vmatprep.subr.mxu0 0.0
    %3438 = vmatpush1.msra.mxu0 0.0
    %3439 = vmatprep.subr.mxu0 0.0
    %3440 = vmatpush1.msra.mxu0 0.0
    %3441 = vmatprep.subr.mxu0 0.0
    %3442 = vmatpush1.msra.mxu0 0.0
    %3443 = vmatprep.subr.mxu0 0.0
    %3444 = vmatpush1.msra.mxu0 0.0
    %3445 = vmatprep.subr.mxu0 0.0
    %3446 = vmatpush1.msra.mxu0 0.0
    %3447 = vmatprep.subr.mxu0 0.0
    %3448 = vmatpush1.msra.mxu0 0.0
    %3449 = vmatprep.subr.mxu0 0.0
    %3450 = vmatpush1.msra.mxu0 0.0
    %3451 = vmatprep.subr.mxu0 0.0
    %3452 = vmatpush1.msra.mxu0 0.0
    %3453 = vmatprep.subr.mxu0 0.0
    %3454 = vmatpush1.msra.mxu0 0.0
    %3455 = vmatprep.subr.mxu0 0.0
    %3456 = vmatpush1.msra.mxu0 0.0
    %3457 = vmatprep.subr.mxu0 0.0
    %3458 = vmatpush1.msra.mxu0 0.0
    %3459 = vmatprep.subr.mxu0 0.0
    %3460 = vmatpush1.msra.mxu0 0.0
    %3461 = vmatprep.subr.mxu0 0.0
    %3462 = vmatpush1.msra.mxu0 0.0
    %3463 = vmatprep.subr.mxu0 0.0
    %3464 = vmatpush1.msra.mxu0 0.0
    %3465 = vmatprep.subr.mxu0 0.0
    %3466 = vmatpush1.msra.mxu0 0.0
    %3467 = vmatprep.subr.mxu0 0.0
    %3468 = vmatpush1.msra.mxu0 0.0
    %3469 = vmatprep.subr.mxu0 0.0
    %3470 = vmatpush1.msra.mxu0 0.0
    %3471 = vmatprep.subr.mxu0 0.0
    %3472 = vmatpush1.msra.mxu0 0.0
    %3473 = vmatprep.subr.mxu0 0.0
    %3474 = vmatpush1.msra.mxu0 0.0
    %3475 = vmatprep.subr.mxu0 0.0
    %3476 = vmatpush1.msra.mxu0 0.0
    %3477 = vmatprep.subr.mxu0 0.0
    %3478 = vmatpush1.msra.mxu0 0.0
    %3479 = vmatprep.subr.mxu0 0.0
    %3480 = vmatpush1.msra.mxu0 0.0
    %3481 = vmatprep.subr.mxu0 0.0
    %3482 = vmatpush1.msra.mxu0 0.0
    %3483 = vmatprep.subr.mxu0 0.0
    %3484 = vmatpush1.msra.mxu0 0.0
    %3485 = vmatprep.subr.mxu0 0.0
    %3486 = vmatpush1.msra.mxu0 0.0
    %3487 = vmatprep.subr.mxu0 0.0
    %3488 = vmatpush1.msra.mxu0 0.0
    %3489 = vmatprep.subr.mxu0 0.0
    %3490 = vmatpush1.msra.mxu0 0.0
    %3491 = vmatprep.mubr.f32.mxu0 0.0
    %3492 = vmatmul.mubr.f32.gmra.mrb[0].mxu0 %v3070
    %v3493 = vpop.f32.mrb[0].mxu0
    %v3494 = vadd.f32 0.0, %v3493
    %v3495 = vpop.f32.mrb[0].mxu0
    %v3496 = vadd.f32 0.0, %v3495
    %3497 = vdwg.mxu0
    %v3498 = vadd.f32 %v3405, %v3494
    %v3499 = vadd.f32 %v3406, %v3496
    %v3500 = vadd.s32 %v1168, 112
    %vm3501 = vcmp.eq.s32.totalorder %v1166, %v3500
    %vm3502 = vcmp.eq.s32.totalorder %v3153, %v3500
    %v3503 = vsel %vm3501, 1.0, 0.0
    %v3504 = vsel %vm3502, 1.0, 0.0
    %v3506 = vsel %vm1363, %v2652, 0
    %3508 = vmatprep.subr.mxu0 %v3504
    %3509 = vmatpush1.msra.mxu0 %v3503
    %3510 = vmatprep.subr.mxu0 0.0
    %3511 = vmatpush1.msra.mxu0 0.0
    %3512 = vmatprep.subr.mxu0 0.0
    %3513 = vmatpush1.msra.mxu0 0.0
    %3514 = vmatprep.subr.mxu0 0.0
    %3515 = vmatpush1.msra.mxu0 0.0
    %3516 = vmatprep.subr.mxu0 0.0
    %3517 = vmatpush1.msra.mxu0 0.0
    %3518 = vmatprep.subr.mxu0 0.0
    %3519 = vmatpush1.msra.mxu0 0.0
    %3520 = vmatprep.subr.mxu0 0.0
    %3521 = vmatpush1.msra.mxu0 0.0
    %3522 = vmatprep.subr.mxu0 0.0
    %3523 = vmatpush1.msra.mxu0 0.0
    %3524 = vmatprep.subr.mxu0 0.0
    %3525 = vmatpush1.msra.mxu0 0.0
    %3526 = vmatprep.subr.mxu0 0.0
    %3527 = vmatpush1.msra.mxu0 0.0
    %3528 = vmatprep.subr.mxu0 0.0
    %3529 = vmatpush1.msra.mxu0 0.0
    %3530 = vmatprep.subr.mxu0 0.0
    %3531 = vmatpush1.msra.mxu0 0.0
    %3532 = vmatprep.subr.mxu0 0.0
    %3533 = vmatpush1.msra.mxu0 0.0
    %3534 = vmatprep.subr.mxu0 0.0
    %3535 = vmatpush1.msra.mxu0 0.0
    %3536 = vmatprep.subr.mxu0 0.0
    %3537 = vmatpush1.msra.mxu0 0.0
    %3538 = vmatprep.subr.mxu0 0.0
    %3539 = vmatpush1.msra.mxu0 0.0
    %3540 = vmatprep.subr.mxu0 0.0
    %3541 = vmatpush1.msra.mxu0 0.0
    %3542 = vmatprep.subr.mxu0 0.0
    %3543 = vmatpush1.msra.mxu0 0.0
    %3544 = vmatprep.subr.mxu0 0.0
    %3545 = vmatpush1.msra.mxu0 0.0
    %3546 = vmatprep.subr.mxu0 0.0
    %3547 = vmatpush1.msra.mxu0 0.0
    %3548 = vmatprep.subr.mxu0 0.0
    %3549 = vmatpush1.msra.mxu0 0.0
    %3550 = vmatprep.subr.mxu0 0.0
    %3551 = vmatpush1.msra.mxu0 0.0
    %3552 = vmatprep.subr.mxu0 0.0
    %3553 = vmatpush1.msra.mxu0 0.0
    %3554 = vmatprep.subr.mxu0 0.0
    %3555 = vmatpush1.msra.mxu0 0.0
    %3556 = vmatprep.subr.mxu0 0.0
    %3557 = vmatpush1.msra.mxu0 0.0
    %3558 = vmatprep.subr.mxu0 0.0
    %3559 = vmatpush1.msra.mxu0 0.0
    %3560 = vmatprep.subr.mxu0 0.0
    %3561 = vmatpush1.msra.mxu0 0.0
    %3562 = vmatprep.subr.mxu0 0.0
    %3563 = vmatpush1.msra.mxu0 0.0
    %3564 = vmatprep.subr.mxu0 0.0
    %3565 = vmatpush1.msra.mxu0 0.0
    %3566 = vmatprep.subr.mxu0 0.0
    %3567 = vmatpush1.msra.mxu0 0.0
    %3568 = vmatprep.subr.mxu0 0.0
    %3569 = vmatpush1.msra.mxu0 0.0
    %3570 = vmatprep.subr.mxu0 0.0
    %3571 = vmatpush1.msra.mxu0 0.0
    %3572 = vmatprep.mubr.f32.mxu0 0.0
    %3573 = vmatmul.mubr.f32.gmra.mrb[0].mxu0 %v3506
    %v3574 = vpop.f32.mrb[0].mxu0
    %v3575 = vadd.f32 0.0, %v3574
    %v3576 = vpop.f32.mrb[0].mxu0
    %v3577 = vadd.f32 0.0, %v3576
    %3578 = vdwg.mxu0
    %v3579 = vadd.f32 %v3498, %v3575
    %v3580 = vadd.f32 %v3499, %v3577
    %v3581 = vadd.s32 %v1168, 120
    %vm3582 = vcmp.eq.s32.totalorder %v1166, %v3581
    %vm3583 = vcmp.eq.s32.totalorder %v3153, %v3581
    %v3584 = vsel %vm3582, 1.0, 0.0
    %v3585 = vsel %vm3583, 1.0, 0.0
    %v3587 = vsel %vm1363, %v3152, 0
    %3589 = vmatprep.subr.mxu0 %v3585
    %3590 = vmatpush1.msra.mxu0 %v3584
    %3591 = vmatprep.subr.mxu0 0.0
    %3592 = vmatpush1.msra.mxu0 0.0
    %3593 = vmatprep.subr.mxu0 0.0
    %3594 = vmatpush1.msra.mxu0 0.0
    %3595 = vmatprep.subr.mxu0 0.0
    %3596 = vmatpush1.msra.mxu0 0.0
    %3597 = vmatprep.subr.mxu0 0.0
    %3598 = vmatpush1.msra.mxu0 0.0
    %3599 = vmatprep.subr.mxu0 0.0
    %3600 = vmatpush1.msra.mxu0 0.0
    %3601 = vmatprep.subr.mxu0 0.0
    %3602 = vmatpush1.msra.mxu0 0.0
    %3603 = vmatprep.subr.mxu0 0.0
    %3604 = vmatpush1.msra.mxu0 0.0
    %3605 = vmatprep.subr.mxu0 0.0
    %3606 = vmatpush1.msra.mxu0 0.0
    %3607 = vmatprep.subr.mxu0 0.0
    %3608 = vmatpush1.msra.mxu0 0.0
    %3609 = vmatprep.subr.mxu0 0.0
    %3610 = vmatpush1.msra.mxu0 0.0
    %3611 = vmatprep.subr.mxu0 0.0
    %3612 = vmatpush1.msra.mxu0 0.0
    %3613 = vmatprep.subr.mxu0 0.0
    %3614 = vmatpush1.msra.mxu0 0.0
    %3615 = vmatprep.subr.mxu0 0.0
    %3616 = vmatpush1.msra.mxu0 0.0
    %3617 = vmatprep.subr.mxu0 0.0
    %3618 = vmatpush1.msra.mxu0 0.0
    %3619 = vmatprep.subr.mxu0 0.0
    %3620 = vmatpush1.msra.mxu0 0.0
    %3621 = vmatprep.subr.mxu0 0.0
    %3622 = vmatpush1.msra.mxu0 0.0
    %3623 = vmatprep.subr.mxu0 0.0
    %3624 = vmatpush1.msra.mxu0 0.0
    %3625 = vmatprep.subr.mxu0 0.0
    %3626 = vmatpush1.msra.mxu0 0.0
    %3627 = vmatprep.subr.mxu0 0.0
    %3628 = vmatpush1.msra.mxu0 0.0
    %3629 = vmatprep.subr.mxu0 0.0
    %3630 = vmatpush1.msra.mxu0 0.0
    %3631 = vmatprep.subr.mxu0 0.0
    %3632 = vmatpush1.msra.mxu0 0.0
    %3633 = vmatprep.subr.mxu0 0.0
    %3634 = vmatpush1.msra.mxu0 0.0
    %3635 = vmatprep.subr.mxu0 0.0
    %3636 = vmatpush1.msra.mxu0 0.0
    %3637 = vmatprep.subr.mxu0 0.0
    %3638 = vmatpush1.msra.mxu0 0.0
    %3639 = vmatprep.subr.mxu0 0.0
    %3640 = vmatpush1.msra.mxu0 0.0
    %3641 = vmatprep.subr.mxu0 0.0
    %3642 = vmatpush1.msra.mxu0 0.0
    %3643 = vmatprep.subr.mxu0 0.0
    %3644 = vmatpush1.msra.mxu0 0.0
    %3645 = vmatprep.subr.mxu0 0.0
    %3646 = vmatpush1.msra.mxu0 0.0
    %3647 = vmatprep.subr.mxu0 0.0
    %3648 = vmatpush1.msra.mxu0 0.0
    %3649 = vmatprep.subr.mxu0 0.0
    %3650 = vmatpush1.msra.mxu0 0.0
    %3651 = vmatprep.subr.mxu0 0.0
    %3652 = vmatpush1.msra.mxu0 0.0
    %3653 = vmatprep.mubr.f32.mxu0 0.0
    %3654 = vmatmul.mubr.f32.gmra.mrb[0].mxu0 %v3587
    %v3655 = vpop.f32.mrb[0].mxu0
    %v3656 = vadd.f32 0.0, %v3655
    %v3657 = vpop.f32.mrb[0].mxu0
    %v3658 = vadd.f32 0.0, %v3657
    %3659 = vdwg.mxu0
    %v3660 = vadd.f32 %v3579, %v3656
    %v3661 = vadd.f32 %v3580, %v3658
    %vm3662 = vcmp.eq.s32.totalorder %v1168, 0
    %vm3663 = vcmp.eq.s32.totalorder %v1166, 128
    %vm3664 = vcmp.eq.s32.totalorder %v3153, 128
    %vm3665 = vmand %vm3662, %vm3663
    %vm3666 = vmand %vm3662, %vm3664
    %v3667 = vsel %vm3665, %v2531, 0.0
    %v3668 = vsel %vm3666, %v2531, 0.0
    %v3669 = vadd.f32 %v3660, %v3667
    %v3670 = vadd.f32 %v3661, %v3668
    %vm3671 = vcmp.eq.s32.totalorder %v1168, 1
    %vm3672 = vmand %vm3671, %vm3663
    %vm3673 = vmand %vm3671, %vm3664
    %v3674 = vsel %vm3672, %v3041, 0.0
    %v3675 = vsel %vm3673, %v3041, 0.0
    %v3676 = vadd.f32 %v3669, %v3674
    %v3677 = vadd.f32 %v3670, %v3675
    %v3680 = vcombine.low %v3676, %v3677
    %v3682 = vunpack.c.l.s4 1983009808
    %v3683 = vunpack.c.0.s8 %v3682
    %v3684 = vlaneseq
    %v3685 = vshrl.u32 %v3684, 7
    %v3686 = vsub.s32 %v3683, %v3685
    %v3687 = vrot.slane %v3680, %v3686
    %3689 = vst [vmem:[#allocation11] sm:$0xf] %v3687
    // Predicated region
    $region42: #{cosda_forward.1} parent=1 // pred_check
      _
    $region43: #{cosda_forward.1} parent=1 // pred_check_branch
      %3691 = sbr.rel (0) target = $region45
    $region44: #{cosda_forward.1} parent=1 // pred_region
      %s3693 = ssub.s32 64, 64
      %3694 = vsyncadd [#allocation4], %s3693
      %s3696 = sshll.u32 [#allocation11], 4
      %s3697 = int_to_ptr.vmem [resolvable:$true] %s3696
      %3699 = dma.vmem_to_hbm [thread:$0]  %s3697, 64, %s5, [#allocation4]
    $region45: #{cosda_forward.1} parent=1 // pred_fallthru
      _
    // Predicated region
    $region46: #{cosda_forward.1} parent=1 // pred_check
      _
    $region47: #{cosda_forward.1} parent=1 // pred_check_branch
      %3701 = sbr.rel (0) target = $region49
    $region48: #{cosda_forward.1} parent=1 // pred_region
      %3702 = dma.done [#allocation4], 64
    $region49: #{cosda_forward.1} parent=1 // pred_fallthru
      _
    %3703 = vsyncpa [#allocation3], 1
    %3704 = vsyncpa [#allocation6], 1
    %3705 = vsyncpa [#allocation9], 1
    %3706 = vsyncpa [#allocation4], 1

</llo_original>
